<compile_context>
chip_gen: v7x
topology: tpu7x:2x2x1
jax: 0.10.0
libtpu: 0.0.40
codegen_flags: <defaults>
</compile_context>

<pallas_src>
import functools

import jax
import jax.numpy as jnp
from jax.experimental import pallas as pl
from jax.experimental.pallas import tpu as pltpu


# ----------------------------------------------------------------------------
# Fused kernel: the whole CF forward after the bilinear resize, one grid step
# per batch-chunk (default: a single step for the full batch).
# ----------------------------------------------------------------------------
def _cf_fused_kernel(x_ref, w1_ref, b1_ref, m7sT_ref, m7rT_ref, w2_ref, b2_ref,
                     ca1_ref, ca2_ref, o_ref, *, Bs, HW, C, C4):
    C8 = 2 * C4
    f32 = jnp.float32
    bf16 = jnp.bfloat16

    # ---- Stage 1: 1x1 conv + folded BN + ReLU for both streams (block-diag W)
    x = x_ref[...]                                               # (Bs*HW, 2C) bf16
    y = jnp.dot(x, w1_ref[...], preferred_element_type=f32) + b1_ref[...]
    y = jnp.maximum(y, 0.0)                                      # (Bs*HW, C8) f32

    # ---- Per-pixel channel max of each stream (lane-masked; y>=0 so 0-fill
    #      is exact, matching torch.max over the real channels).
    lane_full = jax.lax.broadcasted_iota(jnp.int32, (Bs * HW, C8), 1)
    mr = jnp.max(jnp.where(lane_full < C4, y, 0.0), axis=1, keepdims=True)
    ms = jnp.max(jnp.where(lane_full < C4, 0.0, y), axis=1, keepdims=True)

    y3 = y.reshape(Bs, HW, C8)
    mr3 = mr.reshape(Bs, HW, 1)
    ms3 = ms.reshape(Bs, HW, 1)

    # Pack per-batch maxes as lane-dense rows (Bs, HW) via tiny (HW,2)->(2,HW)
    # transposes (one per batch).
    mrT_rows, msT_rows = [], []
    for b in range(Bs):
        m_bT = jnp.concatenate([mr3[b], ms3[b]], axis=1).T       # (2, HW)
        mrT_rows.append(m_bT[0:1])
        msT_rows.append(m_bT[1:2])
    mrT = jnp.concatenate(mrT_rows, axis=0)                      # (Bs, HW)
    msT = jnp.concatenate(msT_rows, axis=0)                      # (Bs, HW)

    # ---- SA gates: 7x7 conv as lane-dense (Bs,HW)@(HW,HW) bf16 matmuls.
    #      gate on rgb half uses w7_srgb_sa(conv of srgb max), and vice versa.
    g_rgb_T = jax.nn.sigmoid(jnp.dot(msT.astype(bf16), m7sT_ref[...],
                                     preferred_element_type=f32))   # (Bs, HW)
    g_srgb_T = jax.nn.sigmoid(jnp.dot(mrT.astype(bf16), m7rT_ref[...],
                                      preferred_element_type=f32))  # (Bs, HW)

    # ---- Residual gating: x*sig + x == x*(1+sig), applied with a per-lane
    #      select (no sub-128-lane slice/concat of the activations).
    lane_hw = jax.lax.broadcasted_iota(jnp.int32, (HW, C8), 1)
    gated_parts = []
    for b in range(Bs):
        gcatT = jnp.concatenate([g_rgb_T[b:b + 1], g_srgb_T[b:b + 1]],
                                axis=0).T                         # (HW, 2)
        scale = 1.0 + jnp.where(lane_hw < C4, gcatT[:, 0:1], gcatT[:, 1:2])
        gated_parts.append((y3[b] * scale).astype(bf16))          # (HW, C8)
    gated = jnp.concatenate(gated_parts, axis=0)                  # (Bs*HW, C8)

    # ---- Stage 2: second 1x1 conv + folded BN + ReLU (block-diag).
    z = jnp.dot(gated, w2_ref[...], preferred_element_type=f32) + b2_ref[...]
    z = jnp.maximum(z, 0.0)                                       # (Bs*HW, 2C)

    # Stream sum via a half-width lane roll: lanes [0,C) hold fus, lanes
    # [C,2C) an exact duplicate (dropped later by the zero-padded CA weight).
    zs = z + pltpu.roll(z, shift=C, axis=1)
    zs3 = zs.reshape(Bs, HW, 2 * C)

    # ---- CA head: global max pool -> fc1/ReLU -> fc2/sigmoid.
    gmax = jnp.concatenate(
        [jnp.max(zs3[b], axis=0, keepdims=True) for b in range(Bs)], axis=0)
    h = jnp.maximum(jnp.dot(gmax, ca1_ref[...], preferred_element_type=f32), 0.0)
    out = jax.nn.sigmoid(jnp.dot(h, ca2_ref[...], preferred_element_type=f32))
    o_ref[...] = out[None].astype(o_ref.dtype)                    # (1, Bs, C)


def cf_fused(x_cat, w1, b1, m7sT, m7rT, w2, b2, ca1p, ca2, *,
             B, HW, C, C4, num_chunks=1):
    """x_cat: (B*HW, 2C) bf16, packed [rgb | srgb] channels -> (B, C) f32.

    num_chunks splits the batch over a parallel grid axis (set 2 on v7x to use
    both TensorCores); default 1 = one fused step (best on v5e/v6e).
    """
    assert B % num_chunks == 0
    Bs = B // num_chunks
    kernel = functools.partial(_cf_fused_kernel, Bs=Bs, HW=HW, C=C, C4=C4)
    const2 = lambda s: (0, 0)
    out = pl.pallas_call(
        kernel,
        out_shape=jax.ShapeDtypeStruct((num_chunks, Bs, C), jnp.float32),
        grid=(num_chunks,),
        in_specs=[
            pl.BlockSpec((Bs * HW, 2 * C), lambda s: (s, 0)),
            pl.BlockSpec(w1.shape, const2),
            pl.BlockSpec(b1.shape, const2),
            pl.BlockSpec(m7sT.shape, const2),
            pl.BlockSpec(m7rT.shape, const2),
            pl.BlockSpec(w2.shape, const2),
            pl.BlockSpec(b2.shape, const2),
            pl.BlockSpec(ca1p.shape, const2),
            pl.BlockSpec(ca2.shape, const2),
        ],
        out_specs=pl.BlockSpec((1, Bs, C), lambda s: (s, 0, 0)),
        compiler_params=pltpu.CompilerParams(
            dimension_semantics=("parallel",)),
    )(x_cat, w1, b1, m7sT, m7rT, w2, b2, ca1p, ca2)
    return out.reshape(B, C)


# ----------------------------------------------------------------------------
# Glue: bilinear resize (align_corners=True), weight packing, wiring.
# ----------------------------------------------------------------------------
def resize_bilinear_align_corners(x, out_h, out_w):
    """x: (B, h, w, C) -> (B, out_h, out_w, C); matches F.interpolate(align_corners=True)."""
    B, h, w, C = x.shape
    ys = jnp.linspace(0.0, h - 1.0, out_h) if out_h > 1 else jnp.zeros((out_h,))
    xs = jnp.linspace(0.0, w - 1.0, out_w) if out_w > 1 else jnp.zeros((out_w,))
    y0 = jnp.floor(ys).astype(jnp.int32)
    y1 = jnp.minimum(y0 + 1, h - 1)
    wy = (ys - y0.astype(ys.dtype))[None, :, None, None]
    x0 = jnp.floor(xs).astype(jnp.int32)
    x1 = jnp.minimum(x0 + 1, w - 1)
    wx = (xs - x0.astype(xs.dtype))[None, None, :, None]
    top, bot = x[:, y0, :, :], x[:, y1, :, :]
    v = top * (1.0 - wy) + bot * wy
    left, right = v[:, :, x0, :], v[:, :, x1, :]
    return left * (1.0 - wx) + right * wx


def make_conv7_matrix(w7, H, W):
    """Dense (HW, HW) matrix M with M @ flatten(m) == conv2d(m, w7, padding=3)."""
    idx = jnp.arange(H * W)
    r, c = idx // W, idx % W
    di = r[None, :] - r[:, None] + 3          # rows: output pixel, cols: input
    dj = c[None, :] - c[:, None] + 3
    valid = (di >= 0) & (di < 7) & (dj >= 0) & (dj < 7)
    vals = w7[jnp.clip(di, 0, 6), jnp.clip(dj, 0, 6)]
    return jnp.where(valid, vals, 0.0).astype(jnp.float32)


def block_diag2(a, b):
    top = jnp.concatenate([a, jnp.zeros((a.shape[0], b.shape[1]), a.dtype)], 1)
    bot = jnp.concatenate([jnp.zeros((b.shape[0], a.shape[1]), b.dtype), b], 1)
    return jnp.concatenate([top, bot], 0)


def fold_bn(w, gamma, beta, mean, var, eps=1e-5):
    """Fold eval-mode BN into the (Cin, Cout) 1x1-conv weight; return (Wf, bias)."""
    scale = gamma / jnp.sqrt(var + eps)
    return w * scale[None, :], (beta - mean * scale)[None, :]


def make_params(key, C):
    C4, C16 = C // 4, C // 16
    ks = jax.random.split(key, 16)

    def conv_w(k, cin, cout):
        return 0.1 * jax.random.normal(k, (cin, cout), jnp.float32)

    def bn(k, c):
        k1, k2, k3, k4 = jax.random.split(k, 4)
        gamma = 1.0 + 0.1 * jax.random.normal(k1, (c,), jnp.float32)
        beta = 0.1 * jax.random.normal(k2, (c,), jnp.float32)
        mean = 0.1 * jax.random.normal(k3, (c,), jnp.float32)
        var = 1.0 + 0.1 * jax.random.uniform(k4, (c,), jnp.float32)
        return gamma, beta, mean, var

    p = {}
    p['w_rgb'], p['b_rgb'] = fold_bn(conv_w(ks[0], C, C4), *bn(ks[1], C4))
    p['w_srgb'], p['b_srgb'] = fold_bn(conv_w(ks[2], C, C4), *bn(ks[3], C4))
    p['w_re_rgb'], p['b_re_rgb'] = fold_bn(conv_w(ks[4], C4, C), *bn(ks[5], C))
    p['w_re_srgb'], p['b_re_srgb'] = fold_bn(conv_w(ks[6], C4, C), *bn(ks[7], C))
    p['w7_rgb_sa'] = 0.1 * jax.random.normal(ks[8], (7, 7), jnp.float32)
    p['w7_srgb_sa'] = 0.1 * jax.random.normal(ks[9], (7, 7), jnp.float32)
    p['ca_w1'] = 0.1 * jax.random.normal(ks[10], (C, C16), jnp.float32)
    p['ca_w2'] = 0.1 * jax.random.normal(ks[11], (C16, C), jnp.float32)
    # Note: rgb_ca / srgb_ca exist in __init__ but are unused in CF.forward.
    return p


@jax.jit
def cf_forward(rgb_nchw, srgb_nchw, p):
    B, C, H, W = rgb_nchw.shape
    HW, C4 = H * W, C // 4
    rgb = jnp.transpose(rgb_nchw, (0, 2, 3, 1)).astype(jnp.float32)
    srgb = jnp.transpose(srgb_nchw, (0, 2, 3, 1)).astype(jnp.float32)
    srgb = resize_bilinear_align_corners(srgb, H, W)

    # Pack the two streams along channels, fold batch into rows, feed bf16.
    x_cat = jnp.concatenate(
        [rgb.reshape(B, HW, C), srgb.reshape(B, HW, C)], axis=-1)
    x_cat = x_cat.reshape(B * HW, 2 * C).astype(jnp.bfloat16)

    # Block-diagonal packed weights (bf16 MXU feed; biases stay f32).
    w1 = block_diag2(p['w_rgb'], p['w_srgb']).astype(jnp.bfloat16)
    b1 = jnp.concatenate([p['b_rgb'], p['b_srgb']], axis=1)
    w2 = block_diag2(p['w_re_rgb'], p['w_re_srgb']).astype(jnp.bfloat16)
    b2 = jnp.concatenate([p['b_re_rgb'], p['b_re_srgb']], axis=1)

    # 7x7 SA convs as transposed dense conv matrices (bf16, built under jit).
    m7sT = make_conv7_matrix(p['w7_srgb_sa'], H, W).T.astype(jnp.bfloat16)
    m7rT = make_conv7_matrix(p['w7_rgb_sa'], H, W).T.astype(jnp.bfloat16)

    # CA fc1 weight zero-padded to (2C, C/16) so the duplicated lanes drop out.
    ca1p = jnp.concatenate([p['ca_w1'], jnp.zeros_like(p['ca_w1'])], axis=0)

    out = cf_fused(x_cat, w1, b1, m7sT, m7rT, w2, b2, ca1p, p['ca_w2'],
                   B=B, HW=HW, C=C, C4=C4, num_chunks=1)        # (B, C)
    return out.reshape(B, C, 1, 1)                              # matches PyTorch


# ----------------------------------------------------------------------------
# Plain-JAX f32 reference (independent math) for correctness checking.
# ----------------------------------------------------------------------------
def cf_reference(rgb_nchw, srgb_nchw, p):
    B, C, H, W = rgb_nchw.shape
    rgb = jnp.transpose(rgb_nchw, (0, 2, 3, 1)).astype(jnp.float32)
    srgb = jnp.transpose(srgb_nchw, (0, 2, 3, 1)).astype(jnp.float32)
    srgb = resize_bilinear_align_corners(srgb, H, W)

    def cbr(x, w, b):
        return jnp.maximum(jnp.einsum('bhwc,cd->bhwd', x, w) + b[0], 0.0)

    def sa(x, w7):
        m = jnp.max(x, axis=-1)
        mp = jnp.pad(m, ((0, 0), (3, 3), (3, 3)))
        out = jnp.zeros_like(m)
        for di in range(7):
            for dj in range(7):
                out = out + w7[di, dj] * mp[:, di:di + H, dj:dj + W]
        return jax.nn.sigmoid(out)[..., None]

    rgb_ = cbr(rgb, p['w_rgb'], p['b_rgb'])
    srgb_ = cbr(srgb, p['w_srgb'], p['b_srgb'])
    rgb_sa = rgb_ * sa(srgb_, p['w7_srgb_sa']) + rgb_
    srgb_sa = srgb_ * sa(rgb_, p['w7_rgb_sa']) + srgb_
    rgb_sa = cbr(rgb_sa, p['w_re_rgb'], p['b_re_rgb'])
    srgb_sa = cbr(srgb_sa, p['w_re_srgb'], p['b_re_srgb'])
    fus = rgb_sa + srgb_sa
    gmax = jnp.max(fus, axis=(1, 2))                            # (B, C)
    h = jnp.maximum(gmax @ p['ca_w1'], 0.0)
    out = jax.nn.sigmoid(h @ p['ca_w2'])
    return out.reshape(B, C, 1, 1)


if __name__ == "__main__":
    B, C, H, W = 2, 64, 16, 16        # in_channel = 64 -> C/4 = 16, C/16 = 4
    hs, ws = 8, 8                      # srgb is lower-res; bilinearly upsampled

    key = jax.random.PRNGKey(0)
    k_rgb, k_srgb, k_par = jax.random.split(key, 3)
    rgb = jax.random.normal(k_rgb, (B, C, H, W), jnp.float32)     # NCHW like PyTorch
    srgb = jax.random.normal(k_srgb, (B, C, hs, ws), jnp.float32)
    params = make_params(k_par, C)

    out = cf_forward(rgb, srgb, params)
    out = jax.block_until_ready(out)

    ref = cf_reference(rgb, srgb, params)
    assert out.shape == (B, C, 1, 1)
    assert bool(jnp.all(jnp.isfinite(out)))
    assert bool(jnp.allclose(out, ref, atol=2e-2, rtol=2e-2))

    print("KERNEL_OK")
</pallas_src>

<mosaic_0001>
module attributes {stable_mosaic.version = 11 : i64} {
  func.func @_cf_fused_kernel(%arg0: i32, %arg1: memref<512x128xbf16, #tpu.memory_space<vmem>>, %arg2: memref<128x32xbf16, #tpu.memory_space<vmem>>, %arg3: memref<1x32xf32, #tpu.memory_space<vmem>>, %arg4: memref<256x256xbf16, #tpu.memory_space<vmem>>, %arg5: memref<256x256xbf16, #tpu.memory_space<vmem>>, %arg6: memref<32x128xbf16, #tpu.memory_space<vmem>>, %arg7: memref<1x128xf32, #tpu.memory_space<vmem>>, %arg8: memref<128x4xf32, #tpu.memory_space<vmem>>, %arg9: memref<4x64xf32, #tpu.memory_space<vmem>>, %arg10: memref<1x2x64xf32, #tpu.memory_space<vmem>>) attributes {dimension_semantics = [#tpu.dimension_semantics<parallel>], iteration_bounds = array<i64: 1>, scalar_prefetch = 0 : i64, scratch_operands = 0 : i64, tpu.core_type = #tpu.core_type<tc>, window_params = [{transform_indices = @transform_0, window_bounds = array<i64: 512, 128>}, {pipeline_mode = #tpu.pipeline_mode<synchronous>, transform_indices = @transform_1, window_bounds = array<i64: 128, 32>}, {pipeline_mode = #tpu.pipeline_mode<synchronous>, transform_indices = @transform_2, window_bounds = array<i64: 1, 32>}, {pipeline_mode = #tpu.pipeline_mode<synchronous>, transform_indices = @transform_3, window_bounds = array<i64: 256, 256>}, {pipeline_mode = #tpu.pipeline_mode<synchronous>, transform_indices = @transform_4, window_bounds = array<i64: 256, 256>}, {pipeline_mode = #tpu.pipeline_mode<synchronous>, transform_indices = @transform_5, window_bounds = array<i64: 32, 128>}, {pipeline_mode = #tpu.pipeline_mode<synchronous>, transform_indices = @transform_6, window_bounds = array<i64: 1, 128>}, {pipeline_mode = #tpu.pipeline_mode<synchronous>, transform_indices = @transform_7, window_bounds = array<i64: 128, 4>}, {pipeline_mode = #tpu.pipeline_mode<synchronous>, transform_indices = @transform_8, window_bounds = array<i64: 4, 64>}, {transform_indices = @transform_9, window_bounds = array<i64: 1, 2, 64>}]} {
    %c0 = arith.constant 0 : index
    %c0_0 = arith.constant 0 : index
    %0 = vector.load %arg1[%c0, %c0_0] : memref<512x128xbf16, #tpu.memory_space<vmem>>, vector<512x128xbf16>
    %c0_1 = arith.constant 0 : index
    %c0_2 = arith.constant 0 : index
    %1 = vector.load %arg2[%c0_1, %c0_2] : memref<128x32xbf16, #tpu.memory_space<vmem>>, vector<128x32xbf16>
    %cst = arith.constant dense<0.000000e+00> : vector<512x32xf32>
    %2 = tpu.matmul %0, %1, %cst {dimension_numbers = #tpu.dot_dimension_numbers<[1], [0], [0], [1], [0, 0, 1, 1], [], []>} : vector<512x128xbf16>, vector<128x32xbf16>, vector<512x32xf32> -> vector<512x32xf32>
    %c0_3 = arith.constant 0 : index
    %c0_4 = arith.constant 0 : index
    %3 = vector.load %arg3[%c0_3, %c0_4] : memref<1x32xf32, #tpu.memory_space<vmem>>, vector<1x32xf32>
    %4 = vector.broadcast %3 : vector<1x32xf32> to vector<512x32xf32>
    %5 = arith.addf %2, %4 : vector<512x32xf32>
    %cst_5 = arith.constant 0.000000e+00 : f32
    %6 = vector.broadcast %cst_5 : f32 to vector<512x32xf32>
    %7 = arith.maximumf %5, %6 : vector<512x32xf32>
    %8 = tpu.iota {dimensions = array<i32: 1>} : vector<512x32xi32>
    %c16_i32 = arith.constant 16 : i32
    %9 = vector.broadcast %c16_i32 : i32 to vector<512x32xi32>
    %10 = arith.cmpi slt, %8, %9 : vector<512x32xi32>
    %cst_6 = arith.constant 0.000000e+00 : f32
    %11 = vector.broadcast %cst_6 : f32 to vector<512x32xf32>
    %12 = arith.select %10, %7, %11 : vector<512x32xi1>, vector<512x32xf32>
    %cst_7 = arith.constant dense<0xFF800000> : vector<512xf32>
    %13 = vector.multi_reduction <maximumf>, %12, %cst_7 [1] : vector<512x32xf32> to vector<512xf32>
    %14 = vector.shape_cast %13 : vector<512xf32> to vector<512x1xf32>
    %c16_i32_8 = arith.constant 16 : i32
    %15 = vector.broadcast %c16_i32_8 : i32 to vector<512x32xi32>
    %16 = arith.cmpi slt, %8, %15 : vector<512x32xi32>
    %cst_9 = arith.constant 0.000000e+00 : f32
    %17 = vector.broadcast %cst_9 : f32 to vector<512x32xf32>
    %18 = arith.select %16, %17, %7 : vector<512x32xi1>, vector<512x32xf32>
    %cst_10 = arith.constant dense<0xFF800000> : vector<512xf32>
    %19 = vector.multi_reduction <maximumf>, %18, %cst_10 [1] : vector<512x32xf32> to vector<512xf32>
    %20 = vector.shape_cast %19 : vector<512xf32> to vector<512x1xf32>
    %21 = vector.shape_cast %7 : vector<512x32xf32> to vector<2x256x32xf32>
    %22 = vector.shape_cast %14 : vector<512x1xf32> to vector<2x256x1xf32>
    %23 = vector.shape_cast %20 : vector<512x1xf32> to vector<2x256x1xf32>
    %24 = vector.extract_strided_slice %22 {offsets = [0, 0, 0], sizes = [1, 256, 1], strides = [1, 1, 1]} : vector<2x256x1xf32> to vector<1x256x1xf32>
    %25 = vector.shape_cast %24 : vector<1x256x1xf32> to vector<256x1xf32>
    %26 = vector.extract_strided_slice %23 {offsets = [0, 0, 0], sizes = [1, 256, 1], strides = [1, 1, 1]} : vector<2x256x1xf32> to vector<1x256x1xf32>
    %27 = vector.shape_cast %26 : vector<1x256x1xf32> to vector<256x1xf32>
    %28 = tpu.concatenate %25, %27 in 1 : vector<256x1xf32>, vector<256x1xf32> -> vector<256x2xf32>
    %29 = tpu.transpose %28, [1, 0] : vector<256x2xf32> -> vector<2x256xf32>
    %30 = vector.extract_strided_slice %29 {offsets = [0, 0], sizes = [1, 256], strides = [1, 1]} : vector<2x256xf32> to vector<1x256xf32>
    %31 = vector.extract_strided_slice %29 {offsets = [1, 0], sizes = [1, 256], strides = [1, 1]} : vector<2x256xf32> to vector<1x256xf32>
    %32 = vector.extract_strided_slice %22 {offsets = [1, 0, 0], sizes = [1, 256, 1], strides = [1, 1, 1]} : vector<2x256x1xf32> to vector<1x256x1xf32>
    %33 = vector.shape_cast %32 : vector<1x256x1xf32> to vector<256x1xf32>
    %34 = vector.extract_strided_slice %23 {offsets = [1, 0, 0], sizes = [1, 256, 1], strides = [1, 1, 1]} : vector<2x256x1xf32> to vector<1x256x1xf32>
    %35 = vector.shape_cast %34 : vector<1x256x1xf32> to vector<256x1xf32>
    %36 = tpu.concatenate %33, %35 in 1 : vector<256x1xf32>, vector<256x1xf32> -> vector<256x2xf32>
    %37 = tpu.transpose %36, [1, 0] : vector<256x2xf32> -> vector<2x256xf32>
    %38 = vector.extract_strided_slice %37 {offsets = [0, 0], sizes = [1, 256], strides = [1, 1]} : vector<2x256xf32> to vector<1x256xf32>
    %39 = vector.extract_strided_slice %37 {offsets = [1, 0], sizes = [1, 256], strides = [1, 1]} : vector<2x256xf32> to vector<1x256xf32>
    %40 = tpu.concatenate %30, %38 in 0 : vector<1x256xf32>, vector<1x256xf32> -> vector<2x256xf32>
    %41 = tpu.concatenate %31, %39 in 0 : vector<1x256xf32>, vector<1x256xf32> -> vector<2x256xf32>
    %42 = arith.truncf %41 : vector<2x256xf32> to vector<2x256xbf16>
    %c0_11 = arith.constant 0 : index
    %c0_12 = arith.constant 0 : index
    %43 = vector.load %arg4[%c0_11, %c0_12] : memref<256x256xbf16, #tpu.memory_space<vmem>>, vector<256x256xbf16>
    %cst_13 = arith.constant dense<0.000000e+00> : vector<2x256xf32>
    %44 = tpu.matmul %42, %43, %cst_13 {dimension_numbers = #tpu.dot_dimension_numbers<[1], [0], [0], [1], [0, 0, 1, 1], [], []>} : vector<2x256xbf16>, vector<256x256xbf16>, vector<2x256xf32> -> vector<2x256xf32>
    %45 = arith.negf %44 : vector<2x256xf32>
    %46 = math.exp %45 : vector<2x256xf32>
    %cst_14 = arith.constant 1.000000e+00 : f32
    %47 = vector.broadcast %cst_14 : f32 to vector<2x256xf32>
    %48 = arith.addf %47, %46 : vector<2x256xf32>
    %49 = arith.divf %47, %48 : vector<2x256xf32>
    %50 = arith.truncf %40 : vector<2x256xf32> to vector<2x256xbf16>
    %c0_15 = arith.constant 0 : index
    %c0_16 = arith.constant 0 : index
    %51 = vector.load %arg5[%c0_15, %c0_16] : memref<256x256xbf16, #tpu.memory_space<vmem>>, vector<256x256xbf16>
    %cst_17 = arith.constant dense<0.000000e+00> : vector<2x256xf32>
    %52 = tpu.matmul %50, %51, %cst_17 {dimension_numbers = #tpu.dot_dimension_numbers<[1], [0], [0], [1], [0, 0, 1, 1], [], []>} : vector<2x256xbf16>, vector<256x256xbf16>, vector<2x256xf32> -> vector<2x256xf32>
    %53 = arith.negf %52 : vector<2x256xf32>
    %54 = math.exp %53 : vector<2x256xf32>
    %cst_18 = arith.constant 1.000000e+00 : f32
    %55 = vector.broadcast %cst_18 : f32 to vector<2x256xf32>
    %56 = arith.addf %55, %54 : vector<2x256xf32>
    %57 = arith.divf %55, %56 : vector<2x256xf32>
    %58 = tpu.iota {dimensions = array<i32: 1>} : vector<256x32xi32>
    %59 = vector.extract_strided_slice %49 {offsets = [0, 0], sizes = [1, 256], strides = [1, 1]} : vector<2x256xf32> to vector<1x256xf32>
    %60 = vector.extract_strided_slice %57 {offsets = [0, 0], sizes = [1, 256], strides = [1, 1]} : vector<2x256xf32> to vector<1x256xf32>
    %61 = tpu.concatenate %59, %60 in 0 : vector<1x256xf32>, vector<1x256xf32> -> vector<2x256xf32>
    %62 = tpu.transpose %61, [1, 0] : vector<2x256xf32> -> vector<256x2xf32>
    %c16_i32_19 = arith.constant 16 : i32
    %63 = vector.broadcast %c16_i32_19 : i32 to vector<256x32xi32>
    %64 = arith.cmpi slt, %58, %63 : vector<256x32xi32>
    %65 = vector.extract_strided_slice %62 {offsets = [0, 0], sizes = [256, 1], strides = [1, 1]} : vector<256x2xf32> to vector<256x1xf32>
    %66 = vector.extract_strided_slice %62 {offsets = [0, 1], sizes = [256, 1], strides = [1, 1]} : vector<256x2xf32> to vector<256x1xf32>
    %67 = vector.shape_cast %65 : vector<256x1xf32> to vector<256x1xf32>
    %68 = vector.broadcast %67 : vector<256x1xf32> to vector<256x32xf32>
    %69 = vector.shape_cast %66 : vector<256x1xf32> to vector<256x1xf32>
    %70 = vector.broadcast %69 : vector<256x1xf32> to vector<256x32xf32>
    %71 = arith.select %64, %68, %70 : vector<256x32xi1>, vector<256x32xf32>
    %cst_20 = arith.constant 1.000000e+00 : f32
    %72 = vector.broadcast %cst_20 : f32 to vector<256x32xf32>
    %73 = arith.addf %72, %71 : vector<256x32xf32>
    %74 = vector.extract_strided_slice %21 {offsets = [0, 0, 0], sizes = [1, 256, 32], strides = [1, 1, 1]} : vector<2x256x32xf32> to vector<1x256x32xf32>
    %75 = vector.shape_cast %74 : vector<1x256x32xf32> to vector<256x32xf32>
    %76 = arith.mulf %75, %73 : vector<256x32xf32>
    %77 = arith.truncf %76 : vector<256x32xf32> to vector<256x32xbf16>
    %78 = vector.extract_strided_slice %49 {offsets = [1, 0], sizes = [1, 256], strides = [1, 1]} : vector<2x256xf32> to vector<1x256xf32>
    %79 = vector.extract_strided_slice %57 {offsets = [1, 0], sizes = [1, 256], strides = [1, 1]} : vector<2x256xf32> to vector<1x256xf32>
    %80 = tpu.concatenate %78, %79 in 0 : vector<1x256xf32>, vector<1x256xf32> -> vector<2x256xf32>
    %81 = tpu.transpose %80, [1, 0] : vector<2x256xf32> -> vector<256x2xf32>
    %c16_i32_21 = arith.constant 16 : i32
    %82 = vector.broadcast %c16_i32_21 : i32 to vector<256x32xi32>
    %83 = arith.cmpi slt, %58, %82 : vector<256x32xi32>
    %84 = vector.extract_strided_slice %81 {offsets = [0, 0], sizes = [256, 1], strides = [1, 1]} : vector<256x2xf32> to vector<256x1xf32>
    %85 = vector.extract_strided_slice %81 {offsets = [0, 1], sizes = [256, 1], strides = [1, 1]} : vector<256x2xf32> to vector<256x1xf32>
    %86 = vector.shape_cast %84 : vector<256x1xf32> to vector<256x1xf32>
    %87 = vector.broadcast %86 : vector<256x1xf32> to vector<256x32xf32>
    %88 = vector.shape_cast %85 : vector<256x1xf32> to vector<256x1xf32>
    %89 = vector.broadcast %88 : vector<256x1xf32> to vector<256x32xf32>
    %90 = arith.select %83, %87, %89 : vector<256x32xi1>, vector<256x32xf32>
    %cst_22 = arith.constant 1.000000e+00 : f32
    %91 = vector.broadcast %cst_22 : f32 to vector<256x32xf32>
    %92 = arith.addf %91, %90 : vector<256x32xf32>
    %93 = vector.extract_strided_slice %21 {offsets = [1, 0, 0], sizes = [1, 256, 32], strides = [1, 1, 1]} : vector<2x256x32xf32> to vector<1x256x32xf32>
    %94 = vector.shape_cast %93 : vector<1x256x32xf32> to vector<256x32xf32>
    %95 = arith.mulf %94, %92 : vector<256x32xf32>
    %96 = arith.truncf %95 : vector<256x32xf32> to vector<256x32xbf16>
    %97 = tpu.concatenate %77, %96 in 0 : vector<256x32xbf16>, vector<256x32xbf16> -> vector<512x32xbf16>
    %c0_23 = arith.constant 0 : index
    %c0_24 = arith.constant 0 : index
    %98 = vector.load %arg6[%c0_23, %c0_24] : memref<32x128xbf16, #tpu.memory_space<vmem>>, vector<32x128xbf16>
    %cst_25 = arith.constant dense<0.000000e+00> : vector<512x128xf32>
    %99 = tpu.matmul %97, %98, %cst_25 {dimension_numbers = #tpu.dot_dimension_numbers<[1], [0], [0], [1], [0, 0, 1, 1], [], []>} : vector<512x32xbf16>, vector<32x128xbf16>, vector<512x128xf32> -> vector<512x128xf32>
    %c0_26 = arith.constant 0 : index
    %c0_27 = arith.constant 0 : index
    %100 = vector.load %arg7[%c0_26, %c0_27] : memref<1x128xf32, #tpu.memory_space<vmem>>, vector<1x128xf32>
    %101 = vector.broadcast %100 : vector<1x128xf32> to vector<512x128xf32>
    %102 = arith.addf %99, %101 : vector<512x128xf32>
    %cst_28 = arith.constant 0.000000e+00 : f32
    %103 = vector.broadcast %cst_28 : f32 to vector<512x128xf32>
    %104 = arith.maximumf %102, %103 : vector<512x128xf32>
    %c64_i32 = arith.constant 64 : i32
    %105 = tpu.dynamic_rotate %104 by %c64_i32 dim 1 : vector<512x128xf32>, i32 -> vector<512x128xf32>
    %106 = arith.addf %104, %105 : vector<512x128xf32>
    %107 = vector.shape_cast %106 : vector<512x128xf32> to vector<2x256x128xf32>
    %108 = vector.extract_strided_slice %107 {offsets = [0, 0, 0], sizes = [1, 256, 128], strides = [1, 1, 1]} : vector<2x256x128xf32> to vector<1x256x128xf32>
    %109 = vector.shape_cast %108 : vector<1x256x128xf32> to vector<256x128xf32>
    %cst_29 = arith.constant dense<0xFF800000> : vector<128xf32>
    %110 = vector.multi_reduction <maximumf>, %109, %cst_29 [0] : vector<256x128xf32> to vector<128xf32>
    %111 = vector.shape_cast %110 : vector<128xf32> to vector<1x128xf32>
    %112 = vector.extract_strided_slice %107 {offsets = [1, 0, 0], sizes = [1, 256, 128], strides = [1, 1, 1]} : vector<2x256x128xf32> to vector<1x256x128xf32>
    %113 = vector.shape_cast %112 : vector<1x256x128xf32> to vector<256x128xf32>
    %cst_30 = arith.constant dense<0xFF800000> : vector<128xf32>
    %114 = vector.multi_reduction <maximumf>, %113, %cst_30 [0] : vector<256x128xf32> to vector<128xf32>
    %115 = vector.shape_cast %114 : vector<128xf32> to vector<1x128xf32>
    %116 = tpu.concatenate %111, %115 in 0 : vector<1x128xf32>, vector<1x128xf32> -> vector<2x128xf32>
    %c0_31 = arith.constant 0 : index
    %c0_32 = arith.constant 0 : index
    %117 = vector.load %arg8[%c0_31, %c0_32] : memref<128x4xf32, #tpu.memory_space<vmem>>, vector<128x4xf32>
    %cst_33 = arith.constant dense<0.000000e+00> : vector<2x4xf32>
    %118 = tpu.matmul %116, %117, %cst_33 {dimension_numbers = #tpu.dot_dimension_numbers<[1], [0], [0], [1], [0, 0, 1, 1], [], []>} : vector<2x128xf32>, vector<128x4xf32>, vector<2x4xf32> -> vector<2x4xf32>
    %cst_34 = arith.constant 0.000000e+00 : f32
    %119 = vector.broadcast %cst_34 : f32 to vector<2x4xf32>
    %120 = arith.maximumf %118, %119 : vector<2x4xf32>
    %c0_35 = arith.constant 0 : index
    %c0_36 = arith.constant 0 : index
    %121 = vector.load %arg9[%c0_35, %c0_36] : memref<4x64xf32, #tpu.memory_space<vmem>>, vector<4x64xf32>
    %cst_37 = arith.constant dense<0.000000e+00> : vector<2x64xf32>
    %122 = tpu.matmul %120, %121, %cst_37 {dimension_numbers = #tpu.dot_dimension_numbers<[1], [0], [0], [1], [0, 0, 1, 1], [], []>} : vector<2x4xf32>, vector<4x64xf32>, vector<2x64xf32> -> vector<2x64xf32>
    %123 = arith.negf %122 : vector<2x64xf32>
    %124 = math.exp %123 : vector<2x64xf32>
    %cst_38 = arith.constant 1.000000e+00 : f32
    %125 = vector.broadcast %cst_38 : f32 to vector<2x64xf32>
    %126 = arith.addf %125, %124 : vector<2x64xf32>
    %127 = arith.divf %125, %126 : vector<2x64xf32>
    %128 = vector.shape_cast %127 : vector<2x64xf32> to vector<1x2x64xf32>
    %c0_39 = arith.constant 0 : index
    %c0_40 = arith.constant 0 : index
    %c0_41 = arith.constant 0 : index
    %129 = vector.load %arg10[%c0_39, %c0_40, %c0_41] : memref<1x2x64xf32, #tpu.memory_space<vmem>>, vector<1x2x64xf32>
    tpu.vector_store %arg10[%c0_39, %c0_40, %c0_41], %128 {strides = array<i32>} : memref<1x2x64xf32, #tpu.memory_space<vmem>>, vector<1x2x64xf32>,
    return
  }
  func.func @transform_0(%arg0: i32) -> (i32, i32) {
    %c0_i32 = arith.constant 0 : i32
    %c0_i32_0 = arith.constant 0 : i32
    return %arg0, %c0_i32 : i32, i32
  }
  func.func @transform_1(%arg0: i32) -> (i32, i32) {
    %c0_i32 = arith.constant 0 : i32
    %c0_i32_0 = arith.constant 0 : i32
    %c0_i32_1 = arith.constant 0 : i32
    return %c0_i32, %c0_i32_0 : i32, i32
  }
  func.func @transform_2(%arg0: i32) -> (i32, i32) {
    %c0_i32 = arith.constant 0 : i32
    %c0_i32_0 = arith.constant 0 : i32
    %c0_i32_1 = arith.constant 0 : i32
    return %c0_i32, %c0_i32_0 : i32, i32
  }
  func.func @transform_3(%arg0: i32) -> (i32, i32) {
    %c0_i32 = arith.constant 0 : i32
    %c0_i32_0 = arith.constant 0 : i32
    %c0_i32_1 = arith.constant 0 : i32
    return %c0_i32, %c0_i32_0 : i32, i32
  }
  func.func @transform_4(%arg0: i32) -> (i32, i32) {
    %c0_i32 = arith.constant 0 : i32
    %c0_i32_0 = arith.constant 0 : i32
    %c0_i32_1 = arith.constant 0 : i32
    return %c0_i32, %c0_i32_0 : i32, i32
  }
  func.func @transform_5(%arg0: i32) -> (i32, i32) {
    %c0_i32 = arith.constant 0 : i32
    %c0_i32_0 = arith.constant 0 : i32
    %c0_i32_1 = arith.constant 0 : i32
    return %c0_i32, %c0_i32_0 : i32, i32
  }
  func.func @transform_6(%arg0: i32) -> (i32, i32) {
    %c0_i32 = arith.constant 0 : i32
    %c0_i32_0 = arith.constant 0 : i32
    %c0_i32_1 = arith.constant 0 : i32
    return %c0_i32, %c0_i32_0 : i32, i32
  }
  func.func @transform_7(%arg0: i32) -> (i32, i32) {
    %c0_i32 = arith.constant 0 : i32
    %c0_i32_0 = arith.constant 0 : i32
    %c0_i32_1 = arith.constant 0 : i32
    return %c0_i32, %c0_i32_0 : i32, i32
  }
  func.func @transform_8(%arg0: i32) -> (i32, i32) {
    %c0_i32 = arith.constant 0 : i32
    %c0_i32_0 = arith.constant 0 : i32
    %c0_i32_1 = arith.constant 0 : i32
    return %c0_i32, %c0_i32_0 : i32, i32
  }
  func.func @transform_9(%arg0: i32) -> (i32, i32, i32) {
    %c0_i32 = arith.constant 0 : i32
    %c0_i32_0 = arith.constant 0 : i32
    %c0_i32_1 = arith.constant 0 : i32
    return %arg0, %c0_i32, %c0_i32_0 : i32, i32, i32
  }
}

</mosaic_0001>

<llo_original>
// kernel: cf_forward.1
$region0: #{cf_forward.1}
  #allocation0 [shape = 'u32[]', space=smem, size = 0x4, offset = 0x4, fixed_abs, tag = 'smem constant byte address 0x4 - core index']
  #allocation1 [shape = 'u32[144,128]{1,0:T(1,128)}', space=vmem, size = 0x12000, scoped, tag = 'internal scratch']
  %s0 = inlined_call_operand.vmem [shape: bf16[512,128], index: 0, kind: input, shape index: {}]
  %s1 = inlined_call_operand.vmem [shape: bf16[128,32], index: 1, kind: input, shape index: {}]
  %s2 = inlined_call_operand.vmem [shape: f32[1,32], index: 2, kind: input, shape index: {}]
  %s3 = inlined_call_operand.vmem [shape: bf16[256,256], index: 3, kind: input, shape index: {}]
  %s4 = inlined_call_operand.vmem [shape: bf16[256,256], index: 4, kind: input, shape index: {}]
  %s5 = inlined_call_operand.vmem [shape: bf16[32,128], index: 5, kind: input, shape index: {}]
  %s6 = inlined_call_operand.vmem [shape: f32[1,128], index: 6, kind: input, shape index: {}]
  %s7 = inlined_call_operand.vmem [shape: f32[128,4], index: 7, kind: input, shape index: {}]
  %s8 = inlined_call_operand.vmem [shape: f32[4,64], index: 8, kind: input, shape index: {}]
  %s9 = inlined_call_operand.hbm [shape: f32[1,2,64], index: 9, kind: output, shape index: {}]
  %s10 = sld [smem:[#allocation0]]
  $region46: #{cf_forward.1} parent=0
    _
  %s12 = ssub.s32 1, %s10
  %s13 = scalar_select 0, %s12, %s10
  $region1: #{cf_forward.1} parent=0
    #allocation2 [shape = 'u8[1024]{0}', space=vmem, size = 0x400, scoped, tag = 'output window, operand 0, single buffered']
    #allocation3 [shape = 's32[1]{0}', space=sflag, size = 0x4, scoped, tag = 'scoped memory for cf_forward.1']
    %14 = vsyncpa [#allocation3], 0
    // Predicated region
    $region2: #{cf_forward.1} parent=1 // pred_check
      _
    $region3: #{cf_forward.1} parent=1 // pred_check_branch
      %16 = sbr.rel (0) target = $region5
    $region4: #{cf_forward.1} parent=1 // pred_region
      _
    $region5: #{cf_forward.1} parent=1 // pred_fallthru
      _
    // Predicated region
    $region6: #{cf_forward.1} parent=1 // pred_check
      _
    $region7: #{cf_forward.1} parent=1 // pred_check_branch
      %18 = sbr.rel (0) target = $region9
    $region8: #{cf_forward.1} parent=1 // pred_region
      _
    $region9: #{cf_forward.1} parent=1 // pred_fallthru
      _
    // Predicated region
    $region10: #{cf_forward.1} parent=1 // pred_check
      _
    $region11: #{cf_forward.1} parent=1 // pred_check_branch
      %20 = sbr.rel (0) target = $region13
    $region12: #{cf_forward.1} parent=1 // pred_region
      _
    $region13: #{cf_forward.1} parent=1 // pred_fallthru
      _
    // Predicated region
    $region14: #{cf_forward.1} parent=1 // pred_check
      _
    $region15: #{cf_forward.1} parent=1 // pred_check_branch
      %22 = sbr.rel (0) target = $region17
    $region16: #{cf_forward.1} parent=1 // pred_region
      _
    $region17: #{cf_forward.1} parent=1 // pred_fallthru
      _
    // Predicated region
    $region18: #{cf_forward.1} parent=1 // pred_check
      _
    $region19: #{cf_forward.1} parent=1 // pred_check_branch
      %24 = sbr.rel (0) target = $region21
    $region20: #{cf_forward.1} parent=1 // pred_region
      _
    $region21: #{cf_forward.1} parent=1 // pred_fallthru
      _
    // Predicated region
    $region22: #{cf_forward.1} parent=1 // pred_check
      _
    $region23: #{cf_forward.1} parent=1 // pred_check_branch
      %26 = sbr.rel (0) target = $region25
    $region24: #{cf_forward.1} parent=1 // pred_region
      _
    $region25: #{cf_forward.1} parent=1 // pred_fallthru
      _
    // Predicated region
    $region26: #{cf_forward.1} parent=1 // pred_check
      _
    $region27: #{cf_forward.1} parent=1 // pred_check_branch
      %28 = sbr.rel (0) target = $region29
    $region28: #{cf_forward.1} parent=1 // pred_region
      _
    $region29: #{cf_forward.1} parent=1 // pred_fallthru
      _
    // Predicated region
    $region30: #{cf_forward.1} parent=1 // pred_check
      _
    $region31: #{cf_forward.1} parent=1 // pred_check_branch
      %30 = sbr.rel (0) target = $region33
    $region32: #{cf_forward.1} parent=1 // pred_region
      _
    $region33: #{cf_forward.1} parent=1 // pred_fallthru
      _
    // Predicated region
    $region34: #{cf_forward.1} parent=1 // pred_check
      _
    $region35: #{cf_forward.1} parent=1 // pred_check_branch
      %32 = sbr.rel (0) target = $region37
    $region36: #{cf_forward.1} parent=1 // pred_region
      _
    $region37: #{cf_forward.1} parent=1 // pred_fallthru
      _
    %v34 = vld [vmem:[%s0] sm:$0xf]
    %v35 = vld [vmem:[%s0 + $0x4] sm:$0xf]
    %v36 = vld [vmem:[%s0 + $0x8] sm:$0xf]
    %v37 = vld [vmem:[%s0 + $0xc] sm:$0xf]
    %v38 = vld [vmem:[%s0 + $0x10] sm:$0xf]
    %v39 = vld [vmem:[%s0 + $0x14] sm:$0xf]
    %v40 = vld [vmem:[%s0 + $0x18] sm:$0xf]
    %v41 = vld [vmem:[%s0 + $0x1c] sm:$0xf]
    %v42 = vld [vmem:[%s0 + $0x20] sm:$0xf]
    %v43 = vld [vmem:[%s0 + $0x24] sm:$0xf]
    %v44 = vld [vmem:[%s0 + $0x28] sm:$0xf]
    %v45 = vld [vmem:[%s0 + $0x2c] sm:$0xf]
    %v46 = vld [vmem:[%s0 + $0x30] sm:$0xf]
    %v47 = vld [vmem:[%s0 + $0x34] sm:$0xf]
    %v48 = vld [vmem:[%s0 + $0x38] sm:$0xf]
    %v49 = vld [vmem:[%s0 + $0x3c] sm:$0xf]
    %v50 = vld [vmem:[%s0 + $0x40] sm:$0xf]
    %v51 = vld [vmem:[%s0 + $0x44] sm:$0xf]
    %v52 = vld [vmem:[%s0 + $0x48] sm:$0xf]
    %v53 = vld [vmem:[%s0 + $0x4c] sm:$0xf]
    %v54 = vld [vmem:[%s0 + $0x50] sm:$0xf]
    %v55 = vld [vmem:[%s0 + $0x54] sm:$0xf]
    %v56 = vld [vmem:[%s0 + $0x58] sm:$0xf]
    %v57 = vld [vmem:[%s0 + $0x5c] sm:$0xf]
    %v58 = vld [vmem:[%s0 + $0x60] sm:$0xf]
    %v59 = vld [vmem:[%s0 + $0x64] sm:$0xf]
    %v60 = vld [vmem:[%s0 + $0x68] sm:$0xf]
    %v61 = vld [vmem:[%s0 + $0x6c] sm:$0xf]
    %v62 = vld [vmem:[%s0 + $0x70] sm:$0xf]
    %v63 = vld [vmem:[%s0 + $0x74] sm:$0xf]
    %v64 = vld [vmem:[%s0 + $0x78] sm:$0xf]
    %v65 = vld [vmem:[%s0 + $0x7c] sm:$0xf]
    %v66 = vld [vmem:[%s0 + $0x80] sm:$0xf]
    %v67 = vld [vmem:[%s0 + $0x84] sm:$0xf]
    %v68 = vld [vmem:[%s0 + $0x88] sm:$0xf]
    %v69 = vld [vmem:[%s0 + $0x8c] sm:$0xf]
    %v70 = vld [vmem:[%s0 + $0x90] sm:$0xf]
    %v71 = vld [vmem:[%s0 + $0x94] sm:$0xf]
    %v72 = vld [vmem:[%s0 + $0x98] sm:$0xf]
    %v73 = vld [vmem:[%s0 + $0x9c] sm:$0xf]
    %v74 = vld [vmem:[%s0 + $0xa0] sm:$0xf]
    %v75 = vld [vmem:[%s0 + $0xa4] sm:$0xf]
    %v76 = vld [vmem:[%s0 + $0xa8] sm:$0xf]
    %v77 = vld [vmem:[%s0 + $0xac] sm:$0xf]
    %v78 = vld [vmem:[%s0 + $0xb0] sm:$0xf]
    %v79 = vld [vmem:[%s0 + $0xb4] sm:$0xf]
    %v80 = vld [vmem:[%s0 + $0xb8] sm:$0xf]
    %v81 = vld [vmem:[%s0 + $0xbc] sm:$0xf]
    %v82 = vld [vmem:[%s0 + $0xc0] sm:$0xf]
    %v83 = vld [vmem:[%s0 + $0xc4] sm:$0xf]
    %v84 = vld [vmem:[%s0 + $0xc8] sm:$0xf]
    %v85 = vld [vmem:[%s0 + $0xcc] sm:$0xf]
    %v86 = vld [vmem:[%s0 + $0xd0] sm:$0xf]
    %v87 = vld [vmem:[%s0 + $0xd4] sm:$0xf]
    %v88 = vld [vmem:[%s0 + $0xd8] sm:$0xf]
    %v89 = vld [vmem:[%s0 + $0xdc] sm:$0xf]
    %v90 = vld [vmem:[%s0 + $0xe0] sm:$0xf]
    %v91 = vld [vmem:[%s0 + $0xe4] sm:$0xf]
    %v92 = vld [vmem:[%s0 + $0xe8] sm:$0xf]
    %v93 = vld [vmem:[%s0 + $0xec] sm:$0xf]
    %v94 = vld [vmem:[%s0 + $0xf0] sm:$0xf]
    %v95 = vld [vmem:[%s0 + $0xf4] sm:$0xf]
    %v96 = vld [vmem:[%s0 + $0xf8] sm:$0xf]
    %v97 = vld [vmem:[%s0 + $0xfc] sm:$0xf]
    %v98 = vld [vmem:[%s1] sm:$0xf]
    %v99 = vld [vmem:[%s1 + $0x4] sm:$0xf]
    %v100 = vld [vmem:[%s1 + $0x8] sm:$0xf]
    %v101 = vld [vmem:[%s1 + $0xc] sm:$0xf]
    %v102 = vld [vmem:[%s1 + $0x10] sm:$0xf]
    %v103 = vld [vmem:[%s1 + $0x14] sm:$0xf]
    %v104 = vld [vmem:[%s1 + $0x18] sm:$0xf]
    %v105 = vld [vmem:[%s1 + $0x1c] sm:$0xf]
    %v106 = vld [vmem:[%s1 + $0x20] sm:$0xf]
    %v107 = vld [vmem:[%s1 + $0x24] sm:$0xf]
    %v108 = vld [vmem:[%s1 + $0x28] sm:$0xf]
    %v109 = vld [vmem:[%s1 + $0x2c] sm:$0xf]
    %v110 = vld [vmem:[%s1 + $0x30] sm:$0xf]
    %v111 = vld [vmem:[%s1 + $0x34] sm:$0xf]
    %v112 = vld [vmem:[%s1 + $0x38] sm:$0xf]
    %v113 = vld [vmem:[%s1 + $0x3c] sm:$0xf]
    %v114 = vld [vmem:[%s2] sm:$0x1]
    %v116 = vlaneseq
    %v117 = vshrl.u32 %v116, 7
    %v118 = vsub.s32 0, %v117
    %v119 = vrot.slane %v114, %v118
    %v185 = vunpack.c.l.b16 %v34
    %v186 = vunpack.c.l.b16 %v35
    %v187 = vunpack.c.l.b16 %v36
    %v188 = vunpack.c.l.b16 %v37
    %v189 = vunpack.c.l.b16 %v38
    %v190 = vunpack.c.l.b16 %v39
    %v191 = vunpack.c.l.b16 %v40
    %v192 = vunpack.c.l.b16 %v41
    %v193 = vunpack.c.l.b16 %v42
    %v194 = vunpack.c.l.b16 %v43
    %v195 = vunpack.c.l.b16 %v44
    %v196 = vunpack.c.l.b16 %v45
    %v197 = vunpack.c.l.b16 %v46
    %v198 = vunpack.c.l.b16 %v47
    %v199 = vunpack.c.l.b16 %v48
    %v200 = vunpack.c.l.b16 %v49
    %v201 = vunpack.c.l.b16 %v50
    %v202 = vunpack.c.l.b16 %v51
    %v203 = vunpack.c.l.b16 %v52
    %v204 = vunpack.c.l.b16 %v53
    %v205 = vunpack.c.l.b16 %v54
    %v206 = vunpack.c.l.b16 %v55
    %v207 = vunpack.c.l.b16 %v56
    %v208 = vunpack.c.l.b16 %v57
    %v209 = vunpack.c.l.b16 %v58
    %v210 = vunpack.c.l.b16 %v59
    %v211 = vunpack.c.l.b16 %v60
    %v212 = vunpack.c.l.b16 %v61
    %v213 = vunpack.c.l.b16 %v62
    %v214 = vunpack.c.l.b16 %v63
    %v215 = vunpack.c.l.b16 %v64
    %v216 = vunpack.c.l.b16 %v65
    %v217 = vunpack.c.l.b16 %v66
    %v218 = vunpack.c.l.b16 %v67
    %v219 = vunpack.c.l.b16 %v68
    %v220 = vunpack.c.l.b16 %v69
    %v221 = vunpack.c.l.b16 %v70
    %v222 = vunpack.c.l.b16 %v71
    %v223 = vunpack.c.l.b16 %v72
    %v224 = vunpack.c.l.b16 %v73
    %v225 = vunpack.c.l.b16 %v74
    %v226 = vunpack.c.l.b16 %v75
    %v227 = vunpack.c.l.b16 %v76
    %v228 = vunpack.c.l.b16 %v77
    %v229 = vunpack.c.l.b16 %v78
    %v230 = vunpack.c.l.b16 %v79
    %v231 = vunpack.c.l.b16 %v80
    %v232 = vunpack.c.l.b16 %v81
    %v233 = vunpack.c.l.b16 %v82
    %v234 = vunpack.c.l.b16 %v83
    %v235 = vunpack.c.l.b16 %v84
    %v236 = vunpack.c.l.b16 %v85
    %v237 = vunpack.c.l.b16 %v86
    %v238 = vunpack.c.l.b16 %v87
    %v239 = vunpack.c.l.b16 %v88
    %v240 = vunpack.c.l.b16 %v89
    %v241 = vunpack.c.l.b16 %v90
    %v242 = vunpack.c.l.b16 %v91
    %v243 = vunpack.c.l.b16 %v92
    %v244 = vunpack.c.l.b16 %v93
    %v245 = vunpack.c.l.b16 %v94
    %v246 = vunpack.c.l.b16 %v95
    %v247 = vunpack.c.l.b16 %v96
    %v248 = vunpack.c.l.b16 %v97
    %v249 = vpack.c.b16 %v186, %v185
    %v250 = vpack.c.b16 %v188, %v187
    %v251 = vpack.c.b16 %v190, %v189
    %v252 = vpack.c.b16 %v192, %v191
    %v253 = vpack.c.b16 %v194, %v193
    %v254 = vpack.c.b16 %v196, %v195
    %v255 = vpack.c.b16 %v198, %v197
    %v256 = vpack.c.b16 %v200, %v199
    %v257 = vpack.c.b16 %v202, %v201
    %v258 = vpack.c.b16 %v204, %v203
    %v259 = vpack.c.b16 %v206, %v205
    %v260 = vpack.c.b16 %v208, %v207
    %v261 = vpack.c.b16 %v210, %v209
    %v262 = vpack.c.b16 %v212, %v211
    %v263 = vpack.c.b16 %v214, %v213
    %v264 = vpack.c.b16 %v216, %v215
    %v265 = vpack.c.b16 %v218, %v217
    %v266 = vpack.c.b16 %v220, %v219
    %v267 = vpack.c.b16 %v222, %v221
    %v268 = vpack.c.b16 %v224, %v223
    %v269 = vpack.c.b16 %v226, %v225
    %v270 = vpack.c.b16 %v228, %v227
    %v271 = vpack.c.b16 %v230, %v229
    %v272 = vpack.c.b16 %v232, %v231
    %v273 = vpack.c.b16 %v234, %v233
    %v274 = vpack.c.b16 %v236, %v235
    %v275 = vpack.c.b16 %v238, %v237
    %v276 = vpack.c.b16 %v240, %v239
    %v277 = vpack.c.b16 %v242, %v241
    %v278 = vpack.c.b16 %v244, %v243
    %v279 = vpack.c.b16 %v246, %v245
    %v280 = vpack.c.b16 %v248, %v247
    %v329 = vunpack.c.l.b16 %v98
    %v330 = vunpack.c.l.b16 %v99
    %v331 = vunpack.c.l.b16 %v100
    %v332 = vunpack.c.l.b16 %v101
    %v333 = vunpack.c.l.b16 %v102
    %v334 = vunpack.c.l.b16 %v103
    %v335 = vunpack.c.l.b16 %v104
    %v336 = vunpack.c.l.b16 %v105
    %v337 = vunpack.c.l.b16 %v106
    %v338 = vunpack.c.l.b16 %v107
    %v339 = vunpack.c.l.b16 %v108
    %v340 = vunpack.c.l.b16 %v109
    %v341 = vunpack.c.l.b16 %v110
    %v342 = vunpack.c.l.b16 %v111
    %v343 = vunpack.c.l.b16 %v112
    %v344 = vunpack.c.l.b16 %v113
    %v345 = vpack.c.b16 %v330, %v329
    %v346 = vpack.c.b16 %v332, %v331
    %v347 = vpack.c.b16 %v334, %v333
    %v348 = vpack.c.b16 %v336, %v335
    %v349 = vpack.c.b16 %v338, %v337
    %v350 = vpack.c.b16 %v340, %v339
    %v351 = vpack.c.b16 %v342, %v341
    %v352 = vpack.c.b16 %v344, %v343
    %361 = vmatprep.subr.bf16.mxu0 0
    %362 = vmatpush1.bf16.msra.mxu0 %v345
    %363 = vmatprep.subr.bf16.mxu0 0
    %364 = vmatpush1.bf16.msra.mxu0 %v346
    %365 = vmatprep.subr.bf16.mxu0 0
    %366 = vmatpush1.bf16.msra.mxu0 %v347
    %367 = vmatprep.subr.bf16.mxu0 0
    %368 = vmatpush1.bf16.msra.mxu0 %v348
    %369 = vmatprep.subr.bf16.mxu0 0
    %370 = vmatpush1.bf16.msra.mxu0 %v349
    %371 = vmatprep.subr.bf16.mxu0 0
    %372 = vmatpush1.bf16.msra.mxu0 %v350
    %373 = vmatprep.subr.bf16.mxu0 0
    %374 = vmatpush1.bf16.msra.mxu0 %v351
    %375 = vmatprep.subr.bf16.mxu0 0
    %376 = vmatpush1.bf16.msra.mxu0 %v352
    %377 = vmatprep.subr.bf16.mxu0 0
    %378 = vmatpush1.bf16.msra.mxu0 0
    %379 = vmatprep.subr.bf16.mxu0 0
    %380 = vmatpush1.bf16.msra.mxu0 0
    %381 = vmatprep.subr.bf16.mxu0 0
    %382 = vmatpush1.bf16.msra.mxu0 0
    %383 = vmatprep.subr.bf16.mxu0 0
    %384 = vmatpush1.bf16.msra.mxu0 0
    %385 = vmatprep.subr.bf16.mxu0 0
    %386 = vmatpush1.bf16.msra.mxu0 0
    %387 = vmatprep.subr.bf16.mxu0 0
    %388 = vmatpush1.bf16.msra.mxu0 0
    %389 = vmatprep.subr.bf16.mxu0 0
    %390 = vmatpush1.bf16.msra.mxu0 0
    %391 = vmatprep.subr.bf16.mxu0 0
    %392 = vmatpush1.bf16.msra.mxu0 0
    %393 = vmatprep.mubr.bf16.mxu0 0
    %394 = vmatmul.mubr.bf16.gmra.mrb[0].mxu0 %v249
    %v395 = vpop.f32.mrb[0].mxu0
    %v396 = vadd.f32 %v119, %v395
    %v397 = vpop.f32.mrb[0].mxu0
    %v398 = vpop.f32.mrb[0].mxu0
    %v399 = vadd.f32 %v119, %v398
    %v400 = vpop.f32.mrb[0].mxu0
    %401 = vmatprep.mubr.bf16.mxu0 0
    %402 = vmatmul.mubr.bf16.gmra.mrb[0].mxu0 %v250
    %v403 = vpop.f32.mrb[0].mxu0
    %v404 = vadd.f32 %v119, %v403
    %v405 = vpop.f32.mrb[0].mxu0
    %v406 = vpop.f32.mrb[0].mxu0
    %v407 = vadd.f32 %v119, %v406
    %v408 = vpop.f32.mrb[0].mxu0
    %409 = vmatprep.mubr.bf16.mxu0 0
    %410 = vmatmul.mubr.bf16.gmra.mrb[0].mxu0 %v251
    %v411 = vpop.f32.mrb[0].mxu0
    %v412 = vadd.f32 %v119, %v411
    %v413 = vpop.f32.mrb[0].mxu0
    %v414 = vpop.f32.mrb[0].mxu0
    %v415 = vadd.f32 %v119, %v414
    %v416 = vpop.f32.mrb[0].mxu0
    %417 = vmatprep.mubr.bf16.mxu0 0
    %418 = vmatmul.mubr.bf16.gmra.mrb[0].mxu0 %v252
    %v419 = vpop.f32.mrb[0].mxu0
    %v420 = vadd.f32 %v119, %v419
    %v421 = vpop.f32.mrb[0].mxu0
    %v422 = vpop.f32.mrb[0].mxu0
    %v423 = vadd.f32 %v119, %v422
    %v424 = vpop.f32.mrb[0].mxu0
    %425 = vmatprep.mubr.bf16.mxu0 0
    %426 = vmatmul.mubr.bf16.gmra.mrb[0].mxu0 %v253
    %v427 = vpop.f32.mrb[0].mxu0
    %v428 = vadd.f32 %v119, %v427
    %v429 = vpop.f32.mrb[0].mxu0
    %v430 = vpop.f32.mrb[0].mxu0
    %v431 = vadd.f32 %v119, %v430
    %v432 = vpop.f32.mrb[0].mxu0
    %433 = vmatprep.mubr.bf16.mxu0 0
    %434 = vmatmul.mubr.bf16.gmra.mrb[0].mxu0 %v254
    %v435 = vpop.f32.mrb[0].mxu0
    %v436 = vadd.f32 %v119, %v435
    %v437 = vpop.f32.mrb[0].mxu0
    %v438 = vpop.f32.mrb[0].mxu0
    %v439 = vadd.f32 %v119, %v438
    %v440 = vpop.f32.mrb[0].mxu0
    %441 = vmatprep.mubr.bf16.mxu0 0
    %442 = vmatmul.mubr.bf16.gmra.mrb[0].mxu0 %v255
    %v443 = vpop.f32.mrb[0].mxu0
    %v444 = vadd.f32 %v119, %v443
    %v445 = vpop.f32.mrb[0].mxu0
    %v446 = vpop.f32.mrb[0].mxu0
    %v447 = vadd.f32 %v119, %v446
    %v448 = vpop.f32.mrb[0].mxu0
    %449 = vmatprep.mubr.bf16.mxu0 0
    %450 = vmatmul.mubr.bf16.gmra.mrb[0].mxu0 %v256
    %v451 = vpop.f32.mrb[0].mxu0
    %v452 = vadd.f32 %v119, %v451
    %v453 = vpop.f32.mrb[0].mxu0
    %v454 = vpop.f32.mrb[0].mxu0
    %v455 = vadd.f32 %v119, %v454
    %v456 = vpop.f32.mrb[0].mxu0
    %457 = vmatprep.mubr.bf16.mxu0 0
    %458 = vmatmul.mubr.bf16.gmra.mrb[0].mxu0 %v257
    %v459 = vpop.f32.mrb[0].mxu0
    %v460 = vadd.f32 %v119, %v459
    %v461 = vpop.f32.mrb[0].mxu0
    %v462 = vpop.f32.mrb[0].mxu0
    %v463 = vadd.f32 %v119, %v462
    %v464 = vpop.f32.mrb[0].mxu0
    %465 = vmatprep.mubr.bf16.mxu0 0
    %466 = vmatmul.mubr.bf16.gmra.mrb[0].mxu0 %v258
    %v467 = vpop.f32.mrb[0].mxu0
    %v468 = vadd.f32 %v119, %v467
    %v469 = vpop.f32.mrb[0].mxu0
    %v470 = vpop.f32.mrb[0].mxu0
    %v471 = vadd.f32 %v119, %v470
    %v472 = vpop.f32.mrb[0].mxu0
    %473 = vmatprep.mubr.bf16.mxu0 0
    %474 = vmatmul.mubr.bf16.gmra.mrb[0].mxu0 %v259
    %v475 = vpop.f32.mrb[0].mxu0
    %v476 = vadd.f32 %v119, %v475
    %v477 = vpop.f32.mrb[0].mxu0
    %v478 = vpop.f32.mrb[0].mxu0
    %v479 = vadd.f32 %v119, %v478
    %v480 = vpop.f32.mrb[0].mxu0
    %481 = vmatprep.mubr.bf16.mxu0 0
    %482 = vmatmul.mubr.bf16.gmra.mrb[0].mxu0 %v260
    %v483 = vpop.f32.mrb[0].mxu0
    %v484 = vadd.f32 %v119, %v483
    %v485 = vpop.f32.mrb[0].mxu0
    %v486 = vpop.f32.mrb[0].mxu0
    %v487 = vadd.f32 %v119, %v486
    %v488 = vpop.f32.mrb[0].mxu0
    %489 = vmatprep.mubr.bf16.mxu0 0
    %490 = vmatmul.mubr.bf16.gmra.mrb[0].mxu0 %v261
    %v491 = vpop.f32.mrb[0].mxu0
    %v492 = vadd.f32 %v119, %v491
    %v493 = vpop.f32.mrb[0].mxu0
    %v494 = vpop.f32.mrb[0].mxu0
    %v495 = vadd.f32 %v119, %v494
    %v496 = vpop.f32.mrb[0].mxu0
    %497 = vmatprep.mubr.bf16.mxu0 0
    %498 = vmatmul.mubr.bf16.gmra.mrb[0].mxu0 %v262
    %v499 = vpop.f32.mrb[0].mxu0
    %v500 = vadd.f32 %v119, %v499
    %v501 = vpop.f32.mrb[0].mxu0
    %v502 = vpop.f32.mrb[0].mxu0
    %v503 = vadd.f32 %v119, %v502
    %v504 = vpop.f32.mrb[0].mxu0
    %505 = vmatprep.mubr.bf16.mxu0 0
    %506 = vmatmul.mubr.bf16.gmra.mrb[0].mxu0 %v263
    %v507 = vpop.f32.mrb[0].mxu0
    %v508 = vadd.f32 %v119, %v507
    %v509 = vpop.f32.mrb[0].mxu0
    %v510 = vpop.f32.mrb[0].mxu0
    %v511 = vadd.f32 %v119, %v510
    %v512 = vpop.f32.mrb[0].mxu0
    %513 = vmatprep.mubr.bf16.mxu0 0
    %514 = vmatmul.mubr.bf16.gmra.mrb[0].mxu0 %v264
    %v515 = vpop.f32.mrb[0].mxu0
    %v516 = vadd.f32 %v119, %v515
    %v517 = vpop.f32.mrb[0].mxu0
    %v518 = vpop.f32.mrb[0].mxu0
    %v519 = vadd.f32 %v119, %v518
    %v520 = vpop.f32.mrb[0].mxu0
    %521 = vmatprep.mubr.bf16.mxu0 0
    %522 = vmatmul.mubr.bf16.gmra.mrb[0].mxu0 %v265
    %v523 = vpop.f32.mrb[0].mxu0
    %v524 = vadd.f32 %v119, %v523
    %v525 = vpop.f32.mrb[0].mxu0
    %v526 = vpop.f32.mrb[0].mxu0
    %v527 = vadd.f32 %v119, %v526
    %v528 = vpop.f32.mrb[0].mxu0
    %529 = vmatprep.mubr.bf16.mxu0 0
    %530 = vmatmul.mubr.bf16.gmra.mrb[0].mxu0 %v266
    %v531 = vpop.f32.mrb[0].mxu0
    %v532 = vadd.f32 %v119, %v531
    %v533 = vpop.f32.mrb[0].mxu0
    %v534 = vpop.f32.mrb[0].mxu0
    %v535 = vadd.f32 %v119, %v534
    %v536 = vpop.f32.mrb[0].mxu0
    %537 = vmatprep.mubr.bf16.mxu0 0
    %538 = vmatmul.mubr.bf16.gmra.mrb[0].mxu0 %v267
    %v539 = vpop.f32.mrb[0].mxu0
    %v540 = vadd.f32 %v119, %v539
    %v541 = vpop.f32.mrb[0].mxu0
    %v542 = vpop.f32.mrb[0].mxu0
    %v543 = vadd.f32 %v119, %v542
    %v544 = vpop.f32.mrb[0].mxu0
    %545 = vmatprep.mubr.bf16.mxu0 0
    %546 = vmatmul.mubr.bf16.gmra.mrb[0].mxu0 %v268
    %v547 = vpop.f32.mrb[0].mxu0
    %v548 = vadd.f32 %v119, %v547
    %v549 = vpop.f32.mrb[0].mxu0
    %v550 = vpop.f32.mrb[0].mxu0
    %v551 = vadd.f32 %v119, %v550
    %v552 = vpop.f32.mrb[0].mxu0
    %553 = vmatprep.mubr.bf16.mxu0 0
    %554 = vmatmul.mubr.bf16.gmra.mrb[0].mxu0 %v269
    %v555 = vpop.f32.mrb[0].mxu0
    %v556 = vadd.f32 %v119, %v555
    %v557 = vpop.f32.mrb[0].mxu0
    %v558 = vpop.f32.mrb[0].mxu0
    %v559 = vadd.f32 %v119, %v558
    %v560 = vpop.f32.mrb[0].mxu0
    %561 = vmatprep.mubr.bf16.mxu0 0
    %562 = vmatmul.mubr.bf16.gmra.mrb[0].mxu0 %v270
    %v563 = vpop.f32.mrb[0].mxu0
    %v564 = vadd.f32 %v119, %v563
    %v565 = vpop.f32.mrb[0].mxu0
    %v566 = vpop.f32.mrb[0].mxu0
    %v567 = vadd.f32 %v119, %v566
    %v568 = vpop.f32.mrb[0].mxu0
    %569 = vmatprep.mubr.bf16.mxu0 0
    %570 = vmatmul.mubr.bf16.gmra.mrb[0].mxu0 %v271
    %v571 = vpop.f32.mrb[0].mxu0
    %v572 = vadd.f32 %v119, %v571
    %v573 = vpop.f32.mrb[0].mxu0
    %v574 = vpop.f32.mrb[0].mxu0
    %v575 = vadd.f32 %v119, %v574
    %v576 = vpop.f32.mrb[0].mxu0
    %577 = vmatprep.mubr.bf16.mxu0 0
    %578 = vmatmul.mubr.bf16.gmra.mrb[0].mxu0 %v272
    %v579 = vpop.f32.mrb[0].mxu0
    %v580 = vadd.f32 %v119, %v579
    %v581 = vpop.f32.mrb[0].mxu0
    %v582 = vpop.f32.mrb[0].mxu0
    %v583 = vadd.f32 %v119, %v582
    %v584 = vpop.f32.mrb[0].mxu0
    %585 = vmatprep.mubr.bf16.mxu0 0
    %586 = vmatmul.mubr.bf16.gmra.mrb[0].mxu0 %v273
    %v587 = vpop.f32.mrb[0].mxu0
    %v588 = vadd.f32 %v119, %v587
    %v589 = vpop.f32.mrb[0].mxu0
    %v590 = vpop.f32.mrb[0].mxu0
    %v591 = vadd.f32 %v119, %v590
    %v592 = vpop.f32.mrb[0].mxu0
    %593 = vmatprep.mubr.bf16.mxu0 0
    %594 = vmatmul.mubr.bf16.gmra.mrb[0].mxu0 %v274
    %v595 = vpop.f32.mrb[0].mxu0
    %v596 = vadd.f32 %v119, %v595
    %v597 = vpop.f32.mrb[0].mxu0
    %v598 = vpop.f32.mrb[0].mxu0
    %v599 = vadd.f32 %v119, %v598
    %v600 = vpop.f32.mrb[0].mxu0
    %601 = vmatprep.mubr.bf16.mxu0 0
    %602 = vmatmul.mubr.bf16.gmra.mrb[0].mxu0 %v275
    %v603 = vpop.f32.mrb[0].mxu0
    %v604 = vadd.f32 %v119, %v603
    %v605 = vpop.f32.mrb[0].mxu0
    %v606 = vpop.f32.mrb[0].mxu0
    %v607 = vadd.f32 %v119, %v606
    %v608 = vpop.f32.mrb[0].mxu0
    %609 = vmatprep.mubr.bf16.mxu0 0
    %610 = vmatmul.mubr.bf16.gmra.mrb[0].mxu0 %v276
    %v611 = vpop.f32.mrb[0].mxu0
    %v612 = vadd.f32 %v119, %v611
    %v613 = vpop.f32.mrb[0].mxu0
    %v614 = vpop.f32.mrb[0].mxu0
    %v615 = vadd.f32 %v119, %v614
    %v616 = vpop.f32.mrb[0].mxu0
    %617 = vmatprep.mubr.bf16.mxu0 0
    %618 = vmatmul.mubr.bf16.gmra.mrb[0].mxu0 %v277
    %v619 = vpop.f32.mrb[0].mxu0
    %v620 = vadd.f32 %v119, %v619
    %v621 = vpop.f32.mrb[0].mxu0
    %v622 = vpop.f32.mrb[0].mxu0
    %v623 = vadd.f32 %v119, %v622
    %v624 = vpop.f32.mrb[0].mxu0
    %625 = vmatprep.mubr.bf16.mxu0 0
    %626 = vmatmul.mubr.bf16.gmra.mrb[0].mxu0 %v278
    %v627 = vpop.f32.mrb[0].mxu0
    %v628 = vadd.f32 %v119, %v627
    %v629 = vpop.f32.mrb[0].mxu0
    %v630 = vpop.f32.mrb[0].mxu0
    %v631 = vadd.f32 %v119, %v630
    %v632 = vpop.f32.mrb[0].mxu0
    %633 = vmatprep.mubr.bf16.mxu0 0
    %634 = vmatmul.mubr.bf16.gmra.mrb[0].mxu0 %v279
    %v635 = vpop.f32.mrb[0].mxu0
    %v636 = vadd.f32 %v119, %v635
    %v637 = vpop.f32.mrb[0].mxu0
    %v638 = vpop.f32.mrb[0].mxu0
    %v639 = vadd.f32 %v119, %v638
    %v640 = vpop.f32.mrb[0].mxu0
    %641 = vmatprep.mubr.bf16.mxu0 0
    %642 = vmatmul.mubr.bf16.gmra.mrb[0].mxu0 %v280
    %v643 = vpop.f32.mrb[0].mxu0
    %v644 = vadd.f32 %v119, %v643
    %v645 = vpop.f32.mrb[0].mxu0
    %v646 = vpop.f32.mrb[0].mxu0
    %v647 = vadd.f32 %v119, %v646
    %v648 = vpop.f32.mrb[0].mxu0
    %649 = vdwg.mxu0
    %v650 = vmax.f32 %v396, 0.0
    %v651 = vmax.f32 %v399, 0.0
    %v652 = vmax.f32 %v404, 0.0
    %v653 = vmax.f32 %v407, 0.0
    %v654 = vmax.f32 %v412, 0.0
    %v655 = vmax.f32 %v415, 0.0
    %v656 = vmax.f32 %v420, 0.0
    %v657 = vmax.f32 %v423, 0.0
    %v658 = vmax.f32 %v428, 0.0
    %v659 = vmax.f32 %v431, 0.0
    %v660 = vmax.f32 %v436, 0.0
    %v661 = vmax.f32 %v439, 0.0
    %v662 = vmax.f32 %v444, 0.0
    %v663 = vmax.f32 %v447, 0.0
    %v664 = vmax.f32 %v452, 0.0
    %v665 = vmax.f32 %v455, 0.0
    %v666 = vmax.f32 %v460, 0.0
    %v667 = vmax.f32 %v463, 0.0
    %v668 = vmax.f32 %v468, 0.0
    %v669 = vmax.f32 %v471, 0.0
    %v670 = vmax.f32 %v476, 0.0
    %v671 = vmax.f32 %v479, 0.0
    %v672 = vmax.f32 %v484, 0.0
    %v673 = vmax.f32 %v487, 0.0
    %v674 = vmax.f32 %v492, 0.0
    %v675 = vmax.f32 %v495, 0.0
    %v676 = vmax.f32 %v500, 0.0
    %v677 = vmax.f32 %v503, 0.0
    %v678 = vmax.f32 %v508, 0.0
    %v679 = vmax.f32 %v511, 0.0
    %v680 = vmax.f32 %v516, 0.0
    %v681 = vmax.f32 %v519, 0.0
    %v682 = vmax.f32 %v524, 0.0
    %v683 = vmax.f32 %v527, 0.0
    %v684 = vmax.f32 %v532, 0.0
    %v685 = vmax.f32 %v535, 0.0
    %v686 = vmax.f32 %v540, 0.0
    %v687 = vmax.f32 %v543, 0.0
    %v688 = vmax.f32 %v548, 0.0
    %v689 = vmax.f32 %v551, 0.0
    %v690 = vmax.f32 %v556, 0.0
    %v691 = vmax.f32 %v559, 0.0
    %v692 = vmax.f32 %v564, 0.0
    %v693 = vmax.f32 %v567, 0.0
    %v694 = vmax.f32 %v572, 0.0
    %v695 = vmax.f32 %v575, 0.0
    %v696 = vmax.f32 %v580, 0.0
    %v697 = vmax.f32 %v583, 0.0
    %v698 = vmax.f32 %v588, 0.0
    %v699 = vmax.f32 %v591, 0.0
    %v700 = vmax.f32 %v596, 0.0
    %v701 = vmax.f32 %v599, 0.0
    %v702 = vmax.f32 %v604, 0.0
    %v703 = vmax.f32 %v607, 0.0
    %v704 = vmax.f32 %v612, 0.0
    %v705 = vmax.f32 %v615, 0.0
    %v706 = vmax.f32 %v620, 0.0
    %v707 = vmax.f32 %v623, 0.0
    %v708 = vmax.f32 %v628, 0.0
    %v709 = vmax.f32 %v631, 0.0
    %v710 = vmax.f32 %v636, 0.0
    %v711 = vmax.f32 %v639, 0.0
    %v712 = vmax.f32 %v644, 0.0
    %v713 = vmax.f32 %v647, 0.0
    %v714 = vlaneseq
    %v715 = vand.u32 %v714, 127
    %vm716 = vcmp.lt.s32.totalorder %v715, 16
    %v717 = vsel %vm716, %v650, 0.0
    %v718 = vsel %vm716, %v651, 0.0
    %v719 = vsel %vm716, %v652, 0.0
    %v720 = vsel %vm716, %v653, 0.0
    %v721 = vsel %vm716, %v654, 0.0
    %v722 = vsel %vm716, %v655, 0.0
    %v723 = vsel %vm716, %v656, 0.0
    %v724 = vsel %vm716, %v657, 0.0
    %v725 = vsel %vm716, %v658, 0.0
    %v726 = vsel %vm716, %v659, 0.0
    %v727 = vsel %vm716, %v660, 0.0
    %v728 = vsel %vm716, %v661, 0.0
    %v729 = vsel %vm716, %v662, 0.0
    %v730 = vsel %vm716, %v663, 0.0
    %v731 = vsel %vm716, %v664, 0.0
    %v732 = vsel %vm716, %v665, 0.0
    %v733 = vsel %vm716, %v666, 0.0
    %v734 = vsel %vm716, %v667, 0.0
    %v735 = vsel %vm716, %v668, 0.0
    %v736 = vsel %vm716, %v669, 0.0
    %v737 = vsel %vm716, %v670, 0.0
    %v738 = vsel %vm716, %v671, 0.0
    %v739 = vsel %vm716, %v672, 0.0
    %v740 = vsel %vm716, %v673, 0.0
    %v741 = vsel %vm716, %v674, 0.0
    %v742 = vsel %vm716, %v675, 0.0
    %v743 = vsel %vm716, %v676, 0.0
    %v744 = vsel %vm716, %v677, 0.0
    %v745 = vsel %vm716, %v678, 0.0
    %v746 = vsel %vm716, %v679, 0.0
    %v747 = vsel %vm716, %v680, 0.0
    %v748 = vsel %vm716, %v681, 0.0
    %v749 = vsel %vm716, %v682, 0.0
    %v750 = vsel %vm716, %v683, 0.0
    %v751 = vsel %vm716, %v684, 0.0
    %v752 = vsel %vm716, %v685, 0.0
    %v753 = vsel %vm716, %v686, 0.0
    %v754 = vsel %vm716, %v687, 0.0
    %v755 = vsel %vm716, %v688, 0.0
    %v756 = vsel %vm716, %v689, 0.0
    %v757 = vsel %vm716, %v690, 0.0
    %v758 = vsel %vm716, %v691, 0.0
    %v759 = vsel %vm716, %v692, 0.0
    %v760 = vsel %vm716, %v693, 0.0
    %v761 = vsel %vm716, %v694, 0.0
    %v762 = vsel %vm716, %v695, 0.0
    %v763 = vsel %vm716, %v696, 0.0
    %v764 = vsel %vm716, %v697, 0.0
    %v765 = vsel %vm716, %v698, 0.0
    %v766 = vsel %vm716, %v699, 0.0
    %v767 = vsel %vm716, %v700, 0.0
    %v768 = vsel %vm716, %v701, 0.0
    %v769 = vsel %vm716, %v702, 0.0
    %v770 = vsel %vm716, %v703, 0.0
    %v771 = vsel %vm716, %v704, 0.0
    %v772 = vsel %vm716, %v705, 0.0
    %v773 = vsel %vm716, %v706, 0.0
    %v774 = vsel %vm716, %v707, 0.0
    %v775 = vsel %vm716, %v708, 0.0
    %v776 = vsel %vm716, %v709, 0.0
    %v777 = vsel %vm716, %v710, 0.0
    %v778 = vsel %vm716, %v711, 0.0
    %v779 = vsel %vm716, %v712, 0.0
    %v780 = vsel %vm716, %v713, 0.0
    %vm781 = vcmask 261120
    %v782 = vsel %vm781, %v717, -inf
    %783 = vmax.xlane.f32.xlu0 %v782
    %v784 = vpop.xlane.xlu0 %783
    %v785 = vsel %vm781, %v718, -inf
    %786 = vmax.xlane.f32.xlu0 %v785
    %v787 = vpop.xlane.xlu0 %786
    %v788 = vsel %vm781, %v719, -inf
    %789 = vmax.xlane.f32.xlu0 %v788
    %v790 = vpop.xlane.xlu0 %789
    %v791 = vsel %vm781, %v720, -inf
    %792 = vmax.xlane.f32.xlu0 %v791
    %v793 = vpop.xlane.xlu0 %792
    %v794 = vsel %vm781, %v721, -inf
    %795 = vmax.xlane.f32.xlu0 %v794
    %v796 = vpop.xlane.xlu0 %795
    %v797 = vsel %vm781, %v722, -inf
    %798 = vmax.xlane.f32.xlu0 %v797
    %v799 = vpop.xlane.xlu0 %798
    %v800 = vsel %vm781, %v723, -inf
    %801 = vmax.xlane.f32.xlu0 %v800
    %v802 = vpop.xlane.xlu0 %801
    %v803 = vsel %vm781, %v724, -inf
    %804 = vmax.xlane.f32.xlu0 %v803
    %v805 = vpop.xlane.xlu0 %804
    %v806 = vsel %vm781, %v725, -inf
    %807 = vmax.xlane.f32.xlu0 %v806
    %v808 = vpop.xlane.xlu0 %807
    %v809 = vsel %vm781, %v726, -inf
    %810 = vmax.xlane.f32.xlu0 %v809
    %v811 = vpop.xlane.xlu0 %810
    %v812 = vsel %vm781, %v727, -inf
    %813 = vmax.xlane.f32.xlu0 %v812
    %v814 = vpop.xlane.xlu0 %813
    %v815 = vsel %vm781, %v728, -inf
    %816 = vmax.xlane.f32.xlu0 %v815
    %v817 = vpop.xlane.xlu0 %816
    %v818 = vsel %vm781, %v729, -inf
    %819 = vmax.xlane.f32.xlu0 %v818
    %v820 = vpop.xlane.xlu0 %819
    %v821 = vsel %vm781, %v730, -inf
    %822 = vmax.xlane.f32.xlu0 %v821
    %v823 = vpop.xlane.xlu0 %822
    %v824 = vsel %vm781, %v731, -inf
    %825 = vmax.xlane.f32.xlu0 %v824
    %v826 = vpop.xlane.xlu0 %825
    %v827 = vsel %vm781, %v732, -inf
    %828 = vmax.xlane.f32.xlu0 %v827
    %v829 = vpop.xlane.xlu0 %828
    %v830 = vsel %vm781, %v733, -inf
    %831 = vmax.xlane.f32.xlu0 %v830
    %v832 = vpop.xlane.xlu0 %831
    %v833 = vsel %vm781, %v734, -inf
    %834 = vmax.xlane.f32.xlu0 %v833
    %v835 = vpop.xlane.xlu0 %834
    %v836 = vsel %vm781, %v735, -inf
    %837 = vmax.xlane.f32.xlu0 %v836
    %v838 = vpop.xlane.xlu0 %837
    %v839 = vsel %vm781, %v736, -inf
    %840 = vmax.xlane.f32.xlu0 %v839
    %v841 = vpop.xlane.xlu0 %840
    %v842 = vsel %vm781, %v737, -inf
    %843 = vmax.xlane.f32.xlu0 %v842
    %v844 = vpop.xlane.xlu0 %843
    %v845 = vsel %vm781, %v738, -inf
    %846 = vmax.xlane.f32.xlu0 %v845
    %v847 = vpop.xlane.xlu0 %846
    %v848 = vsel %vm781, %v739, -inf
    %849 = vmax.xlane.f32.xlu0 %v848
    %v850 = vpop.xlane.xlu0 %849
    %v851 = vsel %vm781, %v740, -inf
    %852 = vmax.xlane.f32.xlu0 %v851
    %v853 = vpop.xlane.xlu0 %852
    %v854 = vsel %vm781, %v741, -inf
    %855 = vmax.xlane.f32.xlu0 %v854
    %v856 = vpop.xlane.xlu0 %855
    %v857 = vsel %vm781, %v742, -inf
    %858 = vmax.xlane.f32.xlu0 %v857
    %v859 = vpop.xlane.xlu0 %858
    %v860 = vsel %vm781, %v743, -inf
    %861 = vmax.xlane.f32.xlu0 %v860
    %v862 = vpop.xlane.xlu0 %861
    %v863 = vsel %vm781, %v744, -inf
    %864 = vmax.xlane.f32.xlu0 %v863
    %v865 = vpop.xlane.xlu0 %864
    %v866 = vsel %vm781, %v745, -inf
    %867 = vmax.xlane.f32.xlu0 %v866
    %v868 = vpop.xlane.xlu0 %867
    %v869 = vsel %vm781, %v746, -inf
    %870 = vmax.xlane.f32.xlu0 %v869
    %v871 = vpop.xlane.xlu0 %870
    %v872 = vsel %vm781, %v747, -inf
    %873 = vmax.xlane.f32.xlu0 %v872
    %v874 = vpop.xlane.xlu0 %873
    %v875 = vsel %vm781, %v748, -inf
    %876 = vmax.xlane.f32.xlu0 %v875
    %v877 = vpop.xlane.xlu0 %876
    %v878 = vsel %vm781, %v749, -inf
    %879 = vmax.xlane.f32.xlu0 %v878
    %v880 = vpop.xlane.xlu0 %879
    %v881 = vsel %vm781, %v750, -inf
    %882 = vmax.xlane.f32.xlu0 %v881
    %v883 = vpop.xlane.xlu0 %882
    %v884 = vsel %vm781, %v751, -inf
    %885 = vmax.xlane.f32.xlu0 %v884
    %v886 = vpop.xlane.xlu0 %885
    %v887 = vsel %vm781, %v752, -inf
    %888 = vmax.xlane.f32.xlu0 %v887
    %v889 = vpop.xlane.xlu0 %888
    %v890 = vsel %vm781, %v753, -inf
    %891 = vmax.xlane.f32.xlu0 %v890
    %v892 = vpop.xlane.xlu0 %891
    %v893 = vsel %vm781, %v754, -inf
    %894 = vmax.xlane.f32.xlu0 %v893
    %v895 = vpop.xlane.xlu0 %894
    %v896 = vsel %vm781, %v755, -inf
    %897 = vmax.xlane.f32.xlu0 %v896
    %v898 = vpop.xlane.xlu0 %897
    %v899 = vsel %vm781, %v756, -inf
    %900 = vmax.xlane.f32.xlu0 %v899
    %v901 = vpop.xlane.xlu0 %900
    %v902 = vsel %vm781, %v757, -inf
    %903 = vmax.xlane.f32.xlu0 %v902
    %v904 = vpop.xlane.xlu0 %903
    %v905 = vsel %vm781, %v758, -inf
    %906 = vmax.xlane.f32.xlu0 %v905
    %v907 = vpop.xlane.xlu0 %906
    %v908 = vsel %vm781, %v759, -inf
    %909 = vmax.xlane.f32.xlu0 %v908
    %v910 = vpop.xlane.xlu0 %909
    %v911 = vsel %vm781, %v760, -inf
    %912 = vmax.xlane.f32.xlu0 %v911
    %v913 = vpop.xlane.xlu0 %912
    %v914 = vsel %vm781, %v761, -inf
    %915 = vmax.xlane.f32.xlu0 %v914
    %v916 = vpop.xlane.xlu0 %915
    %v917 = vsel %vm781, %v762, -inf
    %918 = vmax.xlane.f32.xlu0 %v917
    %v919 = vpop.xlane.xlu0 %918
    %v920 = vsel %vm781, %v763, -inf
    %921 = vmax.xlane.f32.xlu0 %v920
    %v922 = vpop.xlane.xlu0 %921
    %v923 = vsel %vm781, %v764, -inf
    %924 = vmax.xlane.f32.xlu0 %v923
    %v925 = vpop.xlane.xlu0 %924
    %v926 = vsel %vm781, %v765, -inf
    %927 = vmax.xlane.f32.xlu0 %v926
    %v928 = vpop.xlane.xlu0 %927
    %v929 = vsel %vm781, %v766, -inf
    %930 = vmax.xlane.f32.xlu0 %v929
    %v931 = vpop.xlane.xlu0 %930
    %v932 = vsel %vm781, %v767, -inf
    %933 = vmax.xlane.f32.xlu0 %v932
    %v934 = vpop.xlane.xlu0 %933
    %v935 = vsel %vm781, %v768, -inf
    %936 = vmax.xlane.f32.xlu0 %v935
    %v937 = vpop.xlane.xlu0 %936
    %v938 = vsel %vm781, %v769, -inf
    %939 = vmax.xlane.f32.xlu0 %v938
    %v940 = vpop.xlane.xlu0 %939
    %v941 = vsel %vm781, %v770, -inf
    %942 = vmax.xlane.f32.xlu0 %v941
    %v943 = vpop.xlane.xlu0 %942
    %v944 = vsel %vm781, %v771, -inf
    %945 = vmax.xlane.f32.xlu0 %v944
    %v946 = vpop.xlane.xlu0 %945
    %v947 = vsel %vm781, %v772, -inf
    %948 = vmax.xlane.f32.xlu0 %v947
    %v949 = vpop.xlane.xlu0 %948
    %v950 = vsel %vm781, %v773, -inf
    %951 = vmax.xlane.f32.xlu0 %v950
    %v952 = vpop.xlane.xlu0 %951
    %v953 = vsel %vm781, %v774, -inf
    %954 = vmax.xlane.f32.xlu0 %v953
    %v955 = vpop.xlane.xlu0 %954
    %v956 = vsel %vm781, %v775, -inf
    %957 = vmax.xlane.f32.xlu0 %v956
    %v958 = vpop.xlane.xlu0 %957
    %v959 = vsel %vm781, %v776, -inf
    %960 = vmax.xlane.f32.xlu0 %v959
    %v961 = vpop.xlane.xlu0 %960
    %v962 = vsel %vm781, %v777, -inf
    %963 = vmax.xlane.f32.xlu0 %v962
    %v964 = vpop.xlane.xlu0 %963
    %v965 = vsel %vm781, %v778, -inf
    %966 = vmax.xlane.f32.xlu0 %v965
    %v967 = vpop.xlane.xlu0 %966
    %v968 = vsel %vm781, %v779, -inf
    %969 = vmax.xlane.f32.xlu0 %v968
    %v970 = vpop.xlane.xlu0 %969
    %v971 = vsel %vm781, %v780, -inf
    %972 = vmax.xlane.f32.xlu0 %v971
    %v973 = vpop.xlane.xlu0 %972
    %v974 = vsel %vm716, 0.0, %v650
    %v975 = vsel %vm716, 0.0, %v651
    %v976 = vsel %vm716, 0.0, %v652
    %v977 = vsel %vm716, 0.0, %v653
    %v978 = vsel %vm716, 0.0, %v654
    %v979 = vsel %vm716, 0.0, %v655
    %v980 = vsel %vm716, 0.0, %v656
    %v981 = vsel %vm716, 0.0, %v657
    %v982 = vsel %vm716, 0.0, %v658
    %v983 = vsel %vm716, 0.0, %v659
    %v984 = vsel %vm716, 0.0, %v660
    %v985 = vsel %vm716, 0.0, %v661
    %v986 = vsel %vm716, 0.0, %v662
    %v987 = vsel %vm716, 0.0, %v663
    %v988 = vsel %vm716, 0.0, %v664
    %v989 = vsel %vm716, 0.0, %v665
    %v990 = vsel %vm716, 0.0, %v666
    %v991 = vsel %vm716, 0.0, %v667
    %v992 = vsel %vm716, 0.0, %v668
    %v993 = vsel %vm716, 0.0, %v669
    %v994 = vsel %vm716, 0.0, %v670
    %v995 = vsel %vm716, 0.0, %v671
    %v996 = vsel %vm716, 0.0, %v672
    %v997 = vsel %vm716, 0.0, %v673
    %v998 = vsel %vm716, 0.0, %v674
    %v999 = vsel %vm716, 0.0, %v675
    %v1000 = vsel %vm716, 0.0, %v676
    %v1001 = vsel %vm716, 0.0, %v677
    %v1002 = vsel %vm716, 0.0, %v678
    %v1003 = vsel %vm716, 0.0, %v679
    %v1004 = vsel %vm716, 0.0, %v680
    %v1005 = vsel %vm716, 0.0, %v681
    %v1006 = vsel %vm716, 0.0, %v682
    %v1007 = vsel %vm716, 0.0, %v683
    %v1008 = vsel %vm716, 0.0, %v684
    %v1009 = vsel %vm716, 0.0, %v685
    %v1010 = vsel %vm716, 0.0, %v686
    %v1011 = vsel %vm716, 0.0, %v687
    %v1012 = vsel %vm716, 0.0, %v688
    %v1013 = vsel %vm716, 0.0, %v689
    %v1014 = vsel %vm716, 0.0, %v690
    %v1015 = vsel %vm716, 0.0, %v691
    %v1016 = vsel %vm716, 0.0, %v692
    %v1017 = vsel %vm716, 0.0, %v693
    %v1018 = vsel %vm716, 0.0, %v694
    %v1019 = vsel %vm716, 0.0, %v695
    %v1020 = vsel %vm716, 0.0, %v696
    %v1021 = vsel %vm716, 0.0, %v697
    %v1022 = vsel %vm716, 0.0, %v698
    %v1023 = vsel %vm716, 0.0, %v699
    %v1024 = vsel %vm716, 0.0, %v700
    %v1025 = vsel %vm716, 0.0, %v701
    %v1026 = vsel %vm716, 0.0, %v702
    %v1027 = vsel %vm716, 0.0, %v703
    %v1028 = vsel %vm716, 0.0, %v704
    %v1029 = vsel %vm716, 0.0, %v705
    %v1030 = vsel %vm716, 0.0, %v706
    %v1031 = vsel %vm716, 0.0, %v707
    %v1032 = vsel %vm716, 0.0, %v708
    %v1033 = vsel %vm716, 0.0, %v709
    %v1034 = vsel %vm716, 0.0, %v710
    %v1035 = vsel %vm716, 0.0, %v711
    %v1036 = vsel %vm716, 0.0, %v712
    %v1037 = vsel %vm716, 0.0, %v713
    %v1038 = vsel %vm781, %v974, -inf
    %1039 = vmax.xlane.f32.xlu0 %v1038
    %v1040 = vpop.xlane.xlu0 %1039
    %v1041 = vsel %vm781, %v975, -inf
    %1042 = vmax.xlane.f32.xlu0 %v1041
    %v1043 = vpop.xlane.xlu0 %1042
    %v1044 = vsel %vm781, %v976, -inf
    %1045 = vmax.xlane.f32.xlu0 %v1044
    %v1046 = vpop.xlane.xlu0 %1045
    %v1047 = vsel %vm781, %v977, -inf
    %1048 = vmax.xlane.f32.xlu0 %v1047
    %v1049 = vpop.xlane.xlu0 %1048
    %v1050 = vsel %vm781, %v978, -inf
    %1051 = vmax.xlane.f32.xlu0 %v1050
    %v1052 = vpop.xlane.xlu0 %1051
    %v1053 = vsel %vm781, %v979, -inf
    %1054 = vmax.xlane.f32.xlu0 %v1053
    %v1055 = vpop.xlane.xlu0 %1054
    %v1056 = vsel %vm781, %v980, -inf
    %1057 = vmax.xlane.f32.xlu0 %v1056
    %v1058 = vpop.xlane.xlu0 %1057
    %v1059 = vsel %vm781, %v981, -inf
    %1060 = vmax.xlane.f32.xlu0 %v1059
    %v1061 = vpop.xlane.xlu0 %1060
    %v1062 = vsel %vm781, %v982, -inf
    %1063 = vmax.xlane.f32.xlu0 %v1062
    %v1064 = vpop.xlane.xlu0 %1063
    %v1065 = vsel %vm781, %v983, -inf
    %1066 = vmax.xlane.f32.xlu0 %v1065
    %v1067 = vpop.xlane.xlu0 %1066
    %v1068 = vsel %vm781, %v984, -inf
    %1069 = vmax.xlane.f32.xlu0 %v1068
    %v1070 = vpop.xlane.xlu0 %1069
    %v1071 = vsel %vm781, %v985, -inf
    %1072 = vmax.xlane.f32.xlu0 %v1071
    %v1073 = vpop.xlane.xlu0 %1072
    %v1074 = vsel %vm781, %v986, -inf
    %1075 = vmax.xlane.f32.xlu0 %v1074
    %v1076 = vpop.xlane.xlu0 %1075
    %v1077 = vsel %vm781, %v987, -inf
    %1078 = vmax.xlane.f32.xlu0 %v1077
    %v1079 = vpop.xlane.xlu0 %1078
    %v1080 = vsel %vm781, %v988, -inf
    %1081 = vmax.xlane.f32.xlu0 %v1080
    %v1082 = vpop.xlane.xlu0 %1081
    %v1083 = vsel %vm781, %v989, -inf
    %1084 = vmax.xlane.f32.xlu0 %v1083
    %v1085 = vpop.xlane.xlu0 %1084
    %v1086 = vsel %vm781, %v990, -inf
    %1087 = vmax.xlane.f32.xlu0 %v1086
    %v1088 = vpop.xlane.xlu0 %1087
    %v1089 = vsel %vm781, %v991, -inf
    %1090 = vmax.xlane.f32.xlu0 %v1089
    %v1091 = vpop.xlane.xlu0 %1090
    %v1092 = vsel %vm781, %v992, -inf
    %1093 = vmax.xlane.f32.xlu0 %v1092
    %v1094 = vpop.xlane.xlu0 %1093
    %v1095 = vsel %vm781, %v993, -inf
    %1096 = vmax.xlane.f32.xlu0 %v1095
    %v1097 = vpop.xlane.xlu0 %1096
    %v1098 = vsel %vm781, %v994, -inf
    %1099 = vmax.xlane.f32.xlu0 %v1098
    %v1100 = vpop.xlane.xlu0 %1099
    %v1101 = vsel %vm781, %v995, -inf
    %1102 = vmax.xlane.f32.xlu0 %v1101
    %v1103 = vpop.xlane.xlu0 %1102
    %v1104 = vsel %vm781, %v996, -inf
    %1105 = vmax.xlane.f32.xlu0 %v1104
    %v1106 = vpop.xlane.xlu0 %1105
    %v1107 = vsel %vm781, %v997, -inf
    %1108 = vmax.xlane.f32.xlu0 %v1107
    %v1109 = vpop.xlane.xlu0 %1108
    %v1110 = vsel %vm781, %v998, -inf
    %1111 = vmax.xlane.f32.xlu0 %v1110
    %v1112 = vpop.xlane.xlu0 %1111
    %v1113 = vsel %vm781, %v999, -inf
    %1114 = vmax.xlane.f32.xlu0 %v1113
    %v1115 = vpop.xlane.xlu0 %1114
    %v1116 = vsel %vm781, %v1000, -inf
    %1117 = vmax.xlane.f32.xlu0 %v1116
    %v1118 = vpop.xlane.xlu0 %1117
    %v1119 = vsel %vm781, %v1001, -inf
    %1120 = vmax.xlane.f32.xlu0 %v1119
    %v1121 = vpop.xlane.xlu0 %1120
    %v1122 = vsel %vm781, %v1002, -inf
    %1123 = vmax.xlane.f32.xlu0 %v1122
    %v1124 = vpop.xlane.xlu0 %1123
    %v1125 = vsel %vm781, %v1003, -inf
    %1126 = vmax.xlane.f32.xlu0 %v1125
    %v1127 = vpop.xlane.xlu0 %1126
    %v1128 = vsel %vm781, %v1004, -inf
    %1129 = vmax.xlane.f32.xlu0 %v1128
    %v1130 = vpop.xlane.xlu0 %1129
    %v1131 = vsel %vm781, %v1005, -inf
    %1132 = vmax.xlane.f32.xlu0 %v1131
    %v1133 = vpop.xlane.xlu0 %1132
    %v1134 = vsel %vm781, %v1006, -inf
    %1135 = vmax.xlane.f32.xlu0 %v1134
    %v1136 = vpop.xlane.xlu0 %1135
    %v1137 = vsel %vm781, %v1007, -inf
    %1138 = vmax.xlane.f32.xlu0 %v1137
    %v1139 = vpop.xlane.xlu0 %1138
    %v1140 = vsel %vm781, %v1008, -inf
    %1141 = vmax.xlane.f32.xlu0 %v1140
    %v1142 = vpop.xlane.xlu0 %1141
    %v1143 = vsel %vm781, %v1009, -inf
    %1144 = vmax.xlane.f32.xlu0 %v1143
    %v1145 = vpop.xlane.xlu0 %1144
    %v1146 = vsel %vm781, %v1010, -inf
    %1147 = vmax.xlane.f32.xlu0 %v1146
    %v1148 = vpop.xlane.xlu0 %1147
    %v1149 = vsel %vm781, %v1011, -inf
    %1150 = vmax.xlane.f32.xlu0 %v1149
    %v1151 = vpop.xlane.xlu0 %1150
    %v1152 = vsel %vm781, %v1012, -inf
    %1153 = vmax.xlane.f32.xlu0 %v1152
    %v1154 = vpop.xlane.xlu0 %1153
    %v1155 = vsel %vm781, %v1013, -inf
    %1156 = vmax.xlane.f32.xlu0 %v1155
    %v1157 = vpop.xlane.xlu0 %1156
    %v1158 = vsel %vm781, %v1014, -inf
    %1159 = vmax.xlane.f32.xlu0 %v1158
    %v1160 = vpop.xlane.xlu0 %1159
    %v1161 = vsel %vm781, %v1015, -inf
    %1162 = vmax.xlane.f32.xlu0 %v1161
    %v1163 = vpop.xlane.xlu0 %1162
    %v1164 = vsel %vm781, %v1016, -inf
    %1165 = vmax.xlane.f32.xlu0 %v1164
    %v1166 = vpop.xlane.xlu0 %1165
    %v1167 = vsel %vm781, %v1017, -inf
    %1168 = vmax.xlane.f32.xlu0 %v1167
    %v1169 = vpop.xlane.xlu0 %1168
    %v1170 = vsel %vm781, %v1018, -inf
    %1171 = vmax.xlane.f32.xlu0 %v1170
    %v1172 = vpop.xlane.xlu0 %1171
    %v1173 = vsel %vm781, %v1019, -inf
    %1174 = vmax.xlane.f32.xlu0 %v1173
    %v1175 = vpop.xlane.xlu0 %1174
    %v1176 = vsel %vm781, %v1020, -inf
    %1177 = vmax.xlane.f32.xlu0 %v1176
    %v1178 = vpop.xlane.xlu0 %1177
    %v1179 = vsel %vm781, %v1021, -inf
    %1180 = vmax.xlane.f32.xlu0 %v1179
    %v1181 = vpop.xlane.xlu0 %1180
    %v1182 = vsel %vm781, %v1022, -inf
    %1183 = vmax.xlane.f32.xlu0 %v1182
    %v1184 = vpop.xlane.xlu0 %1183
    %v1185 = vsel %vm781, %v1023, -inf
    %1186 = vmax.xlane.f32.xlu0 %v1185
    %v1187 = vpop.xlane.xlu0 %1186
    %v1188 = vsel %vm781, %v1024, -inf
    %1189 = vmax.xlane.f32.xlu0 %v1188
    %v1190 = vpop.xlane.xlu0 %1189
    %v1191 = vsel %vm781, %v1025, -inf
    %1192 = vmax.xlane.f32.xlu0 %v1191
    %v1193 = vpop.xlane.xlu0 %1192
    %v1194 = vsel %vm781, %v1026, -inf
    %1195 = vmax.xlane.f32.xlu0 %v1194
    %v1196 = vpop.xlane.xlu0 %1195
    %v1197 = vsel %vm781, %v1027, -inf
    %1198 = vmax.xlane.f32.xlu0 %v1197
    %v1199 = vpop.xlane.xlu0 %1198
    %v1200 = vsel %vm781, %v1028, -inf
    %1201 = vmax.xlane.f32.xlu0 %v1200
    %v1202 = vpop.xlane.xlu0 %1201
    %v1203 = vsel %vm781, %v1029, -inf
    %1204 = vmax.xlane.f32.xlu0 %v1203
    %v1205 = vpop.xlane.xlu0 %1204
    %v1206 = vsel %vm781, %v1030, -inf
    %1207 = vmax.xlane.f32.xlu0 %v1206
    %v1208 = vpop.xlane.xlu0 %1207
    %v1209 = vsel %vm781, %v1031, -inf
    %1210 = vmax.xlane.f32.xlu0 %v1209
    %v1211 = vpop.xlane.xlu0 %1210
    %v1212 = vsel %vm781, %v1032, -inf
    %1213 = vmax.xlane.f32.xlu0 %v1212
    %v1214 = vpop.xlane.xlu0 %1213
    %v1215 = vsel %vm781, %v1033, -inf
    %1216 = vmax.xlane.f32.xlu0 %v1215
    %v1217 = vpop.xlane.xlu0 %1216
    %v1218 = vsel %vm781, %v1034, -inf
    %1219 = vmax.xlane.f32.xlu0 %v1218
    %v1220 = vpop.xlane.xlu0 %1219
    %v1221 = vsel %vm781, %v1035, -inf
    %1222 = vmax.xlane.f32.xlu0 %v1221
    %v1223 = vpop.xlane.xlu0 %1222
    %v1224 = vsel %vm781, %v1036, -inf
    %1225 = vmax.xlane.f32.xlu0 %v1224
    %v1226 = vpop.xlane.xlu0 %1225
    %v1227 = vsel %vm781, %v1037, -inf
    %1228 = vmax.xlane.f32.xlu0 %v1227
    %v1229 = vpop.xlane.xlu0 %1228
    %vm1230 = vcmask 7168
    %v1231 = vsel %vm1230, %v784, %v1040
    %v1232 = vsel %vm1230, %v787, %v1043
    %v1233 = vsel %vm1230, %v790, %v1046
    %v1234 = vsel %vm1230, %v793, %v1049
    %v1235 = vsel %vm1230, %v796, %v1052
    %v1236 = vsel %vm1230, %v799, %v1055
    %v1237 = vsel %vm1230, %v802, %v1058
    %v1238 = vsel %vm1230, %v805, %v1061
    %v1239 = vsel %vm1230, %v808, %v1064
    %v1240 = vsel %vm1230, %v811, %v1067
    %v1241 = vsel %vm1230, %v814, %v1070
    %v1242 = vsel %vm1230, %v817, %v1073
    %v1243 = vsel %vm1230, %v820, %v1076
    %v1244 = vsel %vm1230, %v823, %v1079
    %v1245 = vsel %vm1230, %v826, %v1082
    %v1246 = vsel %vm1230, %v829, %v1085
    %v1247 = vsel %vm1230, %v832, %v1088
    %v1248 = vsel %vm1230, %v835, %v1091
    %v1249 = vsel %vm1230, %v838, %v1094
    %v1250 = vsel %vm1230, %v841, %v1097
    %v1251 = vsel %vm1230, %v844, %v1100
    %v1252 = vsel %vm1230, %v847, %v1103
    %v1253 = vsel %vm1230, %v850, %v1106
    %v1254 = vsel %vm1230, %v853, %v1109
    %v1255 = vsel %vm1230, %v856, %v1112
    %v1256 = vsel %vm1230, %v859, %v1115
    %v1257 = vsel %vm1230, %v862, %v1118
    %v1258 = vsel %vm1230, %v865, %v1121
    %v1259 = vsel %vm1230, %v868, %v1124
    %v1260 = vsel %vm1230, %v871, %v1127
    %v1261 = vsel %vm1230, %v874, %v1130
    %v1262 = vsel %vm1230, %v877, %v1133
    %1263 = vxpose.xlu0.b32.start [1/16] %v1231, 128
    %1264 = vxpose.xlu0.b32.cont [2/16] %v1232, 128
    %1265 = vxpose.xlu0.b32.cont [3/16] %v1233, 128
    %1266 = vxpose.xlu0.b32.cont [4/16] %v1234, 128
    %1267 = vxpose.xlu0.b32.cont [5/16] %v1235, 128
    %1268 = vxpose.xlu0.b32.cont [6/16] %v1236, 128
    %1269 = vxpose.xlu0.b32.cont [7/16] %v1237, 128
    %1270 = vxpose.xlu0.b32.cont [8/16] %v1238, 128
    %1271 = vxpose.xlu0.b32.cont [9/16] %v1239, 128
    %1272 = vxpose.xlu0.b32.cont [10/16] %v1240, 128
    %1273 = vxpose.xlu0.b32.cont [11/16] %v1241, 128
    %1274 = vxpose.xlu0.b32.cont [12/16] %v1242, 128
    %1275 = vxpose.xlu0.b32.cont [13/16] %v1243, 128
    %1276 = vxpose.xlu0.b32.cont [14/16] %v1244, 128
    %1277 = vxpose.xlu0.b32.cont [15/16] %v1245, 128
    %1278 = vxpose.xlu0.b32.end [16/16] %v1246, 128
    %v1279 = vpop.trf.xlu0
    %v1280 = vpop.trf.xlu0
    %v1281 = vpop.trf.xlu0
    %v1282 = vpop.trf.xlu0
    %v1283 = vpop.trf.xlu0
    %v1284 = vpop.trf.xlu0
    %v1285 = vpop.trf.xlu0
    %v1286 = vpop.trf.xlu0
    %v1287 = vpop.trf.xlu0
    %v1288 = vpop.trf.xlu0
    %v1289 = vpop.trf.xlu0
    %v1290 = vpop.trf.xlu0
    %v1291 = vpop.trf.xlu0
    %v1292 = vpop.trf.xlu0
    %v1293 = vpop.trf.xlu0
    %v1294 = vpop.trf.xlu0
    %1295 = vxpose.xlu0.b32.start [1/16] %v1247, 128
    %1296 = vxpose.xlu0.b32.cont [2/16] %v1248, 128
    %1297 = vxpose.xlu0.b32.cont [3/16] %v1249, 128
    %1298 = vxpose.xlu0.b32.cont [4/16] %v1250, 128
    %1299 = vxpose.xlu0.b32.cont [5/16] %v1251, 128
    %1300 = vxpose.xlu0.b32.cont [6/16] %v1252, 128
    %1301 = vxpose.xlu0.b32.cont [7/16] %v1253, 128
    %1302 = vxpose.xlu0.b32.cont [8/16] %v1254, 128
    %1303 = vxpose.xlu0.b32.cont [9/16] %v1255, 128
    %1304 = vxpose.xlu0.b32.cont [10/16] %v1256, 128
    %1305 = vxpose.xlu0.b32.cont [11/16] %v1257, 128
    %1306 = vxpose.xlu0.b32.cont [12/16] %v1258, 128
    %1307 = vxpose.xlu0.b32.cont [13/16] %v1259, 128
    %1308 = vxpose.xlu0.b32.cont [14/16] %v1260, 128
    %1309 = vxpose.xlu0.b32.cont [15/16] %v1261, 128
    %1310 = vxpose.xlu0.b32.end [16/16] %v1262, 128
    %v1311 = vpop.trf.xlu0
    %v1312 = vpop.trf.xlu0
    %v1313 = vpop.trf.xlu0
    %v1314 = vpop.trf.xlu0
    %v1315 = vpop.trf.xlu0
    %v1316 = vpop.trf.xlu0
    %v1317 = vpop.trf.xlu0
    %v1318 = vpop.trf.xlu0
    %v1319 = vpop.trf.xlu0
    %v1320 = vpop.trf.xlu0
    %v1321 = vpop.trf.xlu0
    %v1322 = vpop.trf.xlu0
    %v1323 = vpop.trf.xlu0
    %v1324 = vpop.trf.xlu0
    %v1325 = vpop.trf.xlu0
    %v1326 = vpop.trf.xlu0
    %v1327 = vsel %vm1230, %v880, %v1136
    %v1328 = vsel %vm1230, %v883, %v1139
    %v1329 = vsel %vm1230, %v886, %v1142
    %v1330 = vsel %vm1230, %v889, %v1145
    %v1331 = vsel %vm1230, %v892, %v1148
    %v1332 = vsel %vm1230, %v895, %v1151
    %v1333 = vsel %vm1230, %v898, %v1154
    %v1334 = vsel %vm1230, %v901, %v1157
    %v1335 = vsel %vm1230, %v904, %v1160
    %v1336 = vsel %vm1230, %v907, %v1163
    %v1337 = vsel %vm1230, %v910, %v1166
    %v1338 = vsel %vm1230, %v913, %v1169
    %v1339 = vsel %vm1230, %v916, %v1172
    %v1340 = vsel %vm1230, %v919, %v1175
    %v1341 = vsel %vm1230, %v922, %v1178
    %v1342 = vsel %vm1230, %v925, %v1181
    %v1343 = vsel %vm1230, %v928, %v1184
    %v1344 = vsel %vm1230, %v931, %v1187
    %v1345 = vsel %vm1230, %v934, %v1190
    %v1346 = vsel %vm1230, %v937, %v1193
    %v1347 = vsel %vm1230, %v940, %v1196
    %v1348 = vsel %vm1230, %v943, %v1199
    %v1349 = vsel %vm1230, %v946, %v1202
    %v1350 = vsel %vm1230, %v949, %v1205
    %v1351 = vsel %vm1230, %v952, %v1208
    %v1352 = vsel %vm1230, %v955, %v1211
    %v1353 = vsel %vm1230, %v958, %v1214
    %v1354 = vsel %vm1230, %v961, %v1217
    %v1355 = vsel %vm1230, %v964, %v1220
    %v1356 = vsel %vm1230, %v967, %v1223
    %v1357 = vsel %vm1230, %v970, %v1226
    %v1358 = vsel %vm1230, %v973, %v1229
    %1359 = vxpose.xlu0.b32.start [1/16] %v1327, 128
    %1360 = vxpose.xlu0.b32.cont [2/16] %v1328, 128
    %1361 = vxpose.xlu0.b32.cont [3/16] %v1329, 128
    %1362 = vxpose.xlu0.b32.cont [4/16] %v1330, 128
    %1363 = vxpose.xlu0.b32.cont [5/16] %v1331, 128
    %1364 = vxpose.xlu0.b32.cont [6/16] %v1332, 128
    %1365 = vxpose.xlu0.b32.cont [7/16] %v1333, 128
    %1366 = vxpose.xlu0.b32.cont [8/16] %v1334, 128
    %1367 = vxpose.xlu0.b32.cont [9/16] %v1335, 128
    %1368 = vxpose.xlu0.b32.cont [10/16] %v1336, 128
    %1369 = vxpose.xlu0.b32.cont [11/16] %v1337, 128
    %1370 = vxpose.xlu0.b32.cont [12/16] %v1338, 128
    %1371 = vxpose.xlu0.b32.cont [13/16] %v1339, 128
    %1372 = vxpose.xlu0.b32.cont [14/16] %v1340, 128
    %1373 = vxpose.xlu0.b32.cont [15/16] %v1341, 128
    %1374 = vxpose.xlu0.b32.end [16/16] %v1342, 128
    %v1375 = vpop.trf.xlu0
    %v1376 = vpop.trf.xlu0
    %v1377 = vpop.trf.xlu0
    %v1378 = vpop.trf.xlu0
    %v1379 = vpop.trf.xlu0
    %v1380 = vpop.trf.xlu0
    %v1381 = vpop.trf.xlu0
    %v1382 = vpop.trf.xlu0
    %v1383 = vpop.trf.xlu0
    %v1384 = vpop.trf.xlu0
    %v1385 = vpop.trf.xlu0
    %v1386 = vpop.trf.xlu0
    %v1387 = vpop.trf.xlu0
    %v1388 = vpop.trf.xlu0
    %v1389 = vpop.trf.xlu0
    %v1390 = vpop.trf.xlu0
    %1391 = vxpose.xlu0.b32.start [1/16] %v1343, 128
    %1392 = vxpose.xlu0.b32.cont [2/16] %v1344, 128
    %1393 = vxpose.xlu0.b32.cont [3/16] %v1345, 128
    %1394 = vxpose.xlu0.b32.cont [4/16] %v1346, 128
    %1395 = vxpose.xlu0.b32.cont [5/16] %v1347, 128
    %1396 = vxpose.xlu0.b32.cont [6/16] %v1348, 128
    %1397 = vxpose.xlu0.b32.cont [7/16] %v1349, 128
    %1398 = vxpose.xlu0.b32.cont [8/16] %v1350, 128
    %1399 = vxpose.xlu0.b32.cont [9/16] %v1351, 128
    %1400 = vxpose.xlu0.b32.cont [10/16] %v1352, 128
    %1401 = vxpose.xlu0.b32.cont [11/16] %v1353, 128
    %1402 = vxpose.xlu0.b32.cont [12/16] %v1354, 128
    %1403 = vxpose.xlu0.b32.cont [13/16] %v1355, 128
    %1404 = vxpose.xlu0.b32.cont [14/16] %v1356, 128
    %1405 = vxpose.xlu0.b32.cont [15/16] %v1357, 128
    %1406 = vxpose.xlu0.b32.end [16/16] %v1358, 128
    %v1407 = vpop.trf.xlu0
    %v1408 = vpop.trf.xlu0
    %v1409 = vpop.trf.xlu0
    %v1410 = vpop.trf.xlu0
    %v1411 = vpop.trf.xlu0
    %v1412 = vpop.trf.xlu0
    %v1413 = vpop.trf.xlu0
    %v1414 = vpop.trf.xlu0
    %v1415 = vpop.trf.xlu0
    %v1416 = vpop.trf.xlu0
    %v1417 = vpop.trf.xlu0
    %v1418 = vpop.trf.xlu0
    %v1419 = vpop.trf.xlu0
    %v1420 = vpop.trf.xlu0
    %v1421 = vpop.trf.xlu0
    %v1422 = vpop.trf.xlu0
    %v1425 = vrot.slane %v1375, 7
    %v1426 = vrot.slane %v1407, 7
    %vm1429 = vcmask 1040384
    %v1430 = vsel %vm1429, %v1279, %v1425
    %v1431 = vsel %vm1429, %v1311, %v1426
    %v1434 = vrot.slane %v1279, 1
    %v1435 = vrot.slane %v1311, 1
    %v1438 = vsel %vm1429, %v1434, %v1375
    %v1439 = vsel %vm1429, %v1435, %v1407
    %v1440 = vpack.c.bf16 %v1438, %v1438
    %v1441 = vpack.c.bf16 %v1439, %v1439
    %v1442 = vld [vmem:[%s3] sm:$0xff]
    %v1443 = vld [vmem:[%s3 + $0x8] sm:$0xff]
    %v1444 = vld [vmem:[%s3 + $0x10] sm:$0xff]
    %v1445 = vld [vmem:[%s3 + $0x18] sm:$0xff]
    %v1446 = vld [vmem:[%s3 + $0x20] sm:$0xff]
    %v1447 = vld [vmem:[%s3 + $0x28] sm:$0xff]
    %v1448 = vld [vmem:[%s3 + $0x30] sm:$0xff]
    %v1449 = vld [vmem:[%s3 + $0x38] sm:$0xff]
    %v1450 = vld [vmem:[%s3 + $0x40] sm:$0xff]
    %v1451 = vld [vmem:[%s3 + $0x48] sm:$0xff]
    %v1452 = vld [vmem:[%s3 + $0x50] sm:$0xff]
    %v1453 = vld [vmem:[%s3 + $0x58] sm:$0xff]
    %v1454 = vld [vmem:[%s3 + $0x60] sm:$0xff]
    %v1455 = vld [vmem:[%s3 + $0x68] sm:$0xff]
    %v1456 = vld [vmem:[%s3 + $0x70] sm:$0xff]
    %v1457 = vld [vmem:[%s3 + $0x78] sm:$0xff]
    %v1458 = vld [vmem:[%s3 + $0x80] sm:$0xff]
    %v1459 = vld [vmem:[%s3 + $0x88] sm:$0xff]
    %v1460 = vld [vmem:[%s3 + $0x90] sm:$0xff]
    %v1461 = vld [vmem:[%s3 + $0x98] sm:$0xff]
    %v1462 = vld [vmem:[%s3 + $0xa0] sm:$0xff]
    %v1463 = vld [vmem:[%s3 + $0xa8] sm:$0xff]
    %v1464 = vld [vmem:[%s3 + $0xb0] sm:$0xff]
    %v1465 = vld [vmem:[%s3 + $0xb8] sm:$0xff]
    %v1466 = vld [vmem:[%s3 + $0xc0] sm:$0xff]
    %v1467 = vld [vmem:[%s3 + $0xc8] sm:$0xff]
    %v1468 = vld [vmem:[%s3 + $0xd0] sm:$0xff]
    %v1469 = vld [vmem:[%s3 + $0xd8] sm:$0xff]
    %v1470 = vld [vmem:[%s3 + $0xe0] sm:$0xff]
    %v1471 = vld [vmem:[%s3 + $0xe8] sm:$0xff]
    %v1472 = vld [vmem:[%s3 + $0xf0] sm:$0xff]
    %v1473 = vld [vmem:[%s3 + $0xf8] sm:$0xff]
    %v1506 = vunpack.c.l.b16 %v1442
    %v1507 = vunpack.c.h.b16 %v1442
    %v1508 = vunpack.c.l.b16 %v1443
    %v1509 = vunpack.c.h.b16 %v1443
    %v1510 = vunpack.c.l.b16 %v1444
    %v1511 = vunpack.c.h.b16 %v1444
    %v1512 = vunpack.c.l.b16 %v1445
    %v1513 = vunpack.c.h.b16 %v1445
    %v1514 = vunpack.c.l.b16 %v1446
    %v1515 = vunpack.c.h.b16 %v1446
    %v1516 = vunpack.c.l.b16 %v1447
    %v1517 = vunpack.c.h.b16 %v1447
    %v1518 = vunpack.c.l.b16 %v1448
    %v1519 = vunpack.c.h.b16 %v1448
    %v1520 = vunpack.c.l.b16 %v1449
    %v1521 = vunpack.c.h.b16 %v1449
    %v1522 = vunpack.c.l.b16 %v1450
    %v1523 = vunpack.c.h.b16 %v1450
    %v1524 = vunpack.c.l.b16 %v1451
    %v1525 = vunpack.c.h.b16 %v1451
    %v1526 = vunpack.c.l.b16 %v1452
    %v1527 = vunpack.c.h.b16 %v1452
    %v1528 = vunpack.c.l.b16 %v1453
    %v1529 = vunpack.c.h.b16 %v1453
    %v1530 = vunpack.c.l.b16 %v1454
    %v1531 = vunpack.c.h.b16 %v1454
    %v1532 = vunpack.c.l.b16 %v1455
    %v1533 = vunpack.c.h.b16 %v1455
    %v1534 = vunpack.c.l.b16 %v1456
    %v1535 = vunpack.c.h.b16 %v1456
    %v1536 = vunpack.c.l.b16 %v1457
    %v1537 = vunpack.c.h.b16 %v1457
    %v1538 = vunpack.c.l.b16 %v1458
    %v1539 = vunpack.c.h.b16 %v1458
    %v1540 = vunpack.c.l.b16 %v1459
    %v1541 = vunpack.c.h.b16 %v1459
    %v1542 = vunpack.c.l.b16 %v1460
    %v1543 = vunpack.c.h.b16 %v1460
    %v1544 = vunpack.c.l.b16 %v1461
    %v1545 = vunpack.c.h.b16 %v1461
    %v1546 = vunpack.c.l.b16 %v1462
    %v1547 = vunpack.c.h.b16 %v1462
    %v1548 = vunpack.c.l.b16 %v1463
    %v1549 = vunpack.c.h.b16 %v1463
    %v1550 = vunpack.c.l.b16 %v1464
    %v1551 = vunpack.c.h.b16 %v1464
    %v1552 = vunpack.c.l.b16 %v1465
    %v1553 = vunpack.c.h.b16 %v1465
    %v1554 = vunpack.c.l.b16 %v1466
    %v1555 = vunpack.c.h.b16 %v1466
    %v1556 = vunpack.c.l.b16 %v1467
    %v1557 = vunpack.c.h.b16 %v1467
    %v1558 = vunpack.c.l.b16 %v1468
    %v1559 = vunpack.c.h.b16 %v1468
    %v1560 = vunpack.c.l.b16 %v1469
    %v1561 = vunpack.c.h.b16 %v1469
    %v1562 = vunpack.c.l.b16 %v1470
    %v1563 = vunpack.c.h.b16 %v1470
    %v1564 = vunpack.c.l.b16 %v1471
    %v1565 = vunpack.c.h.b16 %v1471
    %v1566 = vunpack.c.l.b16 %v1472
    %v1567 = vunpack.c.h.b16 %v1472
    %v1568 = vunpack.c.l.b16 %v1473
    %v1569 = vunpack.c.h.b16 %v1473
    %v1570 = vpack.c.b16 %v1508, %v1506
    %v1571 = vpack.c.b16 %v1509, %v1507
    %v1572 = vpack.c.b16 %v1512, %v1510
    %v1573 = vpack.c.b16 %v1513, %v1511
    %v1574 = vpack.c.b16 %v1516, %v1514
    %v1575 = vpack.c.b16 %v1517, %v1515
    %v1576 = vpack.c.b16 %v1520, %v1518
    %v1577 = vpack.c.b16 %v1521, %v1519
    %v1578 = vpack.c.b16 %v1524, %v1522
    %v1579 = vpack.c.b16 %v1525, %v1523
    %v1580 = vpack.c.b16 %v1528, %v1526
    %v1581 = vpack.c.b16 %v1529, %v1527
    %v1582 = vpack.c.b16 %v1532, %v1530
    %v1583 = vpack.c.b16 %v1533, %v1531
    %v1584 = vpack.c.b16 %v1536, %v1534
    %v1585 = vpack.c.b16 %v1537, %v1535
    %v1586 = vpack.c.b16 %v1540, %v1538
    %v1587 = vpack.c.b16 %v1541, %v1539
    %v1588 = vpack.c.b16 %v1544, %v1542
    %v1589 = vpack.c.b16 %v1545, %v1543
    %v1590 = vpack.c.b16 %v1548, %v1546
    %v1591 = vpack.c.b16 %v1549, %v1547
    %v1592 = vpack.c.b16 %v1552, %v1550
    %v1593 = vpack.c.b16 %v1553, %v1551
    %v1594 = vpack.c.b16 %v1556, %v1554
    %v1595 = vpack.c.b16 %v1557, %v1555
    %v1596 = vpack.c.b16 %v1560, %v1558
    %v1597 = vpack.c.b16 %v1561, %v1559
    %v1598 = vpack.c.b16 %v1564, %v1562
    %v1599 = vpack.c.b16 %v1565, %v1563
    %v1600 = vpack.c.b16 %v1568, %v1566
    %v1601 = vpack.c.b16 %v1569, %v1567
    %1634 = vmatprep.subr.bf16.mxu0 %v1571
    %1635 = vmatpush1.bf16.msra.mxu0 %v1570
    %1636 = vmatprep.subr.bf16.mxu0 %v1573
    %1637 = vmatpush1.bf16.msra.mxu0 %v1572
    %1638 = vmatprep.subr.bf16.mxu0 %v1575
    %1639 = vmatpush1.bf16.msra.mxu0 %v1574
    %1640 = vmatprep.subr.bf16.mxu0 %v1577
    %1641 = vmatpush1.bf16.msra.mxu0 %v1576
    %1642 = vmatprep.subr.bf16.mxu0 %v1579
    %1643 = vmatpush1.bf16.msra.mxu0 %v1578
    %1644 = vmatprep.subr.bf16.mxu0 %v1581
    %1645 = vmatpush1.bf16.msra.mxu0 %v1580
    %1646 = vmatprep.subr.bf16.mxu0 %v1583
    %1647 = vmatpush1.bf16.msra.mxu0 %v1582
    %1648 = vmatprep.subr.bf16.mxu0 %v1585
    %1649 = vmatpush1.bf16.msra.mxu0 %v1584
    %1650 = vmatprep.subr.bf16.mxu0 %v1587
    %1651 = vmatpush1.bf16.msra.mxu0 %v1586
    %1652 = vmatprep.subr.bf16.mxu0 %v1589
    %1653 = vmatpush1.bf16.msra.mxu0 %v1588
    %1654 = vmatprep.subr.bf16.mxu0 %v1591
    %1655 = vmatpush1.bf16.msra.mxu0 %v1590
    %1656 = vmatprep.subr.bf16.mxu0 %v1593
    %1657 = vmatpush1.bf16.msra.mxu0 %v1592
    %1658 = vmatprep.subr.bf16.mxu0 %v1595
    %1659 = vmatpush1.bf16.msra.mxu0 %v1594
    %1660 = vmatprep.subr.bf16.mxu0 %v1597
    %1661 = vmatpush1.bf16.msra.mxu0 %v1596
    %1662 = vmatprep.subr.bf16.mxu0 %v1599
    %1663 = vmatpush1.bf16.msra.mxu0 %v1598
    %1664 = vmatprep.subr.bf16.mxu0 %v1601
    %1665 = vmatpush1.bf16.msra.mxu0 %v1600
    %1666 = vmatprep.mubr.bf16.mxu0 %v1441
    %1667 = vmatmul.mubr.bf16.gmra.mrb[0].mxu0 %v1440
    %v1668 = vpop.f32.mrb[0].mxu0
    %v1669 = vadd.f32 0.0, %v1668
    %v1670 = vpop.f32.mrb[0].mxu0
    %v1671 = vadd.f32 0.0, %v1670
    %v1672 = vpop.f32.mrb[0].mxu0
    %v1673 = vpop.f32.mrb[0].mxu0
    %1674 = vdwg.mxu0
    %v1675 = vxor.u32 %v1669, 2147483648
    %v1676 = vxor.u32 %v1671, 2147483648
    %v1677 = vmul.f32 %v1675, 1.442695
    %v1678 = vpow.pop %v1677
    %v1679 = vmul.f32 %v1676, 1.442695
    %v1680 = vpow.pop %v1679
    %v1681 = vadd.f32 %v1678, 1.0
    %v1682 = vadd.f32 %v1680, 1.0
    %v1683 = vrcp.pop %v1681
    %v1684 = vmul.f32 1.0, %v1683
    %v1685 = vrcp.pop %v1682
    %v1686 = vmul.f32 1.0, %v1685
    %v1687 = vpack.c.bf16 %v1430, %v1430
    %v1688 = vpack.c.bf16 %v1431, %v1431
    %v1689 = vld [vmem:[%s4] sm:$0xff]
    %v1690 = vld [vmem:[%s4 + $0x8] sm:$0xff]
    %v1691 = vld [vmem:[%s4 + $0x10] sm:$0xff]
    %v1692 = vld [vmem:[%s4 + $0x18] sm:$0xff]
    %v1693 = vld [vmem:[%s4 + $0x20] sm:$0xff]
    %v1694 = vld [vmem:[%s4 + $0x28] sm:$0xff]
    %v1695 = vld [vmem:[%s4 + $0x30] sm:$0xff]
    %v1696 = vld [vmem:[%s4 + $0x38] sm:$0xff]
    %v1697 = vld [vmem:[%s4 + $0x40] sm:$0xff]
    %v1698 = vld [vmem:[%s4 + $0x48] sm:$0xff]
    %v1699 = vld [vmem:[%s4 + $0x50] sm:$0xff]
    %v1700 = vld [vmem:[%s4 + $0x58] sm:$0xff]
    %v1701 = vld [vmem:[%s4 + $0x60] sm:$0xff]
    %v1702 = vld [vmem:[%s4 + $0x68] sm:$0xff]
    %v1703 = vld [vmem:[%s4 + $0x70] sm:$0xff]
    %v1704 = vld [vmem:[%s4 + $0x78] sm:$0xff]
    %v1705 = vld [vmem:[%s4 + $0x80] sm:$0xff]
    %v1706 = vld [vmem:[%s4 + $0x88] sm:$0xff]
    %v1707 = vld [vmem:[%s4 + $0x90] sm:$0xff]
    %v1708 = vld [vmem:[%s4 + $0x98] sm:$0xff]
    %v1709 = vld [vmem:[%s4 + $0xa0] sm:$0xff]
    %v1710 = vld [vmem:[%s4 + $0xa8] sm:$0xff]
    %v1711 = vld [vmem:[%s4 + $0xb0] sm:$0xff]
    %v1712 = vld [vmem:[%s4 + $0xb8] sm:$0xff]
    %v1713 = vld [vmem:[%s4 + $0xc0] sm:$0xff]
    %v1714 = vld [vmem:[%s4 + $0xc8] sm:$0xff]
    %v1715 = vld [vmem:[%s4 + $0xd0] sm:$0xff]
    %v1716 = vld [vmem:[%s4 + $0xd8] sm:$0xff]
    %v1717 = vld [vmem:[%s4 + $0xe0] sm:$0xff]
    %v1718 = vld [vmem:[%s4 + $0xe8] sm:$0xff]
    %v1719 = vld [vmem:[%s4 + $0xf0] sm:$0xff]
    %v1720 = vld [vmem:[%s4 + $0xf8] sm:$0xff]
    %v1753 = vunpack.c.l.b16 %v1689
    %v1754 = vunpack.c.h.b16 %v1689
    %v1755 = vunpack.c.l.b16 %v1690
    %v1756 = vunpack.c.h.b16 %v1690
    %v1757 = vunpack.c.l.b16 %v1691
    %v1758 = vunpack.c.h.b16 %v1691
    %v1759 = vunpack.c.l.b16 %v1692
    %v1760 = vunpack.c.h.b16 %v1692
    %v1761 = vunpack.c.l.b16 %v1693
    %v1762 = vunpack.c.h.b16 %v1693
    %v1763 = vunpack.c.l.b16 %v1694
    %v1764 = vunpack.c.h.b16 %v1694
    %v1765 = vunpack.c.l.b16 %v1695
    %v1766 = vunpack.c.h.b16 %v1695
    %v1767 = vunpack.c.l.b16 %v1696
    %v1768 = vunpack.c.h.b16 %v1696
    %v1769 = vunpack.c.l.b16 %v1697
    %v1770 = vunpack.c.h.b16 %v1697
    %v1771 = vunpack.c.l.b16 %v1698
    %v1772 = vunpack.c.h.b16 %v1698
    %v1773 = vunpack.c.l.b16 %v1699
    %v1774 = vunpack.c.h.b16 %v1699
    %v1775 = vunpack.c.l.b16 %v1700
    %v1776 = vunpack.c.h.b16 %v1700
    %v1777 = vunpack.c.l.b16 %v1701
    %v1778 = vunpack.c.h.b16 %v1701
    %v1779 = vunpack.c.l.b16 %v1702
    %v1780 = vunpack.c.h.b16 %v1702
    %v1781 = vunpack.c.l.b16 %v1703
    %v1782 = vunpack.c.h.b16 %v1703
    %v1783 = vunpack.c.l.b16 %v1704
    %v1784 = vunpack.c.h.b16 %v1704
    %v1785 = vunpack.c.l.b16 %v1705
    %v1786 = vunpack.c.h.b16 %v1705
    %v1787 = vunpack.c.l.b16 %v1706
    %v1788 = vunpack.c.h.b16 %v1706
    %v1789 = vunpack.c.l.b16 %v1707
    %v1790 = vunpack.c.h.b16 %v1707
    %v1791 = vunpack.c.l.b16 %v1708
    %v1792 = vunpack.c.h.b16 %v1708
    %v1793 = vunpack.c.l.b16 %v1709
    %v1794 = vunpack.c.h.b16 %v1709
    %v1795 = vunpack.c.l.b16 %v1710
    %v1796 = vunpack.c.h.b16 %v1710
    %v1797 = vunpack.c.l.b16 %v1711
    %v1798 = vunpack.c.h.b16 %v1711
    %v1799 = vunpack.c.l.b16 %v1712
    %v1800 = vunpack.c.h.b16 %v1712
    %v1801 = vunpack.c.l.b16 %v1713
    %v1802 = vunpack.c.h.b16 %v1713
    %v1803 = vunpack.c.l.b16 %v1714
    %v1804 = vunpack.c.h.b16 %v1714
    %v1805 = vunpack.c.l.b16 %v1715
    %v1806 = vunpack.c.h.b16 %v1715
    %v1807 = vunpack.c.l.b16 %v1716
    %v1808 = vunpack.c.h.b16 %v1716
    %v1809 = vunpack.c.l.b16 %v1717
    %v1810 = vunpack.c.h.b16 %v1717
    %v1811 = vunpack.c.l.b16 %v1718
    %v1812 = vunpack.c.h.b16 %v1718
    %v1813 = vunpack.c.l.b16 %v1719
    %v1814 = vunpack.c.h.b16 %v1719
    %v1815 = vunpack.c.l.b16 %v1720
    %v1816 = vunpack.c.h.b16 %v1720
    %v1817 = vpack.c.b16 %v1755, %v1753
    %v1818 = vpack.c.b16 %v1756, %v1754
    %v1819 = vpack.c.b16 %v1759, %v1757
    %v1820 = vpack.c.b16 %v1760, %v1758
    %v1821 = vpack.c.b16 %v1763, %v1761
    %v1822 = vpack.c.b16 %v1764, %v1762
    %v1823 = vpack.c.b16 %v1767, %v1765
    %v1824 = vpack.c.b16 %v1768, %v1766
    %v1825 = vpack.c.b16 %v1771, %v1769
    %v1826 = vpack.c.b16 %v1772, %v1770
    %v1827 = vpack.c.b16 %v1775, %v1773
    %v1828 = vpack.c.b16 %v1776, %v1774
    %v1829 = vpack.c.b16 %v1779, %v1777
    %v1830 = vpack.c.b16 %v1780, %v1778
    %v1831 = vpack.c.b16 %v1783, %v1781
    %v1832 = vpack.c.b16 %v1784, %v1782
    %v1833 = vpack.c.b16 %v1787, %v1785
    %v1834 = vpack.c.b16 %v1788, %v1786
    %v1835 = vpack.c.b16 %v1791, %v1789
    %v1836 = vpack.c.b16 %v1792, %v1790
    %v1837 = vpack.c.b16 %v1795, %v1793
    %v1838 = vpack.c.b16 %v1796, %v1794
    %v1839 = vpack.c.b16 %v1799, %v1797
    %v1840 = vpack.c.b16 %v1800, %v1798
    %v1841 = vpack.c.b16 %v1803, %v1801
    %v1842 = vpack.c.b16 %v1804, %v1802
    %v1843 = vpack.c.b16 %v1807, %v1805
    %v1844 = vpack.c.b16 %v1808, %v1806
    %v1845 = vpack.c.b16 %v1811, %v1809
    %v1846 = vpack.c.b16 %v1812, %v1810
    %v1847 = vpack.c.b16 %v1815, %v1813
    %v1848 = vpack.c.b16 %v1816, %v1814
    %1881 = vmatprep.subr.bf16.mxu0 %v1818
    %1882 = vmatpush1.bf16.msra.mxu0 %v1817
    %1883 = vmatprep.subr.bf16.mxu0 %v1820
    %1884 = vmatpush1.bf16.msra.mxu0 %v1819
    %1885 = vmatprep.subr.bf16.mxu0 %v1822
    %1886 = vmatpush1.bf16.msra.mxu0 %v1821
    %1887 = vmatprep.subr.bf16.mxu0 %v1824
    %1888 = vmatpush1.bf16.msra.mxu0 %v1823
    %1889 = vmatprep.subr.bf16.mxu0 %v1826
    %1890 = vmatpush1.bf16.msra.mxu0 %v1825
    %1891 = vmatprep.subr.bf16.mxu0 %v1828
    %1892 = vmatpush1.bf16.msra.mxu0 %v1827
    %1893 = vmatprep.subr.bf16.mxu0 %v1830
    %1894 = vmatpush1.bf16.msra.mxu0 %v1829
    %1895 = vmatprep.subr.bf16.mxu0 %v1832
    %1896 = vmatpush1.bf16.msra.mxu0 %v1831
    %1897 = vmatprep.subr.bf16.mxu0 %v1834
    %1898 = vmatpush1.bf16.msra.mxu0 %v1833
    %1899 = vmatprep.subr.bf16.mxu0 %v1836
    %1900 = vmatpush1.bf16.msra.mxu0 %v1835
    %1901 = vmatprep.subr.bf16.mxu0 %v1838
    %1902 = vmatpush1.bf16.msra.mxu0 %v1837
    %1903 = vmatprep.subr.bf16.mxu0 %v1840
    %1904 = vmatpush1.bf16.msra.mxu0 %v1839
    %1905 = vmatprep.subr.bf16.mxu0 %v1842
    %1906 = vmatpush1.bf16.msra.mxu0 %v1841
    %1907 = vmatprep.subr.bf16.mxu0 %v1844
    %1908 = vmatpush1.bf16.msra.mxu0 %v1843
    %1909 = vmatprep.subr.bf16.mxu0 %v1846
    %1910 = vmatpush1.bf16.msra.mxu0 %v1845
    %1911 = vmatprep.subr.bf16.mxu0 %v1848
    %1912 = vmatpush1.bf16.msra.mxu0 %v1847
    %1913 = vmatprep.mubr.bf16.mxu0 %v1688
    %1914 = vmatmul.mubr.bf16.gmra.mrb[0].mxu0 %v1687
    %v1915 = vpop.f32.mrb[0].mxu0
    %v1916 = vadd.f32 0.0, %v1915
    %v1917 = vpop.f32.mrb[0].mxu0
    %v1918 = vadd.f32 0.0, %v1917
    %v1919 = vpop.f32.mrb[0].mxu0
    %v1920 = vpop.f32.mrb[0].mxu0
    %1921 = vdwg.mxu0
    %v1922 = vxor.u32 %v1916, 2147483648
    %v1923 = vxor.u32 %v1918, 2147483648
    %v1924 = vmul.f32 %v1922, 1.442695
    %v1925 = vpow.pop %v1924
    %v1926 = vmul.f32 %v1923, 1.442695
    %v1927 = vpow.pop %v1926
    %v1928 = vadd.f32 %v1925, 1.0
    %v1929 = vadd.f32 %v1927, 1.0
    %v1930 = vrcp.pop %v1928
    %v1931 = vmul.f32 1.0, %v1930
    %v1932 = vrcp.pop %v1929
    %v1933 = vmul.f32 1.0, %v1932
    %v1936 = vrot.slane %v1931, 7
    %v1937 = vrot.slane %v1933, 7
    %v1940 = vsel %vm1429, %v1684, %v1936
    %v1941 = vsel %vm1429, %v1686, %v1937
    %1942 = vxpose.xlu0.b32.start [1/16] %v1940, 128
    %1943 = vxpose.xlu0.b32.cont [2/16] 0.0, 128
    %1944 = vxpose.xlu0.b32.cont [3/16] 0.0, 128
    %1945 = vxpose.xlu0.b32.cont [4/16] 0.0, 128
    %1946 = vxpose.xlu0.b32.cont [5/16] 0.0, 128
    %1947 = vxpose.xlu0.b32.cont [6/16] 0.0, 128
    %1948 = vxpose.xlu0.b32.cont [7/16] 0.0, 128
    %1949 = vxpose.xlu0.b32.cont [8/16] 0.0, 128
    %1950 = vxpose.xlu0.b32.cont [9/16] 0.0, 128
    %1951 = vxpose.xlu0.b32.cont [10/16] 0.0, 128
    %1952 = vxpose.xlu0.b32.cont [11/16] 0.0, 128
    %1953 = vxpose.xlu0.b32.cont [12/16] 0.0, 128
    %1954 = vxpose.xlu0.b32.cont [13/16] 0.0, 128
    %1955 = vxpose.xlu0.b32.cont [14/16] 0.0, 128
    %1956 = vxpose.xlu0.b32.cont [15/16] 0.0, 128
    %1957 = vxpose.xlu0.b32.end [16/16] 0.0, 128
    %v1958 = vpop.trf.xlu0
    %v1959 = vpop.trf.xlu0
    %v1960 = vpop.trf.xlu0
    %v1961 = vpop.trf.xlu0
    %v1962 = vpop.trf.xlu0
    %v1963 = vpop.trf.xlu0
    %v1964 = vpop.trf.xlu0
    %v1965 = vpop.trf.xlu0
    %v1966 = vpop.trf.xlu0
    %v1967 = vpop.trf.xlu0
    %v1968 = vpop.trf.xlu0
    %v1969 = vpop.trf.xlu0
    %v1970 = vpop.trf.xlu0
    %v1971 = vpop.trf.xlu0
    %v1972 = vpop.trf.xlu0
    %v1973 = vpop.trf.xlu0
    %1974 = vxpose.xlu0.b32.start [1/16] %v1941, 128
    %1975 = vxpose.xlu0.b32.cont [2/16] 0.0, 128
    %1976 = vxpose.xlu0.b32.cont [3/16] 0.0, 128
    %1977 = vxpose.xlu0.b32.cont [4/16] 0.0, 128
    %1978 = vxpose.xlu0.b32.cont [5/16] 0.0, 128
    %1979 = vxpose.xlu0.b32.cont [6/16] 0.0, 128
    %1980 = vxpose.xlu0.b32.cont [7/16] 0.0, 128
    %1981 = vxpose.xlu0.b32.cont [8/16] 0.0, 128
    %1982 = vxpose.xlu0.b32.cont [9/16] 0.0, 128
    %1983 = vxpose.xlu0.b32.cont [10/16] 0.0, 128
    %1984 = vxpose.xlu0.b32.cont [11/16] 0.0, 128
    %1985 = vxpose.xlu0.b32.cont [12/16] 0.0, 128
    %1986 = vxpose.xlu0.b32.cont [13/16] 0.0, 128
    %1987 = vxpose.xlu0.b32.cont [14/16] 0.0, 128
    %1988 = vxpose.xlu0.b32.cont [15/16] 0.0, 128
    %1989 = vxpose.xlu0.b32.end [16/16] 0.0, 128
    %v1990 = vpop.trf.xlu0
    %v1991 = vpop.trf.xlu0
    %v1992 = vpop.trf.xlu0
    %v1993 = vpop.trf.xlu0
    %v1994 = vpop.trf.xlu0
    %v1995 = vpop.trf.xlu0
    %v1996 = vpop.trf.xlu0
    %v1997 = vpop.trf.xlu0
    %v1998 = vpop.trf.xlu0
    %v1999 = vpop.trf.xlu0
    %v2000 = vpop.trf.xlu0
    %v2001 = vpop.trf.xlu0
    %v2002 = vpop.trf.xlu0
    %v2003 = vpop.trf.xlu0
    %v2004 = vpop.trf.xlu0
    %v2005 = vpop.trf.xlu0
    %2007 = vset.pattern.permute.xlu0 0
    %2008 = vperm.xlu0 %2007, %v1958
    %v2009 = vpop.permute.xlu0 %2008
    %2012 = vset.pattern.permute.xlu0 0
    %2013 = vperm.xlu0 %2012, %v1959
    %v2014 = vpop.permute.xlu0 %2013
    %2017 = vset.pattern.permute.xlu0 0
    %2018 = vperm.xlu0 %2017, %v1960
    %v2019 = vpop.permute.xlu0 %2018
    %2022 = vset.pattern.permute.xlu0 0
    %2023 = vperm.xlu0 %2022, %v1961
    %v2024 = vpop.permute.xlu0 %2023
    %2027 = vset.pattern.permute.xlu0 0
    %2028 = vperm.xlu0 %2027, %v1962
    %v2029 = vpop.permute.xlu0 %2028
    %2032 = vset.pattern.permute.xlu0 0
    %2033 = vperm.xlu0 %2032, %v1963
    %v2034 = vpop.permute.xlu0 %2033
    %2037 = vset.pattern.permute.xlu0 0
    %2038 = vperm.xlu0 %2037, %v1964
    %v2039 = vpop.permute.xlu0 %2038
    %2042 = vset.pattern.permute.xlu0 0
    %2043 = vperm.xlu0 %2042, %v1965
    %v2044 = vpop.permute.xlu0 %2043
    %2047 = vset.pattern.permute.xlu0 0
    %2048 = vperm.xlu0 %2047, %v1966
    %v2049 = vpop.permute.xlu0 %2048
    %2052 = vset.pattern.permute.xlu0 0
    %2053 = vperm.xlu0 %2052, %v1967
    %v2054 = vpop.permute.xlu0 %2053
    %2057 = vset.pattern.permute.xlu0 0
    %2058 = vperm.xlu0 %2057, %v1968
    %v2059 = vpop.permute.xlu0 %2058
    %2062 = vset.pattern.permute.xlu0 0
    %2063 = vperm.xlu0 %2062, %v1969
    %v2064 = vpop.permute.xlu0 %2063
    %2067 = vset.pattern.permute.xlu0 0
    %2068 = vperm.xlu0 %2067, %v1970
    %v2069 = vpop.permute.xlu0 %2068
    %2072 = vset.pattern.permute.xlu0 0
    %2073 = vperm.xlu0 %2072, %v1971
    %v2074 = vpop.permute.xlu0 %2073
    %2077 = vset.pattern.permute.xlu0 0
    %2078 = vperm.xlu0 %2077, %v1972
    %v2079 = vpop.permute.xlu0 %2078
    %2082 = vset.pattern.permute.xlu0 0
    %2083 = vperm.xlu0 %2082, %v1973
    %v2084 = vpop.permute.xlu0 %2083
    %2087 = vset.pattern.permute.xlu0 0
    %2088 = vperm.xlu0 %2087, %v1990
    %v2089 = vpop.permute.xlu0 %2088
    %2092 = vset.pattern.permute.xlu0 0
    %2093 = vperm.xlu0 %2092, %v1991
    %v2094 = vpop.permute.xlu0 %2093
    %2097 = vset.pattern.permute.xlu0 0
    %2098 = vperm.xlu0 %2097, %v1992
    %v2099 = vpop.permute.xlu0 %2098
    %2102 = vset.pattern.permute.xlu0 0
    %2103 = vperm.xlu0 %2102, %v1993
    %v2104 = vpop.permute.xlu0 %2103
    %2107 = vset.pattern.permute.xlu0 0
    %2108 = vperm.xlu0 %2107, %v1994
    %v2109 = vpop.permute.xlu0 %2108
    %2112 = vset.pattern.permute.xlu0 0
    %2113 = vperm.xlu0 %2112, %v1995
    %v2114 = vpop.permute.xlu0 %2113
    %2117 = vset.pattern.permute.xlu0 0
    %2118 = vperm.xlu0 %2117, %v1996
    %v2119 = vpop.permute.xlu0 %2118
    %2122 = vset.pattern.permute.xlu0 0
    %2123 = vperm.xlu0 %2122, %v1997
    %v2124 = vpop.permute.xlu0 %2123
    %2127 = vset.pattern.permute.xlu0 0
    %2128 = vperm.xlu0 %2127, %v1998
    %v2129 = vpop.permute.xlu0 %2128
    %2132 = vset.pattern.permute.xlu0 0
    %2133 = vperm.xlu0 %2132, %v1999
    %v2134 = vpop.permute.xlu0 %2133
    %2137 = vset.pattern.permute.xlu0 0
    %2138 = vperm.xlu0 %2137, %v2000
    %v2139 = vpop.permute.xlu0 %2138
    %2142 = vset.pattern.permute.xlu0 0
    %2143 = vperm.xlu0 %2142, %v2001
    %v2144 = vpop.permute.xlu0 %2143
    %2147 = vset.pattern.permute.xlu0 0
    %2148 = vperm.xlu0 %2147, %v2002
    %v2149 = vpop.permute.xlu0 %2148
    %2152 = vset.pattern.permute.xlu0 0
    %2153 = vperm.xlu0 %2152, %v2003
    %v2154 = vpop.permute.xlu0 %2153
    %2157 = vset.pattern.permute.xlu0 0
    %2158 = vperm.xlu0 %2157, %v2004
    %v2159 = vpop.permute.xlu0 %2158
    %2162 = vset.pattern.permute.xlu0 0
    %2163 = vperm.xlu0 %2162, %v2005
    %v2164 = vpop.permute.xlu0 %2163
    %2166 = vset.pattern.permute.xlu0 1
    %2167 = vperm.xlu0 %2166, %v1958
    %v2168 = vpop.permute.xlu0 %2167
    %2170 = vset.pattern.permute.xlu0 1
    %2171 = vperm.xlu0 %2170, %v1959
    %v2172 = vpop.permute.xlu0 %2171
    %2174 = vset.pattern.permute.xlu0 1
    %2175 = vperm.xlu0 %2174, %v1960
    %v2176 = vpop.permute.xlu0 %2175
    %2178 = vset.pattern.permute.xlu0 1
    %2179 = vperm.xlu0 %2178, %v1961
    %v2180 = vpop.permute.xlu0 %2179
    %2182 = vset.pattern.permute.xlu0 1
    %2183 = vperm.xlu0 %2182, %v1962
    %v2184 = vpop.permute.xlu0 %2183
    %2186 = vset.pattern.permute.xlu0 1
    %2187 = vperm.xlu0 %2186, %v1963
    %v2188 = vpop.permute.xlu0 %2187
    %2190 = vset.pattern.permute.xlu0 1
    %2191 = vperm.xlu0 %2190, %v1964
    %v2192 = vpop.permute.xlu0 %2191
    %2194 = vset.pattern.permute.xlu0 1
    %2195 = vperm.xlu0 %2194, %v1965
    %v2196 = vpop.permute.xlu0 %2195
    %2198 = vset.pattern.permute.xlu0 1
    %2199 = vperm.xlu0 %2198, %v1966
    %v2200 = vpop.permute.xlu0 %2199
    %2202 = vset.pattern.permute.xlu0 1
    %2203 = vperm.xlu0 %2202, %v1967
    %v2204 = vpop.permute.xlu0 %2203
    %2206 = vset.pattern.permute.xlu0 1
    %2207 = vperm.xlu0 %2206, %v1968
    %v2208 = vpop.permute.xlu0 %2207
    %2210 = vset.pattern.permute.xlu0 1
    %2211 = vperm.xlu0 %2210, %v1969
    %v2212 = vpop.permute.xlu0 %2211
    %2214 = vset.pattern.permute.xlu0 1
    %2215 = vperm.xlu0 %2214, %v1970
    %v2216 = vpop.permute.xlu0 %2215
    %2218 = vset.pattern.permute.xlu0 1
    %2219 = vperm.xlu0 %2218, %v1971
    %v2220 = vpop.permute.xlu0 %2219
    %2222 = vset.pattern.permute.xlu0 1
    %2223 = vperm.xlu0 %2222, %v1972
    %v2224 = vpop.permute.xlu0 %2223
    %2226 = vset.pattern.permute.xlu0 1
    %2227 = vperm.xlu0 %2226, %v1973
    %v2228 = vpop.permute.xlu0 %2227
    %2230 = vset.pattern.permute.xlu0 1
    %2231 = vperm.xlu0 %2230, %v1990
    %v2232 = vpop.permute.xlu0 %2231
    %2234 = vset.pattern.permute.xlu0 1
    %2235 = vperm.xlu0 %2234, %v1991
    %v2236 = vpop.permute.xlu0 %2235
    %2238 = vset.pattern.permute.xlu0 1
    %2239 = vperm.xlu0 %2238, %v1992
    %v2240 = vpop.permute.xlu0 %2239
    %2242 = vset.pattern.permute.xlu0 1
    %2243 = vperm.xlu0 %2242, %v1993
    %v2244 = vpop.permute.xlu0 %2243
    %2246 = vset.pattern.permute.xlu0 1
    %2247 = vperm.xlu0 %2246, %v1994
    %v2248 = vpop.permute.xlu0 %2247
    %2250 = vset.pattern.permute.xlu0 1
    %2251 = vperm.xlu0 %2250, %v1995
    %v2252 = vpop.permute.xlu0 %2251
    %2254 = vset.pattern.permute.xlu0 1
    %2255 = vperm.xlu0 %2254, %v1996
    %v2256 = vpop.permute.xlu0 %2255
    %2258 = vset.pattern.permute.xlu0 1
    %2259 = vperm.xlu0 %2258, %v1997
    %v2260 = vpop.permute.xlu0 %2259
    %2262 = vset.pattern.permute.xlu0 1
    %2263 = vperm.xlu0 %2262, %v1998
    %v2264 = vpop.permute.xlu0 %2263
    %2266 = vset.pattern.permute.xlu0 1
    %2267 = vperm.xlu0 %2266, %v1999
    %v2268 = vpop.permute.xlu0 %2267
    %2270 = vset.pattern.permute.xlu0 1
    %2271 = vperm.xlu0 %2270, %v2000
    %v2272 = vpop.permute.xlu0 %2271
    %2274 = vset.pattern.permute.xlu0 1
    %2275 = vperm.xlu0 %2274, %v2001
    %v2276 = vpop.permute.xlu0 %2275
    %2278 = vset.pattern.permute.xlu0 1
    %2279 = vperm.xlu0 %2278, %v2002
    %v2280 = vpop.permute.xlu0 %2279
    %2282 = vset.pattern.permute.xlu0 1
    %2283 = vperm.xlu0 %2282, %v2003
    %v2284 = vpop.permute.xlu0 %2283
    %2286 = vset.pattern.permute.xlu0 1
    %2287 = vperm.xlu0 %2286, %v2004
    %v2288 = vpop.permute.xlu0 %2287
    %2290 = vset.pattern.permute.xlu0 1
    %2291 = vperm.xlu0 %2290, %v2005
    %v2292 = vpop.permute.xlu0 %2291
    %v2294 = vsel %vm716, %v2009, %v2168
    %v2295 = vsel %vm716, %v2014, %v2172
    %v2296 = vsel %vm716, %v2019, %v2176
    %v2297 = vsel %vm716, %v2024, %v2180
    %v2298 = vsel %vm716, %v2029, %v2184
    %v2299 = vsel %vm716, %v2034, %v2188
    %v2300 = vsel %vm716, %v2039, %v2192
    %v2301 = vsel %vm716, %v2044, %v2196
    %v2302 = vsel %vm716, %v2049, %v2200
    %v2303 = vsel %vm716, %v2054, %v2204
    %v2304 = vsel %vm716, %v2059, %v2208
    %v2305 = vsel %vm716, %v2064, %v2212
    %v2306 = vsel %vm716, %v2069, %v2216
    %v2307 = vsel %vm716, %v2074, %v2220
    %v2308 = vsel %vm716, %v2079, %v2224
    %v2309 = vsel %vm716, %v2084, %v2228
    %v2310 = vsel %vm716, %v2089, %v2232
    %v2311 = vsel %vm716, %v2094, %v2236
    %v2312 = vsel %vm716, %v2099, %v2240
    %v2313 = vsel %vm716, %v2104, %v2244
    %v2314 = vsel %vm716, %v2109, %v2248
    %v2315 = vsel %vm716, %v2114, %v2252
    %v2316 = vsel %vm716, %v2119, %v2256
    %v2317 = vsel %vm716, %v2124, %v2260
    %v2318 = vsel %vm716, %v2129, %v2264
    %v2319 = vsel %vm716, %v2134, %v2268
    %v2320 = vsel %vm716, %v2139, %v2272
    %v2321 = vsel %vm716, %v2144, %v2276
    %v2322 = vsel %vm716, %v2149, %v2280
    %v2323 = vsel %vm716, %v2154, %v2284
    %v2324 = vsel %vm716, %v2159, %v2288
    %v2325 = vsel %vm716, %v2164, %v2292
    %v2326 = vadd.f32 %v2294, 1.0
    %v2327 = vadd.f32 %v2295, 1.0
    %v2328 = vadd.f32 %v2296, 1.0
    %v2329 = vadd.f32 %v2297, 1.0
    %v2330 = vadd.f32 %v2298, 1.0
    %v2331 = vadd.f32 %v2299, 1.0
    %v2332 = vadd.f32 %v2300, 1.0
    %v2333 = vadd.f32 %v2301, 1.0
    %v2334 = vadd.f32 %v2302, 1.0
    %v2335 = vadd.f32 %v2303, 1.0
    %v2336 = vadd.f32 %v2304, 1.0
    %v2337 = vadd.f32 %v2305, 1.0
    %v2338 = vadd.f32 %v2306, 1.0
    %v2339 = vadd.f32 %v2307, 1.0
    %v2340 = vadd.f32 %v2308, 1.0
    %v2341 = vadd.f32 %v2309, 1.0
    %v2342 = vadd.f32 %v2310, 1.0
    %v2343 = vadd.f32 %v2311, 1.0
    %v2344 = vadd.f32 %v2312, 1.0
    %v2345 = vadd.f32 %v2313, 1.0
    %v2346 = vadd.f32 %v2314, 1.0
    %v2347 = vadd.f32 %v2315, 1.0
    %v2348 = vadd.f32 %v2316, 1.0
    %v2349 = vadd.f32 %v2317, 1.0
    %v2350 = vadd.f32 %v2318, 1.0
    %v2351 = vadd.f32 %v2319, 1.0
    %v2352 = vadd.f32 %v2320, 1.0
    %v2353 = vadd.f32 %v2321, 1.0
    %v2354 = vadd.f32 %v2322, 1.0
    %v2355 = vadd.f32 %v2323, 1.0
    %v2356 = vadd.f32 %v2324, 1.0
    %v2357 = vadd.f32 %v2325, 1.0
    %v2358 = vmul.f32 %v650, %v2326
    %v2359 = vmul.f32 %v651, %v2327
    %v2360 = vmul.f32 %v652, %v2328
    %v2361 = vmul.f32 %v653, %v2329
    %v2362 = vmul.f32 %v654, %v2330
    %v2363 = vmul.f32 %v655, %v2331
    %v2364 = vmul.f32 %v656, %v2332
    %v2365 = vmul.f32 %v657, %v2333
    %v2366 = vmul.f32 %v658, %v2334
    %v2367 = vmul.f32 %v659, %v2335
    %v2368 = vmul.f32 %v660, %v2336
    %v2369 = vmul.f32 %v661, %v2337
    %v2370 = vmul.f32 %v662, %v2338
    %v2371 = vmul.f32 %v663, %v2339
    %v2372 = vmul.f32 %v664, %v2340
    %v2373 = vmul.f32 %v665, %v2341
    %v2374 = vmul.f32 %v666, %v2342
    %v2375 = vmul.f32 %v667, %v2343
    %v2376 = vmul.f32 %v668, %v2344
    %v2377 = vmul.f32 %v669, %v2345
    %v2378 = vmul.f32 %v670, %v2346
    %v2379 = vmul.f32 %v671, %v2347
    %v2380 = vmul.f32 %v672, %v2348
    %v2381 = vmul.f32 %v673, %v2349
    %v2382 = vmul.f32 %v674, %v2350
    %v2383 = vmul.f32 %v675, %v2351
    %v2384 = vmul.f32 %v676, %v2352
    %v2385 = vmul.f32 %v677, %v2353
    %v2386 = vmul.f32 %v678, %v2354
    %v2387 = vmul.f32 %v679, %v2355
    %v2388 = vmul.f32 %v680, %v2356
    %v2389 = vmul.f32 %v681, %v2357
    %v2390 = vpack.c.bf16 %v2359, %v2358
    %v2391 = vpack.c.bf16 %v2361, %v2360
    %v2392 = vpack.c.bf16 %v2363, %v2362
    %v2393 = vpack.c.bf16 %v2365, %v2364
    %v2394 = vpack.c.bf16 %v2367, %v2366
    %v2395 = vpack.c.bf16 %v2369, %v2368
    %v2396 = vpack.c.bf16 %v2371, %v2370
    %v2397 = vpack.c.bf16 %v2373, %v2372
    %v2398 = vpack.c.bf16 %v2375, %v2374
    %v2399 = vpack.c.bf16 %v2377, %v2376
    %v2400 = vpack.c.bf16 %v2379, %v2378
    %v2401 = vpack.c.bf16 %v2381, %v2380
    %v2402 = vpack.c.bf16 %v2383, %v2382
    %v2403 = vpack.c.bf16 %v2385, %v2384
    %v2404 = vpack.c.bf16 %v2387, %v2386
    %v2405 = vpack.c.bf16 %v2389, %v2388
    %v2408 = vrot.slane %v1684, 1
    %v2409 = vrot.slane %v1686, 1
    %v2412 = vsel %vm1429, %v2408, %v1931
    %v2413 = vsel %vm1429, %v2409, %v1933
    %2414 = vxpose.xlu0.b32.start [1/16] %v2412, 128
    %2415 = vxpose.xlu0.b32.cont [2/16] 0.0, 128
    %2416 = vxpose.xlu0.b32.cont [3/16] 0.0, 128
    %2417 = vxpose.xlu0.b32.cont [4/16] 0.0, 128
    %2418 = vxpose.xlu0.b32.cont [5/16] 0.0, 128
    %2419 = vxpose.xlu0.b32.cont [6/16] 0.0, 128
    %2420 = vxpose.xlu0.b32.cont [7/16] 0.0, 128
    %2421 = vxpose.xlu0.b32.cont [8/16] 0.0, 128
    %2422 = vxpose.xlu0.b32.cont [9/16] 0.0, 128
    %2423 = vxpose.xlu0.b32.cont [10/16] 0.0, 128
    %2424 = vxpose.xlu0.b32.cont [11/16] 0.0, 128
    %2425 = vxpose.xlu0.b32.cont [12/16] 0.0, 128
    %2426 = vxpose.xlu0.b32.cont [13/16] 0.0, 128
    %2427 = vxpose.xlu0.b32.cont [14/16] 0.0, 128
    %2428 = vxpose.xlu0.b32.cont [15/16] 0.0, 128
    %2429 = vxpose.xlu0.b32.end [16/16] 0.0, 128
    %v2430 = vpop.trf.xlu0
    %v2431 = vpop.trf.xlu0
    %v2432 = vpop.trf.xlu0
    %v2433 = vpop.trf.xlu0
    %v2434 = vpop.trf.xlu0
    %v2435 = vpop.trf.xlu0
    %v2436 = vpop.trf.xlu0
    %v2437 = vpop.trf.xlu0
    %v2438 = vpop.trf.xlu0
    %v2439 = vpop.trf.xlu0
    %v2440 = vpop.trf.xlu0
    %v2441 = vpop.trf.xlu0
    %v2442 = vpop.trf.xlu0
    %v2443 = vpop.trf.xlu0
    %v2444 = vpop.trf.xlu0
    %v2445 = vpop.trf.xlu0
    %2446 = vxpose.xlu0.b32.start [1/16] %v2413, 128
    %2447 = vxpose.xlu0.b32.cont [2/16] 0.0, 128
    %2448 = vxpose.xlu0.b32.cont [3/16] 0.0, 128
    %2449 = vxpose.xlu0.b32.cont [4/16] 0.0, 128
    %2450 = vxpose.xlu0.b32.cont [5/16] 0.0, 128
    %2451 = vxpose.xlu0.b32.cont [6/16] 0.0, 128
    %2452 = vxpose.xlu0.b32.cont [7/16] 0.0, 128
    %2453 = vxpose.xlu0.b32.cont [8/16] 0.0, 128
    %2454 = vxpose.xlu0.b32.cont [9/16] 0.0, 128
    %2455 = vxpose.xlu0.b32.cont [10/16] 0.0, 128
    %2456 = vxpose.xlu0.b32.cont [11/16] 0.0, 128
    %2457 = vxpose.xlu0.b32.cont [12/16] 0.0, 128
    %2458 = vxpose.xlu0.b32.cont [13/16] 0.0, 128
    %2459 = vxpose.xlu0.b32.cont [14/16] 0.0, 128
    %2460 = vxpose.xlu0.b32.cont [15/16] 0.0, 128
    %2461 = vxpose.xlu0.b32.end [16/16] 0.0, 128
    %v2462 = vpop.trf.xlu0
    %v2463 = vpop.trf.xlu0
    %v2464 = vpop.trf.xlu0
    %v2465 = vpop.trf.xlu0
    %v2466 = vpop.trf.xlu0
    %v2467 = vpop.trf.xlu0
    %v2468 = vpop.trf.xlu0
    %v2469 = vpop.trf.xlu0
    %v2470 = vpop.trf.xlu0
    %v2471 = vpop.trf.xlu0
    %v2472 = vpop.trf.xlu0
    %v2473 = vpop.trf.xlu0
    %v2474 = vpop.trf.xlu0
    %v2475 = vpop.trf.xlu0
    %v2476 = vpop.trf.xlu0
    %v2477 = vpop.trf.xlu0
    %2479 = vset.pattern.permute.xlu0 0
    %2480 = vperm.xlu0 %2479, %v2430
    %v2481 = vpop.permute.xlu0 %2480
    %2484 = vset.pattern.permute.xlu0 0
    %2485 = vperm.xlu0 %2484, %v2431
    %v2486 = vpop.permute.xlu0 %2485
    %2489 = vset.pattern.permute.xlu0 0
    %2490 = vperm.xlu0 %2489, %v2432
    %v2491 = vpop.permute.xlu0 %2490
    %2494 = vset.pattern.permute.xlu0 0
    %2495 = vperm.xlu0 %2494, %v2433
    %v2496 = vpop.permute.xlu0 %2495
    %2499 = vset.pattern.permute.xlu0 0
    %2500 = vperm.xlu0 %2499, %v2434
    %v2501 = vpop.permute.xlu0 %2500
    %2504 = vset.pattern.permute.xlu0 0
    %2505 = vperm.xlu0 %2504, %v2435
    %v2506 = vpop.permute.xlu0 %2505
    %2509 = vset.pattern.permute.xlu0 0
    %2510 = vperm.xlu0 %2509, %v2436
    %v2511 = vpop.permute.xlu0 %2510
    %2514 = vset.pattern.permute.xlu0 0
    %2515 = vperm.xlu0 %2514, %v2437
    %v2516 = vpop.permute.xlu0 %2515
    %2519 = vset.pattern.permute.xlu0 0
    %2520 = vperm.xlu0 %2519, %v2438
    %v2521 = vpop.permute.xlu0 %2520
    %2524 = vset.pattern.permute.xlu0 0
    %2525 = vperm.xlu0 %2524, %v2439
    %v2526 = vpop.permute.xlu0 %2525
    %2529 = vset.pattern.permute.xlu0 0
    %2530 = vperm.xlu0 %2529, %v2440
    %v2531 = vpop.permute.xlu0 %2530
    %2534 = vset.pattern.permute.xlu0 0
    %2535 = vperm.xlu0 %2534, %v2441
    %v2536 = vpop.permute.xlu0 %2535
    %2539 = vset.pattern.permute.xlu0 0
    %2540 = vperm.xlu0 %2539, %v2442
    %v2541 = vpop.permute.xlu0 %2540
    %2544 = vset.pattern.permute.xlu0 0
    %2545 = vperm.xlu0 %2544, %v2443
    %v2546 = vpop.permute.xlu0 %2545
    %2549 = vset.pattern.permute.xlu0 0
    %2550 = vperm.xlu0 %2549, %v2444
    %v2551 = vpop.permute.xlu0 %2550
    %2554 = vset.pattern.permute.xlu0 0
    %2555 = vperm.xlu0 %2554, %v2445
    %v2556 = vpop.permute.xlu0 %2555
    %2559 = vset.pattern.permute.xlu0 0
    %2560 = vperm.xlu0 %2559, %v2462
    %v2561 = vpop.permute.xlu0 %2560
    %2564 = vset.pattern.permute.xlu0 0
    %2565 = vperm.xlu0 %2564, %v2463
    %v2566 = vpop.permute.xlu0 %2565
    %2569 = vset.pattern.permute.xlu0 0
    %2570 = vperm.xlu0 %2569, %v2464
    %v2571 = vpop.permute.xlu0 %2570
    %2574 = vset.pattern.permute.xlu0 0
    %2575 = vperm.xlu0 %2574, %v2465
    %v2576 = vpop.permute.xlu0 %2575
    %2579 = vset.pattern.permute.xlu0 0
    %2580 = vperm.xlu0 %2579, %v2466
    %v2581 = vpop.permute.xlu0 %2580
    %2584 = vset.pattern.permute.xlu0 0
    %2585 = vperm.xlu0 %2584, %v2467
    %v2586 = vpop.permute.xlu0 %2585
    %2589 = vset.pattern.permute.xlu0 0
    %2590 = vperm.xlu0 %2589, %v2468
    %v2591 = vpop.permute.xlu0 %2590
    %2594 = vset.pattern.permute.xlu0 0
    %2595 = vperm.xlu0 %2594, %v2469
    %v2596 = vpop.permute.xlu0 %2595
    %2599 = vset.pattern.permute.xlu0 0
    %2600 = vperm.xlu0 %2599, %v2470
    %v2601 = vpop.permute.xlu0 %2600
    %2604 = vset.pattern.permute.xlu0 0
    %2605 = vperm.xlu0 %2604, %v2471
    %v2606 = vpop.permute.xlu0 %2605
    %2609 = vset.pattern.permute.xlu0 0
    %2610 = vperm.xlu0 %2609, %v2472
    %v2611 = vpop.permute.xlu0 %2610
    %2614 = vset.pattern.permute.xlu0 0
    %2615 = vperm.xlu0 %2614, %v2473
    %v2616 = vpop.permute.xlu0 %2615
    %2619 = vset.pattern.permute.xlu0 0
    %2620 = vperm.xlu0 %2619, %v2474
    %v2621 = vpop.permute.xlu0 %2620
    %2624 = vset.pattern.permute.xlu0 0
    %2625 = vperm.xlu0 %2624, %v2475
    %v2626 = vpop.permute.xlu0 %2625
    %2629 = vset.pattern.permute.xlu0 0
    %2630 = vperm.xlu0 %2629, %v2476
    %v2631 = vpop.permute.xlu0 %2630
    %2634 = vset.pattern.permute.xlu0 0
    %2635 = vperm.xlu0 %2634, %v2477
    %v2636 = vpop.permute.xlu0 %2635
    %2638 = vset.pattern.permute.xlu0 1
    %2639 = vperm.xlu0 %2638, %v2430
    %v2640 = vpop.permute.xlu0 %2639
    %2642 = vset.pattern.permute.xlu0 1
    %2643 = vperm.xlu0 %2642, %v2431
    %v2644 = vpop.permute.xlu0 %2643
    %2646 = vset.pattern.permute.xlu0 1
    %2647 = vperm.xlu0 %2646, %v2432
    %v2648 = vpop.permute.xlu0 %2647
    %2650 = vset.pattern.permute.xlu0 1
    %2651 = vperm.xlu0 %2650, %v2433
    %v2652 = vpop.permute.xlu0 %2651
    %2654 = vset.pattern.permute.xlu0 1
    %2655 = vperm.xlu0 %2654, %v2434
    %v2656 = vpop.permute.xlu0 %2655
    %2658 = vset.pattern.permute.xlu0 1
    %2659 = vperm.xlu0 %2658, %v2435
    %v2660 = vpop.permute.xlu0 %2659
    %2662 = vset.pattern.permute.xlu0 1
    %2663 = vperm.xlu0 %2662, %v2436
    %v2664 = vpop.permute.xlu0 %2663
    %2666 = vset.pattern.permute.xlu0 1
    %2667 = vperm.xlu0 %2666, %v2437
    %v2668 = vpop.permute.xlu0 %2667
    %2670 = vset.pattern.permute.xlu0 1
    %2671 = vperm.xlu0 %2670, %v2438
    %v2672 = vpop.permute.xlu0 %2671
    %2674 = vset.pattern.permute.xlu0 1
    %2675 = vperm.xlu0 %2674, %v2439
    %v2676 = vpop.permute.xlu0 %2675
    %2678 = vset.pattern.permute.xlu0 1
    %2679 = vperm.xlu0 %2678, %v2440
    %v2680 = vpop.permute.xlu0 %2679
    %2682 = vset.pattern.permute.xlu0 1
    %2683 = vperm.xlu0 %2682, %v2441
    %v2684 = vpop.permute.xlu0 %2683
    %2686 = vset.pattern.permute.xlu0 1
    %2687 = vperm.xlu0 %2686, %v2442
    %v2688 = vpop.permute.xlu0 %2687
    %2690 = vset.pattern.permute.xlu0 1
    %2691 = vperm.xlu0 %2690, %v2443
    %v2692 = vpop.permute.xlu0 %2691
    %2694 = vset.pattern.permute.xlu0 1
    %2695 = vperm.xlu0 %2694, %v2444
    %v2696 = vpop.permute.xlu0 %2695
    %2698 = vset.pattern.permute.xlu0 1
    %2699 = vperm.xlu0 %2698, %v2445
    %v2700 = vpop.permute.xlu0 %2699
    %2702 = vset.pattern.permute.xlu0 1
    %2703 = vperm.xlu0 %2702, %v2462
    %v2704 = vpop.permute.xlu0 %2703
    %2706 = vset.pattern.permute.xlu0 1
    %2707 = vperm.xlu0 %2706, %v2463
    %v2708 = vpop.permute.xlu0 %2707
    %2710 = vset.pattern.permute.xlu0 1
    %2711 = vperm.xlu0 %2710, %v2464
    %v2712 = vpop.permute.xlu0 %2711
    %2714 = vset.pattern.permute.xlu0 1
    %2715 = vperm.xlu0 %2714, %v2465
    %v2716 = vpop.permute.xlu0 %2715
    %2718 = vset.pattern.permute.xlu0 1
    %2719 = vperm.xlu0 %2718, %v2466
    %v2720 = vpop.permute.xlu0 %2719
    %2722 = vset.pattern.permute.xlu0 1
    %2723 = vperm.xlu0 %2722, %v2467
    %v2724 = vpop.permute.xlu0 %2723
    %2726 = vset.pattern.permute.xlu0 1
    %2727 = vperm.xlu0 %2726, %v2468
    %v2728 = vpop.permute.xlu0 %2727
    %2730 = vset.pattern.permute.xlu0 1
    %2731 = vperm.xlu0 %2730, %v2469
    %v2732 = vpop.permute.xlu0 %2731
    %2734 = vset.pattern.permute.xlu0 1
    %2735 = vperm.xlu0 %2734, %v2470
    %v2736 = vpop.permute.xlu0 %2735
    %2738 = vset.pattern.permute.xlu0 1
    %2739 = vperm.xlu0 %2738, %v2471
    %v2740 = vpop.permute.xlu0 %2739
    %2742 = vset.pattern.permute.xlu0 1
    %2743 = vperm.xlu0 %2742, %v2472
    %v2744 = vpop.permute.xlu0 %2743
    %2746 = vset.pattern.permute.xlu0 1
    %2747 = vperm.xlu0 %2746, %v2473
    %v2748 = vpop.permute.xlu0 %2747
    %2750 = vset.pattern.permute.xlu0 1
    %2751 = vperm.xlu0 %2750, %v2474
    %v2752 = vpop.permute.xlu0 %2751
    %2754 = vset.pattern.permute.xlu0 1
    %2755 = vperm.xlu0 %2754, %v2475
    %v2756 = vpop.permute.xlu0 %2755
    %2758 = vset.pattern.permute.xlu0 1
    %2759 = vperm.xlu0 %2758, %v2476
    %v2760 = vpop.permute.xlu0 %2759
    %2762 = vset.pattern.permute.xlu0 1
    %2763 = vperm.xlu0 %2762, %v2477
    %v2764 = vpop.permute.xlu0 %2763
    %v2766 = vsel %vm716, %v2481, %v2640
    %v2767 = vsel %vm716, %v2486, %v2644
    %v2768 = vsel %vm716, %v2491, %v2648
    %v2769 = vsel %vm716, %v2496, %v2652
    %v2770 = vsel %vm716, %v2501, %v2656
    %v2771 = vsel %vm716, %v2506, %v2660
    %v2772 = vsel %vm716, %v2511, %v2664
    %v2773 = vsel %vm716, %v2516, %v2668
    %v2774 = vsel %vm716, %v2521, %v2672
    %v2775 = vsel %vm716, %v2526, %v2676
    %v2776 = vsel %vm716, %v2531, %v2680
    %v2777 = vsel %vm716, %v2536, %v2684
    %v2778 = vsel %vm716, %v2541, %v2688
    %v2779 = vsel %vm716, %v2546, %v2692
    %v2780 = vsel %vm716, %v2551, %v2696
    %v2781 = vsel %vm716, %v2556, %v2700
    %v2782 = vsel %vm716, %v2561, %v2704
    %v2783 = vsel %vm716, %v2566, %v2708
    %v2784 = vsel %vm716, %v2571, %v2712
    %v2785 = vsel %vm716, %v2576, %v2716
    %v2786 = vsel %vm716, %v2581, %v2720
    %v2787 = vsel %vm716, %v2586, %v2724
    %v2788 = vsel %vm716, %v2591, %v2728
    %v2789 = vsel %vm716, %v2596, %v2732
    %v2790 = vsel %vm716, %v2601, %v2736
    %v2791 = vsel %vm716, %v2606, %v2740
    %v2792 = vsel %vm716, %v2611, %v2744
    %v2793 = vsel %vm716, %v2616, %v2748
    %v2794 = vsel %vm716, %v2621, %v2752
    %v2795 = vsel %vm716, %v2626, %v2756
    %v2796 = vsel %vm716, %v2631, %v2760
    %v2797 = vsel %vm716, %v2636, %v2764
    %v2798 = vadd.f32 %v2766, 1.0
    %v2799 = vadd.f32 %v2767, 1.0
    %v2800 = vadd.f32 %v2768, 1.0
    %v2801 = vadd.f32 %v2769, 1.0
    %v2802 = vadd.f32 %v2770, 1.0
    %v2803 = vadd.f32 %v2771, 1.0
    %v2804 = vadd.f32 %v2772, 1.0
    %v2805 = vadd.f32 %v2773, 1.0
    %v2806 = vadd.f32 %v2774, 1.0
    %v2807 = vadd.f32 %v2775, 1.0
    %v2808 = vadd.f32 %v2776, 1.0
    %v2809 = vadd.f32 %v2777, 1.0
    %v2810 = vadd.f32 %v2778, 1.0
    %v2811 = vadd.f32 %v2779, 1.0
    %v2812 = vadd.f32 %v2780, 1.0
    %v2813 = vadd.f32 %v2781, 1.0
    %v2814 = vadd.f32 %v2782, 1.0
    %v2815 = vadd.f32 %v2783, 1.0
    %v2816 = vadd.f32 %v2784, 1.0
    %v2817 = vadd.f32 %v2785, 1.0
    %v2818 = vadd.f32 %v2786, 1.0
    %v2819 = vadd.f32 %v2787, 1.0
    %v2820 = vadd.f32 %v2788, 1.0
    %v2821 = vadd.f32 %v2789, 1.0
    %v2822 = vadd.f32 %v2790, 1.0
    %v2823 = vadd.f32 %v2791, 1.0
    %v2824 = vadd.f32 %v2792, 1.0
    %v2825 = vadd.f32 %v2793, 1.0
    %v2826 = vadd.f32 %v2794, 1.0
    %v2827 = vadd.f32 %v2795, 1.0
    %v2828 = vadd.f32 %v2796, 1.0
    %v2829 = vadd.f32 %v2797, 1.0
    %v2830 = vmul.f32 %v682, %v2798
    %v2831 = vmul.f32 %v683, %v2799
    %v2832 = vmul.f32 %v684, %v2800
    %v2833 = vmul.f32 %v685, %v2801
    %v2834 = vmul.f32 %v686, %v2802
    %v2835 = vmul.f32 %v687, %v2803
    %v2836 = vmul.f32 %v688, %v2804
    %v2837 = vmul.f32 %v689, %v2805
    %v2838 = vmul.f32 %v690, %v2806
    %v2839 = vmul.f32 %v691, %v2807
    %v2840 = vmul.f32 %v692, %v2808
    %v2841 = vmul.f32 %v693, %v2809
    %v2842 = vmul.f32 %v694, %v2810
    %v2843 = vmul.f32 %v695, %v2811
    %v2844 = vmul.f32 %v696, %v2812
    %v2845 = vmul.f32 %v697, %v2813
    %v2846 = vmul.f32 %v698, %v2814
    %v2847 = vmul.f32 %v699, %v2815
    %v2848 = vmul.f32 %v700, %v2816
    %v2849 = vmul.f32 %v701, %v2817
    %v2850 = vmul.f32 %v702, %v2818
    %v2851 = vmul.f32 %v703, %v2819
    %v2852 = vmul.f32 %v704, %v2820
    %v2853 = vmul.f32 %v705, %v2821
    %v2854 = vmul.f32 %v706, %v2822
    %v2855 = vmul.f32 %v707, %v2823
    %v2856 = vmul.f32 %v708, %v2824
    %v2857 = vmul.f32 %v709, %v2825
    %v2858 = vmul.f32 %v710, %v2826
    %v2859 = vmul.f32 %v711, %v2827
    %v2860 = vmul.f32 %v712, %v2828
    %v2861 = vmul.f32 %v713, %v2829
    %v2862 = vpack.c.bf16 %v2831, %v2830
    %v2863 = vpack.c.bf16 %v2833, %v2832
    %v2864 = vpack.c.bf16 %v2835, %v2834
    %v2865 = vpack.c.bf16 %v2837, %v2836
    %v2866 = vpack.c.bf16 %v2839, %v2838
    %v2867 = vpack.c.bf16 %v2841, %v2840
    %v2868 = vpack.c.bf16 %v2843, %v2842
    %v2869 = vpack.c.bf16 %v2845, %v2844
    %v2870 = vpack.c.bf16 %v2847, %v2846
    %v2871 = vpack.c.bf16 %v2849, %v2848
    %v2872 = vpack.c.bf16 %v2851, %v2850
    %v2873 = vpack.c.bf16 %v2853, %v2852
    %v2874 = vpack.c.bf16 %v2855, %v2854
    %v2875 = vpack.c.bf16 %v2857, %v2856
    %v2876 = vpack.c.bf16 %v2859, %v2858
    %v2877 = vpack.c.bf16 %v2861, %v2860
    %v2878 = vld [vmem:[%s5] sm:$0xf]
    %v2879 = vld [vmem:[%s5 + $0x4] sm:$0xf]
    %v2880 = vld [vmem:[%s5 + $0x8] sm:$0xf]
    %v2881 = vld [vmem:[%s5 + $0xc] sm:$0xf]
    %v2882 = vld [vmem:[%s6] sm:$0x1]
    %v2884 = vlaneseq
    %v2885 = vshrl.u32 %v2884, 7
    %v2886 = vsub.s32 0, %v2885
    %v2887 = vrot.slane %v2882, %v2886
    %v2893 = vunpack.c.l.b16 %v2878
    %v2894 = vunpack.c.l.b16 %v2879
    %v2895 = vunpack.c.l.b16 %v2880
    %v2896 = vunpack.c.l.b16 %v2881
    %v2897 = vpack.c.b16 %v2894, %v2893
    %v2898 = vpack.c.b16 %v2896, %v2895
    %v2902 = vsel %vm781, %v2390, 0
    %v2905 = vsel %vm781, %v2391, 0
    %v2908 = vsel %vm781, %v2392, 0
    %v2911 = vsel %vm781, %v2393, 0
    %v2914 = vsel %vm781, %v2394, 0
    %v2917 = vsel %vm781, %v2395, 0
    %v2920 = vsel %vm781, %v2396, 0
    %v2923 = vsel %vm781, %v2397, 0
    %v2926 = vsel %vm781, %v2398, 0
    %v2929 = vsel %vm781, %v2399, 0
    %v2932 = vsel %vm781, %v2400, 0
    %v2935 = vsel %vm781, %v2401, 0
    %v2938 = vsel %vm781, %v2402, 0
    %v2941 = vsel %vm781, %v2403, 0
    %v2944 = vsel %vm781, %v2404, 0
    %v2947 = vsel %vm781, %v2405, 0
    %v2950 = vsel %vm781, %v2862, 0
    %v2953 = vsel %vm781, %v2863, 0
    %v2956 = vsel %vm781, %v2864, 0
    %v2959 = vsel %vm781, %v2865, 0
    %v2962 = vsel %vm781, %v2866, 0
    %v2965 = vsel %vm781, %v2867, 0
    %v2968 = vsel %vm781, %v2868, 0
    %v2971 = vsel %vm781, %v2869, 0
    %v2974 = vsel %vm781, %v2870, 0
    %v2977 = vsel %vm781, %v2871, 0
    %v2980 = vsel %vm781, %v2872, 0
    %v2983 = vsel %vm781, %v2873, 0
    %v2986 = vsel %vm781, %v2874, 0
    %v2989 = vsel %vm781, %v2875, 0
    %v2992 = vsel %vm781, %v2876, 0
    %v2995 = vsel %vm781, %v2877, 0
    %2997 = vmatprep.subr.bf16.mxu0 0
    %2998 = vmatpush1.bf16.msra.mxu0 %v2897
    %2999 = vmatprep.subr.bf16.mxu0 0
    %3000 = vmatpush1.bf16.msra.mxu0 %v2898
    %3001 = vmatprep.subr.bf16.mxu0 0
    %3002 = vmatpush1.bf16.msra.mxu0 0
    %3003 = vmatprep.subr.bf16.mxu0 0
    %3004 = vmatpush1.bf16.msra.mxu0 0
    %3005 = vmatprep.subr.bf16.mxu0 0
    %3006 = vmatpush1.bf16.msra.mxu0 0
    %3007 = vmatprep.subr.bf16.mxu0 0
    %3008 = vmatpush1.bf16.msra.mxu0 0
    %3009 = vmatprep.subr.bf16.mxu0 0
    %3010 = vmatpush1.bf16.msra.mxu0 0
    %3011 = vmatprep.subr.bf16.mxu0 0
    %3012 = vmatpush1.bf16.msra.mxu0 0
    %3013 = vmatprep.subr.bf16.mxu0 0
    %3014 = vmatpush1.bf16.msra.mxu0 0
    %3015 = vmatprep.subr.bf16.mxu0 0
    %3016 = vmatpush1.bf16.msra.mxu0 0
    %3017 = vmatprep.subr.bf16.mxu0 0
    %3018 = vmatpush1.bf16.msra.mxu0 0
    %3019 = vmatprep.subr.bf16.mxu0 0
    %3020 = vmatpush1.bf16.msra.mxu0 0
    %3021 = vmatprep.subr.bf16.mxu0 0
    %3022 = vmatpush1.bf16.msra.mxu0 0
    %3023 = vmatprep.subr.bf16.mxu0 0
    %3024 = vmatpush1.bf16.msra.mxu0 0
    %3025 = vmatprep.subr.bf16.mxu0 0
    %3026 = vmatpush1.bf16.msra.mxu0 0
    %3027 = vmatprep.subr.bf16.mxu0 0
    %3028 = vmatpush1.bf16.msra.mxu0 0
    %3029 = vmatprep.mubr.bf16.mxu0 0
    %3030 = vmatmul.mubr.bf16.gmra.mrb[0].mxu0 %v2902
    %v3031 = vpop.f32.mrb[0].mxu0
    %v3032 = vadd.f32 %v2887, %v3031
    %v3033 = vpop.f32.mrb[0].mxu0
    %v3034 = vpop.f32.mrb[0].mxu0
    %v3035 = vadd.f32 %v2887, %v3034
    %v3036 = vpop.f32.mrb[0].mxu0
    %3037 = vmatprep.mubr.bf16.mxu0 0
    %3038 = vmatmul.mubr.bf16.gmra.mrb[0].mxu0 %v2905
    %v3039 = vpop.f32.mrb[0].mxu0
    %v3040 = vadd.f32 %v2887, %v3039
    %v3041 = vpop.f32.mrb[0].mxu0
    %v3042 = vpop.f32.mrb[0].mxu0
    %v3043 = vadd.f32 %v2887, %v3042
    %v3044 = vpop.f32.mrb[0].mxu0
    %3045 = vmatprep.mubr.bf16.mxu0 0
    %3046 = vmatmul.mubr.bf16.gmra.mrb[0].mxu0 %v2908
    %v3047 = vpop.f32.mrb[0].mxu0
    %v3048 = vadd.f32 %v2887, %v3047
    %v3049 = vpop.f32.mrb[0].mxu0
    %v3050 = vpop.f32.mrb[0].mxu0
    %v3051 = vadd.f32 %v2887, %v3050
    %v3052 = vpop.f32.mrb[0].mxu0
    %3053 = vmatprep.mubr.bf16.mxu0 0
    %3054 = vmatmul.mubr.bf16.gmra.mrb[0].mxu0 %v2911
    %v3055 = vpop.f32.mrb[0].mxu0
    %v3056 = vadd.f32 %v2887, %v3055
    %v3057 = vpop.f32.mrb[0].mxu0
    %v3058 = vpop.f32.mrb[0].mxu0
    %v3059 = vadd.f32 %v2887, %v3058
    %v3060 = vpop.f32.mrb[0].mxu0
    %3061 = vmatprep.mubr.bf16.mxu0 0
    %3062 = vmatmul.mubr.bf16.gmra.mrb[0].mxu0 %v2914
    %v3063 = vpop.f32.mrb[0].mxu0
    %v3064 = vadd.f32 %v2887, %v3063
    %v3065 = vpop.f32.mrb[0].mxu0
    %v3066 = vpop.f32.mrb[0].mxu0
    %v3067 = vadd.f32 %v2887, %v3066
    %v3068 = vpop.f32.mrb[0].mxu0
    %3069 = vmatprep.mubr.bf16.mxu0 0
    %3070 = vmatmul.mubr.bf16.gmra.mrb[0].mxu0 %v2917
    %v3071 = vpop.f32.mrb[0].mxu0
    %v3072 = vadd.f32 %v2887, %v3071
    %v3073 = vpop.f32.mrb[0].mxu0
    %v3074 = vpop.f32.mrb[0].mxu0
    %v3075 = vadd.f32 %v2887, %v3074
    %v3076 = vpop.f32.mrb[0].mxu0
    %3077 = vmatprep.mubr.bf16.mxu0 0
    %3078 = vmatmul.mubr.bf16.gmra.mrb[0].mxu0 %v2920
    %v3079 = vpop.f32.mrb[0].mxu0
    %v3080 = vadd.f32 %v2887, %v3079
    %v3081 = vpop.f32.mrb[0].mxu0
    %v3082 = vpop.f32.mrb[0].mxu0
    %v3083 = vadd.f32 %v2887, %v3082
    %v3084 = vpop.f32.mrb[0].mxu0
    %3085 = vmatprep.mubr.bf16.mxu0 0
    %3086 = vmatmul.mubr.bf16.gmra.mrb[0].mxu0 %v2923
    %v3087 = vpop.f32.mrb[0].mxu0
    %v3088 = vadd.f32 %v2887, %v3087
    %v3089 = vpop.f32.mrb[0].mxu0
    %v3090 = vpop.f32.mrb[0].mxu0
    %v3091 = vadd.f32 %v2887, %v3090
    %v3092 = vpop.f32.mrb[0].mxu0
    %3093 = vmatprep.mubr.bf16.mxu0 0
    %3094 = vmatmul.mubr.bf16.gmra.mrb[0].mxu0 %v2926
    %v3095 = vpop.f32.mrb[0].mxu0
    %v3096 = vadd.f32 %v2887, %v3095
    %v3097 = vpop.f32.mrb[0].mxu0
    %v3098 = vpop.f32.mrb[0].mxu0
    %v3099 = vadd.f32 %v2887, %v3098
    %v3100 = vpop.f32.mrb[0].mxu0
    %3101 = vmatprep.mubr.bf16.mxu0 0
    %3102 = vmatmul.mubr.bf16.gmra.mrb[0].mxu0 %v2929
    %v3103 = vpop.f32.mrb[0].mxu0
    %v3104 = vadd.f32 %v2887, %v3103
    %v3105 = vpop.f32.mrb[0].mxu0
    %v3106 = vpop.f32.mrb[0].mxu0
    %v3107 = vadd.f32 %v2887, %v3106
    %v3108 = vpop.f32.mrb[0].mxu0
    %3109 = vmatprep.mubr.bf16.mxu0 0
    %3110 = vmatmul.mubr.bf16.gmra.mrb[0].mxu0 %v2932
    %v3111 = vpop.f32.mrb[0].mxu0
    %v3112 = vadd.f32 %v2887, %v3111
    %v3113 = vpop.f32.mrb[0].mxu0
    %v3114 = vpop.f32.mrb[0].mxu0
    %v3115 = vadd.f32 %v2887, %v3114
    %v3116 = vpop.f32.mrb[0].mxu0
    %3117 = vmatprep.mubr.bf16.mxu0 0
    %3118 = vmatmul.mubr.bf16.gmra.mrb[0].mxu0 %v2935
    %v3119 = vpop.f32.mrb[0].mxu0
    %v3120 = vadd.f32 %v2887, %v3119
    %v3121 = vpop.f32.mrb[0].mxu0
    %v3122 = vpop.f32.mrb[0].mxu0
    %v3123 = vadd.f32 %v2887, %v3122
    %v3124 = vpop.f32.mrb[0].mxu0
    %3125 = vmatprep.mubr.bf16.mxu0 0
    %3126 = vmatmul.mubr.bf16.gmra.mrb[0].mxu0 %v2938
    %v3127 = vpop.f32.mrb[0].mxu0
    %v3128 = vadd.f32 %v2887, %v3127
    %v3129 = vpop.f32.mrb[0].mxu0
    %v3130 = vpop.f32.mrb[0].mxu0
    %v3131 = vadd.f32 %v2887, %v3130
    %v3132 = vpop.f32.mrb[0].mxu0
    %3133 = vmatprep.mubr.bf16.mxu0 0
    %3134 = vmatmul.mubr.bf16.gmra.mrb[0].mxu0 %v2941
    %v3135 = vpop.f32.mrb[0].mxu0
    %v3136 = vadd.f32 %v2887, %v3135
    %v3137 = vpop.f32.mrb[0].mxu0
    %v3138 = vpop.f32.mrb[0].mxu0
    %v3139 = vadd.f32 %v2887, %v3138
    %v3140 = vpop.f32.mrb[0].mxu0
    %3141 = vmatprep.mubr.bf16.mxu0 0
    %3142 = vmatmul.mubr.bf16.gmra.mrb[0].mxu0 %v2944
    %v3143 = vpop.f32.mrb[0].mxu0
    %v3144 = vadd.f32 %v2887, %v3143
    %v3145 = vpop.f32.mrb[0].mxu0
    %v3146 = vpop.f32.mrb[0].mxu0
    %v3147 = vadd.f32 %v2887, %v3146
    %v3148 = vpop.f32.mrb[0].mxu0
    %3149 = vmatprep.mubr.bf16.mxu0 0
    %3150 = vmatmul.mubr.bf16.gmra.mrb[0].mxu0 %v2947
    %v3151 = vpop.f32.mrb[0].mxu0
    %v3152 = vadd.f32 %v2887, %v3151
    %v3153 = vpop.f32.mrb[0].mxu0
    %v3154 = vpop.f32.mrb[0].mxu0
    %v3155 = vadd.f32 %v2887, %v3154
    %v3156 = vpop.f32.mrb[0].mxu0
    %3157 = vmatprep.mubr.bf16.mxu0 0
    %3158 = vmatmul.mubr.bf16.gmra.mrb[0].mxu0 %v2950
    %v3159 = vpop.f32.mrb[0].mxu0
    %v3160 = vadd.f32 %v2887, %v3159
    %v3161 = vpop.f32.mrb[0].mxu0
    %v3162 = vpop.f32.mrb[0].mxu0
    %v3163 = vadd.f32 %v2887, %v3162
    %v3164 = vpop.f32.mrb[0].mxu0
    %3165 = vmatprep.mubr.bf16.mxu0 0
    %3166 = vmatmul.mubr.bf16.gmra.mrb[0].mxu0 %v2953
    %v3167 = vpop.f32.mrb[0].mxu0
    %v3168 = vadd.f32 %v2887, %v3167
    %v3169 = vpop.f32.mrb[0].mxu0
    %v3170 = vpop.f32.mrb[0].mxu0
    %v3171 = vadd.f32 %v2887, %v3170
    %v3172 = vpop.f32.mrb[0].mxu0
    %3173 = vmatprep.mubr.bf16.mxu0 0
    %3174 = vmatmul.mubr.bf16.gmra.mrb[0].mxu0 %v2956
    %v3175 = vpop.f32.mrb[0].mxu0
    %v3176 = vadd.f32 %v2887, %v3175
    %v3177 = vpop.f32.mrb[0].mxu0
    %v3178 = vpop.f32.mrb[0].mxu0
    %v3179 = vadd.f32 %v2887, %v3178
    %v3180 = vpop.f32.mrb[0].mxu0
    %3181 = vmatprep.mubr.bf16.mxu0 0
    %3182 = vmatmul.mubr.bf16.gmra.mrb[0].mxu0 %v2959
    %v3183 = vpop.f32.mrb[0].mxu0
    %v3184 = vadd.f32 %v2887, %v3183
    %v3185 = vpop.f32.mrb[0].mxu0
    %v3186 = vpop.f32.mrb[0].mxu0
    %v3187 = vadd.f32 %v2887, %v3186
    %v3188 = vpop.f32.mrb[0].mxu0
    %3189 = vmatprep.mubr.bf16.mxu0 0
    %3190 = vmatmul.mubr.bf16.gmra.mrb[0].mxu0 %v2962
    %v3191 = vpop.f32.mrb[0].mxu0
    %v3192 = vadd.f32 %v2887, %v3191
    %v3193 = vpop.f32.mrb[0].mxu0
    %v3194 = vpop.f32.mrb[0].mxu0
    %v3195 = vadd.f32 %v2887, %v3194
    %v3196 = vpop.f32.mrb[0].mxu0
    %3197 = vmatprep.mubr.bf16.mxu0 0
    %3198 = vmatmul.mubr.bf16.gmra.mrb[0].mxu0 %v2965
    %v3199 = vpop.f32.mrb[0].mxu0
    %v3200 = vadd.f32 %v2887, %v3199
    %v3201 = vpop.f32.mrb[0].mxu0
    %v3202 = vpop.f32.mrb[0].mxu0
    %v3203 = vadd.f32 %v2887, %v3202
    %v3204 = vpop.f32.mrb[0].mxu0
    %3205 = vmatprep.mubr.bf16.mxu0 0
    %3206 = vmatmul.mubr.bf16.gmra.mrb[0].mxu0 %v2968
    %v3207 = vpop.f32.mrb[0].mxu0
    %v3208 = vadd.f32 %v2887, %v3207
    %v3209 = vpop.f32.mrb[0].mxu0
    %v3210 = vpop.f32.mrb[0].mxu0
    %v3211 = vadd.f32 %v2887, %v3210
    %v3212 = vpop.f32.mrb[0].mxu0
    %3213 = vmatprep.mubr.bf16.mxu0 0
    %3214 = vmatmul.mubr.bf16.gmra.mrb[0].mxu0 %v2971
    %v3215 = vpop.f32.mrb[0].mxu0
    %v3216 = vadd.f32 %v2887, %v3215
    %v3217 = vpop.f32.mrb[0].mxu0
    %v3218 = vpop.f32.mrb[0].mxu0
    %v3219 = vadd.f32 %v2887, %v3218
    %v3220 = vpop.f32.mrb[0].mxu0
    %3221 = vmatprep.mubr.bf16.mxu0 0
    %3222 = vmatmul.mubr.bf16.gmra.mrb[0].mxu0 %v2974
    %v3223 = vpop.f32.mrb[0].mxu0
    %v3224 = vadd.f32 %v2887, %v3223
    %v3225 = vpop.f32.mrb[0].mxu0
    %v3226 = vpop.f32.mrb[0].mxu0
    %v3227 = vadd.f32 %v2887, %v3226
    %v3228 = vpop.f32.mrb[0].mxu0
    %3229 = vmatprep.mubr.bf16.mxu0 0
    %3230 = vmatmul.mubr.bf16.gmra.mrb[0].mxu0 %v2977
    %v3231 = vpop.f32.mrb[0].mxu0
    %v3232 = vadd.f32 %v2887, %v3231
    %v3233 = vpop.f32.mrb[0].mxu0
    %v3234 = vpop.f32.mrb[0].mxu0
    %v3235 = vadd.f32 %v2887, %v3234
    %v3236 = vpop.f32.mrb[0].mxu0
    %3237 = vmatprep.mubr.bf16.mxu0 0
    %3238 = vmatmul.mubr.bf16.gmra.mrb[0].mxu0 %v2980
    %v3239 = vpop.f32.mrb[0].mxu0
    %v3240 = vadd.f32 %v2887, %v3239
    %v3241 = vpop.f32.mrb[0].mxu0
    %v3242 = vpop.f32.mrb[0].mxu0
    %v3243 = vadd.f32 %v2887, %v3242
    %v3244 = vpop.f32.mrb[0].mxu0
    %3245 = vmatprep.mubr.bf16.mxu0 0
    %3246 = vmatmul.mubr.bf16.gmra.mrb[0].mxu0 %v2983
    %v3247 = vpop.f32.mrb[0].mxu0
    %v3248 = vadd.f32 %v2887, %v3247
    %v3249 = vpop.f32.mrb[0].mxu0
    %v3250 = vpop.f32.mrb[0].mxu0
    %v3251 = vadd.f32 %v2887, %v3250
    %v3252 = vpop.f32.mrb[0].mxu0
    %3253 = vmatprep.mubr.bf16.mxu0 0
    %3254 = vmatmul.mubr.bf16.gmra.mrb[0].mxu0 %v2986
    %v3255 = vpop.f32.mrb[0].mxu0
    %v3256 = vadd.f32 %v2887, %v3255
    %v3257 = vpop.f32.mrb[0].mxu0
    %v3258 = vpop.f32.mrb[0].mxu0
    %v3259 = vadd.f32 %v2887, %v3258
    %v3260 = vpop.f32.mrb[0].mxu0
    %3261 = vmatprep.mubr.bf16.mxu0 0
    %3262 = vmatmul.mubr.bf16.gmra.mrb[0].mxu0 %v2989
    %v3263 = vpop.f32.mrb[0].mxu0
    %v3264 = vadd.f32 %v2887, %v3263
    %v3265 = vpop.f32.mrb[0].mxu0
    %v3266 = vpop.f32.mrb[0].mxu0
    %v3267 = vadd.f32 %v2887, %v3266
    %v3268 = vpop.f32.mrb[0].mxu0
    %3269 = vmatprep.mubr.bf16.mxu0 0
    %3270 = vmatmul.mubr.bf16.gmra.mrb[0].mxu0 %v2992
    %v3271 = vpop.f32.mrb[0].mxu0
    %v3272 = vadd.f32 %v2887, %v3271
    %v3273 = vpop.f32.mrb[0].mxu0
    %v3274 = vpop.f32.mrb[0].mxu0
    %v3275 = vadd.f32 %v2887, %v3274
    %v3276 = vpop.f32.mrb[0].mxu0
    %3277 = vmatprep.mubr.bf16.mxu0 0
    %3278 = vmatmul.mubr.bf16.gmra.mrb[0].mxu0 %v2995
    %v3279 = vpop.f32.mrb[0].mxu0
    %v3280 = vadd.f32 %v2887, %v3279
    %v3281 = vpop.f32.mrb[0].mxu0
    %v3282 = vpop.f32.mrb[0].mxu0
    %v3283 = vadd.f32 %v2887, %v3282
    %v3284 = vpop.f32.mrb[0].mxu0
    %3285 = vdwg.mxu0
    %v3286 = vmax.f32 %v3032, 0.0
    %v3287 = vmax.f32 %v3035, 0.0
    %v3288 = vmax.f32 %v3040, 0.0
    %v3289 = vmax.f32 %v3043, 0.0
    %v3290 = vmax.f32 %v3048, 0.0
    %v3291 = vmax.f32 %v3051, 0.0
    %v3292 = vmax.f32 %v3056, 0.0
    %v3293 = vmax.f32 %v3059, 0.0
    %v3294 = vmax.f32 %v3064, 0.0
    %v3295 = vmax.f32 %v3067, 0.0
    %v3296 = vmax.f32 %v3072, 0.0
    %v3297 = vmax.f32 %v3075, 0.0
    %v3298 = vmax.f32 %v3080, 0.0
    %v3299 = vmax.f32 %v3083, 0.0
    %v3300 = vmax.f32 %v3088, 0.0
    %v3301 = vmax.f32 %v3091, 0.0
    %v3302 = vmax.f32 %v3096, 0.0
    %v3303 = vmax.f32 %v3099, 0.0
    %v3304 = vmax.f32 %v3104, 0.0
    %v3305 = vmax.f32 %v3107, 0.0
    %v3306 = vmax.f32 %v3112, 0.0
    %v3307 = vmax.f32 %v3115, 0.0
    %v3308 = vmax.f32 %v3120, 0.0
    %v3309 = vmax.f32 %v3123, 0.0
    %v3310 = vmax.f32 %v3128, 0.0
    %v3311 = vmax.f32 %v3131, 0.0
    %v3312 = vmax.f32 %v3136, 0.0
    %v3313 = vmax.f32 %v3139, 0.0
    %v3314 = vmax.f32 %v3144, 0.0
    %v3315 = vmax.f32 %v3147, 0.0
    %v3316 = vmax.f32 %v3152, 0.0
    %v3317 = vmax.f32 %v3155, 0.0
    %v3318 = vmax.f32 %v3160, 0.0
    %v3319 = vmax.f32 %v3163, 0.0
    %v3320 = vmax.f32 %v3168, 0.0
    %v3321 = vmax.f32 %v3171, 0.0
    %v3322 = vmax.f32 %v3176, 0.0
    %v3323 = vmax.f32 %v3179, 0.0
    %v3324 = vmax.f32 %v3184, 0.0
    %v3325 = vmax.f32 %v3187, 0.0
    %v3326 = vmax.f32 %v3192, 0.0
    %v3327 = vmax.f32 %v3195, 0.0
    %v3328 = vmax.f32 %v3200, 0.0
    %v3329 = vmax.f32 %v3203, 0.0
    %v3330 = vmax.f32 %v3208, 0.0
    %v3331 = vmax.f32 %v3211, 0.0
    %v3332 = vmax.f32 %v3216, 0.0
    %v3333 = vmax.f32 %v3219, 0.0
    %v3334 = vmax.f32 %v3224, 0.0
    %v3335 = vmax.f32 %v3227, 0.0
    %v3336 = vmax.f32 %v3232, 0.0
    %v3337 = vmax.f32 %v3235, 0.0
    %v3338 = vmax.f32 %v3240, 0.0
    %v3339 = vmax.f32 %v3243, 0.0
    %v3340 = vmax.f32 %v3248, 0.0
    %v3341 = vmax.f32 %v3251, 0.0
    %v3342 = vmax.f32 %v3256, 0.0
    %v3343 = vmax.f32 %v3259, 0.0
    %v3344 = vmax.f32 %v3264, 0.0
    %v3345 = vmax.f32 %v3267, 0.0
    %v3346 = vmax.f32 %v3272, 0.0
    %v3347 = vmax.f32 %v3275, 0.0
    %v3348 = vmax.f32 %v3280, 0.0
    %v3349 = vmax.f32 %v3283, 0.0
    %3350 = vrot.lane.b32.xlu0 %v3286, 64
    %v3351 = vpop.permute.xlu0 %3350
    %3352 = vrot.lane.b32.xlu0 %v3287, 64
    %v3353 = vpop.permute.xlu0 %3352
    %3354 = vrot.lane.b32.xlu0 %v3288, 64
    %v3355 = vpop.permute.xlu0 %3354
    %3356 = vrot.lane.b32.xlu0 %v3289, 64
    %v3357 = vpop.permute.xlu0 %3356
    %3358 = vrot.lane.b32.xlu0 %v3290, 64
    %v3359 = vpop.permute.xlu0 %3358
    %3360 = vrot.lane.b32.xlu0 %v3291, 64
    %v3361 = vpop.permute.xlu0 %3360
    %3362 = vrot.lane.b32.xlu0 %v3292, 64
    %v3363 = vpop.permute.xlu0 %3362
    %3364 = vrot.lane.b32.xlu0 %v3293, 64
    %v3365 = vpop.permute.xlu0 %3364
    %3366 = vrot.lane.b32.xlu0 %v3294, 64
    %v3367 = vpop.permute.xlu0 %3366
    %3368 = vrot.lane.b32.xlu0 %v3295, 64
    %v3369 = vpop.permute.xlu0 %3368
    %3370 = vrot.lane.b32.xlu0 %v3296, 64
    %v3371 = vpop.permute.xlu0 %3370
    %3372 = vrot.lane.b32.xlu0 %v3297, 64
    %v3373 = vpop.permute.xlu0 %3372
    %3374 = vrot.lane.b32.xlu0 %v3298, 64
    %v3375 = vpop.permute.xlu0 %3374
    %3376 = vrot.lane.b32.xlu0 %v3299, 64
    %v3377 = vpop.permute.xlu0 %3376
    %3378 = vrot.lane.b32.xlu0 %v3300, 64
    %v3379 = vpop.permute.xlu0 %3378
    %3380 = vrot.lane.b32.xlu0 %v3301, 64
    %v3381 = vpop.permute.xlu0 %3380
    %3382 = vrot.lane.b32.xlu0 %v3302, 64
    %v3383 = vpop.permute.xlu0 %3382
    %3384 = vrot.lane.b32.xlu0 %v3303, 64
    %v3385 = vpop.permute.xlu0 %3384
    %3386 = vrot.lane.b32.xlu0 %v3304, 64
    %v3387 = vpop.permute.xlu0 %3386
    %3388 = vrot.lane.b32.xlu0 %v3305, 64
    %v3389 = vpop.permute.xlu0 %3388
    %3390 = vrot.lane.b32.xlu0 %v3306, 64
    %v3391 = vpop.permute.xlu0 %3390
    %3392 = vrot.lane.b32.xlu0 %v3307, 64
    %v3393 = vpop.permute.xlu0 %3392
    %3394 = vrot.lane.b32.xlu0 %v3308, 64
    %v3395 = vpop.permute.xlu0 %3394
    %3396 = vrot.lane.b32.xlu0 %v3309, 64
    %v3397 = vpop.permute.xlu0 %3396
    %3398 = vrot.lane.b32.xlu0 %v3310, 64
    %v3399 = vpop.permute.xlu0 %3398
    %3400 = vrot.lane.b32.xlu0 %v3311, 64
    %v3401 = vpop.permute.xlu0 %3400
    %3402 = vrot.lane.b32.xlu0 %v3312, 64
    %v3403 = vpop.permute.xlu0 %3402
    %3404 = vrot.lane.b32.xlu0 %v3313, 64
    %v3405 = vpop.permute.xlu0 %3404
    %3406 = vrot.lane.b32.xlu0 %v3314, 64
    %v3407 = vpop.permute.xlu0 %3406
    %3408 = vrot.lane.b32.xlu0 %v3315, 64
    %v3409 = vpop.permute.xlu0 %3408
    %3410 = vrot.lane.b32.xlu0 %v3316, 64
    %v3411 = vpop.permute.xlu0 %3410
    %3412 = vrot.lane.b32.xlu0 %v3317, 64
    %v3413 = vpop.permute.xlu0 %3412
    %3414 = vrot.lane.b32.xlu0 %v3318, 64
    %v3415 = vpop.permute.xlu0 %3414
    %3416 = vrot.lane.b32.xlu0 %v3319, 64
    %v3417 = vpop.permute.xlu0 %3416
    %3418 = vrot.lane.b32.xlu0 %v3320, 64
    %v3419 = vpop.permute.xlu0 %3418
    %3420 = vrot.lane.b32.xlu0 %v3321, 64
    %v3421 = vpop.permute.xlu0 %3420
    %3422 = vrot.lane.b32.xlu0 %v3322, 64
    %v3423 = vpop.permute.xlu0 %3422
    %3424 = vrot.lane.b32.xlu0 %v3323, 64
    %v3425 = vpop.permute.xlu0 %3424
    %3426 = vrot.lane.b32.xlu0 %v3324, 64
    %v3427 = vpop.permute.xlu0 %3426
    %3428 = vrot.lane.b32.xlu0 %v3325, 64
    %v3429 = vpop.permute.xlu0 %3428
    %3430 = vrot.lane.b32.xlu0 %v3326, 64
    %v3431 = vpop.permute.xlu0 %3430
    %3432 = vrot.lane.b32.xlu0 %v3327, 64
    %v3433 = vpop.permute.xlu0 %3432
    %3434 = vrot.lane.b32.xlu0 %v3328, 64
    %v3435 = vpop.permute.xlu0 %3434
    %3436 = vrot.lane.b32.xlu0 %v3329, 64
    %v3437 = vpop.permute.xlu0 %3436
    %3438 = vrot.lane.b32.xlu0 %v3330, 64
    %v3439 = vpop.permute.xlu0 %3438
    %3440 = vrot.lane.b32.xlu0 %v3331, 64
    %v3441 = vpop.permute.xlu0 %3440
    %3442 = vrot.lane.b32.xlu0 %v3332, 64
    %v3443 = vpop.permute.xlu0 %3442
    %3444 = vrot.lane.b32.xlu0 %v3333, 64
    %v3445 = vpop.permute.xlu0 %3444
    %3446 = vrot.lane.b32.xlu0 %v3334, 64
    %v3447 = vpop.permute.xlu0 %3446
    %3448 = vrot.lane.b32.xlu0 %v3335, 64
    %v3449 = vpop.permute.xlu0 %3448
    %3450 = vrot.lane.b32.xlu0 %v3336, 64
    %v3451 = vpop.permute.xlu0 %3450
    %3452 = vrot.lane.b32.xlu0 %v3337, 64
    %v3453 = vpop.permute.xlu0 %3452
    %3454 = vrot.lane.b32.xlu0 %v3338, 64
    %v3455 = vpop.permute.xlu0 %3454
    %3456 = vrot.lane.b32.xlu0 %v3339, 64
    %v3457 = vpop.permute.xlu0 %3456
    %3458 = vrot.lane.b32.xlu0 %v3340, 64
    %v3459 = vpop.permute.xlu0 %3458
    %3460 = vrot.lane.b32.xlu0 %v3341, 64
    %v3461 = vpop.permute.xlu0 %3460
    %3462 = vrot.lane.b32.xlu0 %v3342, 64
    %v3463 = vpop.permute.xlu0 %3462
    %3464 = vrot.lane.b32.xlu0 %v3343, 64
    %v3465 = vpop.permute.xlu0 %3464
    %3466 = vrot.lane.b32.xlu0 %v3344, 64
    %v3467 = vpop.permute.xlu0 %3466
    %3468 = vrot.lane.b32.xlu0 %v3345, 64
    %v3469 = vpop.permute.xlu0 %3468
    %3470 = vrot.lane.b32.xlu0 %v3346, 64
    %v3471 = vpop.permute.xlu0 %3470
    %3472 = vrot.lane.b32.xlu0 %v3347, 64
    %v3473 = vpop.permute.xlu0 %3472
    %3474 = vrot.lane.b32.xlu0 %v3348, 64
    %v3475 = vpop.permute.xlu0 %3474
    %3476 = vrot.lane.b32.xlu0 %v3349, 64
    %v3477 = vpop.permute.xlu0 %3476
    %v3478 = vadd.f32 %v3286, %v3351
    %v3479 = vadd.f32 %v3287, %v3353
    %v3480 = vadd.f32 %v3288, %v3355
    %v3481 = vadd.f32 %v3289, %v3357
    %v3482 = vadd.f32 %v3290, %v3359
    %v3483 = vadd.f32 %v3291, %v3361
    %v3484 = vadd.f32 %v3292, %v3363
    %v3485 = vadd.f32 %v3293, %v3365
    %v3486 = vadd.f32 %v3294, %v3367
    %v3487 = vadd.f32 %v3295, %v3369
    %v3488 = vadd.f32 %v3296, %v3371
    %v3489 = vadd.f32 %v3297, %v3373
    %v3490 = vadd.f32 %v3298, %v3375
    %v3491 = vadd.f32 %v3299, %v3377
    %v3492 = vadd.f32 %v3300, %v3379
    %v3493 = vadd.f32 %v3301, %v3381
    %v3494 = vadd.f32 %v3302, %v3383
    %v3495 = vadd.f32 %v3303, %v3385
    %v3496 = vadd.f32 %v3304, %v3387
    %v3497 = vadd.f32 %v3305, %v3389
    %v3498 = vadd.f32 %v3306, %v3391
    %v3499 = vadd.f32 %v3307, %v3393
    %v3500 = vadd.f32 %v3308, %v3395
    %v3501 = vadd.f32 %v3309, %v3397
    %v3502 = vadd.f32 %v3310, %v3399
    %v3503 = vadd.f32 %v3311, %v3401
    %v3504 = vadd.f32 %v3312, %v3403
    %v3505 = vadd.f32 %v3313, %v3405
    %v3506 = vadd.f32 %v3314, %v3407
    %v3507 = vadd.f32 %v3315, %v3409
    %v3508 = vadd.f32 %v3316, %v3411
    %v3509 = vadd.f32 %v3317, %v3413
    %v3510 = vadd.f32 %v3318, %v3415
    %v3511 = vadd.f32 %v3319, %v3417
    %v3512 = vadd.f32 %v3320, %v3419
    %v3513 = vadd.f32 %v3321, %v3421
    %v3514 = vadd.f32 %v3322, %v3423
    %v3515 = vadd.f32 %v3323, %v3425
    %v3516 = vadd.f32 %v3324, %v3427
    %v3517 = vadd.f32 %v3325, %v3429
    %v3518 = vadd.f32 %v3326, %v3431
    %v3519 = vadd.f32 %v3327, %v3433
    %v3520 = vadd.f32 %v3328, %v3435
    %v3521 = vadd.f32 %v3329, %v3437
    %v3522 = vadd.f32 %v3330, %v3439
    %v3523 = vadd.f32 %v3331, %v3441
    %v3524 = vadd.f32 %v3332, %v3443
    %v3525 = vadd.f32 %v3333, %v3445
    %v3526 = vadd.f32 %v3334, %v3447
    %v3527 = vadd.f32 %v3335, %v3449
    %v3528 = vadd.f32 %v3336, %v3451
    %v3529 = vadd.f32 %v3337, %v3453
    %v3530 = vadd.f32 %v3338, %v3455
    %v3531 = vadd.f32 %v3339, %v3457
    %v3532 = vadd.f32 %v3340, %v3459
    %v3533 = vadd.f32 %v3341, %v3461
    %v3534 = vadd.f32 %v3342, %v3463
    %v3535 = vadd.f32 %v3343, %v3465
    %v3536 = vadd.f32 %v3344, %v3467
    %v3537 = vadd.f32 %v3345, %v3469
    %v3538 = vadd.f32 %v3346, %v3471
    %v3539 = vadd.f32 %v3347, %v3473
    %v3540 = vadd.f32 %v3348, %v3475
    %v3541 = vadd.f32 %v3349, %v3477
    %v3542 = vmax.f32 %v3478, %v3482
    %v3543 = vmax.f32 %v3479, %v3483
    %v3544 = vmax.f32 %v3480, %v3484
    %v3545 = vmax.f32 %v3481, %v3485
    %v3546 = vmax.f32 %v3542, %v3486
    %v3547 = vmax.f32 %v3543, %v3487
    %v3548 = vmax.f32 %v3544, %v3488
    %v3549 = vmax.f32 %v3545, %v3489
    %v3550 = vmax.f32 %v3546, %v3490
    %v3551 = vmax.f32 %v3547, %v3491
    %v3552 = vmax.f32 %v3548, %v3492
    %v3553 = vmax.f32 %v3549, %v3493
    %v3554 = vmax.f32 %v3550, %v3494
    %v3555 = vmax.f32 %v3551, %v3495
    %v3556 = vmax.f32 %v3552, %v3496
    %v3557 = vmax.f32 %v3553, %v3497
    %v3558 = vmax.f32 %v3554, %v3498
    %v3559 = vmax.f32 %v3555, %v3499
    %v3560 = vmax.f32 %v3556, %v3500
    %v3561 = vmax.f32 %v3557, %v3501
    %v3562 = vmax.f32 %v3558, %v3502
    %v3563 = vmax.f32 %v3559, %v3503
    %v3564 = vmax.f32 %v3560, %v3504
    %v3565 = vmax.f32 %v3561, %v3505
    %v3566 = vmax.f32 %v3562, %v3506
    %v3567 = vmax.f32 %v3563, %v3507
    %v3568 = vmax.f32 %v3564, %v3508
    %v3569 = vmax.f32 %v3565, %v3509
    %v3570 = vmax.f32 %v3566, %v3567
    %v3571 = vmax.f32 %v3568, %v3569
    %v3572 = vmax.f32 %v3570, %v3571
    %v3573 = vrot.slane %v3572, 4
    %v3574 = vmax.f32 %v3572, %v3573
    %v3575 = vrot.slane %v3574, 2
    %v3576 = vmax.f32 %v3574, %v3575
    %v3577 = vrot.slane %v3576, 1
    %v3578 = vmax.f32 %v3576, %v3577
    %v3579 = vmax.f32 %v3510, %v3514
    %v3580 = vmax.f32 %v3511, %v3515
    %v3581 = vmax.f32 %v3512, %v3516
    %v3582 = vmax.f32 %v3513, %v3517
    %v3583 = vmax.f32 %v3579, %v3518
    %v3584 = vmax.f32 %v3580, %v3519
    %v3585 = vmax.f32 %v3581, %v3520
    %v3586 = vmax.f32 %v3582, %v3521
    %v3587 = vmax.f32 %v3583, %v3522
    %v3588 = vmax.f32 %v3584, %v3523
    %v3589 = vmax.f32 %v3585, %v3524
    %v3590 = vmax.f32 %v3586, %v3525
    %v3591 = vmax.f32 %v3587, %v3526
    %v3592 = vmax.f32 %v3588, %v3527
    %v3593 = vmax.f32 %v3589, %v3528
    %v3594 = vmax.f32 %v3590, %v3529
    %v3595 = vmax.f32 %v3591, %v3530
    %v3596 = vmax.f32 %v3592, %v3531
    %v3597 = vmax.f32 %v3593, %v3532
    %v3598 = vmax.f32 %v3594, %v3533
    %v3599 = vmax.f32 %v3595, %v3534
    %v3600 = vmax.f32 %v3596, %v3535
    %v3601 = vmax.f32 %v3597, %v3536
    %v3602 = vmax.f32 %v3598, %v3537
    %v3603 = vmax.f32 %v3599, %v3538
    %v3604 = vmax.f32 %v3600, %v3539
    %v3605 = vmax.f32 %v3601, %v3540
    %v3606 = vmax.f32 %v3602, %v3541
    %v3607 = vmax.f32 %v3603, %v3604
    %v3608 = vmax.f32 %v3605, %v3606
    %v3609 = vmax.f32 %v3607, %v3608
    %v3610 = vrot.slane %v3609, 4
    %v3611 = vmax.f32 %v3609, %v3610
    %v3612 = vrot.slane %v3611, 2
    %v3613 = vmax.f32 %v3611, %v3612
    %v3614 = vrot.slane %v3613, 1
    %v3615 = vmax.f32 %v3613, %v3614
    %v3616 = vsel %vm1429, %v3578, %v3615
    %v3617 = vld [vmem:[%s7] sm:$0xff]
    %v3618 = vld [vmem:[%s7 + $0x8] sm:$0xff]
    %v3619 = vld [vmem:[%s7 + $0x10] sm:$0xff]
    %v3620 = vld [vmem:[%s7 + $0x18] sm:$0xff]
    %v3621 = vld [vmem:[%s7 + $0x20] sm:$0xff]
    %v3622 = vld [vmem:[%s7 + $0x28] sm:$0xff]
    %v3623 = vld [vmem:[%s7 + $0x30] sm:$0xff]
    %v3624 = vld [vmem:[%s7 + $0x38] sm:$0xff]
    %v3625 = vld [vmem:[%s7 + $0x40] sm:$0xff]
    %v3626 = vld [vmem:[%s7 + $0x48] sm:$0xff]
    %v3627 = vld [vmem:[%s7 + $0x50] sm:$0xff]
    %v3628 = vld [vmem:[%s7 + $0x58] sm:$0xff]
    %v3629 = vld [vmem:[%s7 + $0x60] sm:$0xff]
    %v3630 = vld [vmem:[%s7 + $0x68] sm:$0xff]
    %v3631 = vld [vmem:[%s7 + $0x70] sm:$0xff]
    %v3632 = vld [vmem:[%s7 + $0x78] sm:$0xff]
    %3633 = vmatprep.subr.mxu0 0.0
    %3634 = vmatpush1.msra.mxu0 %v3617
    %3635 = vmatprep.subr.mxu0 0.0
    %3636 = vmatpush1.msra.mxu0 %v3618
    %3637 = vmatprep.subr.mxu0 0.0
    %3638 = vmatpush1.msra.mxu0 %v3619
    %3639 = vmatprep.subr.mxu0 0.0
    %3640 = vmatpush1.msra.mxu0 %v3620
    %3641 = vmatprep.subr.mxu0 0.0
    %3642 = vmatpush1.msra.mxu0 %v3621
    %3643 = vmatprep.subr.mxu0 0.0
    %3644 = vmatpush1.msra.mxu0 %v3622
    %3645 = vmatprep.subr.mxu0 0.0
    %3646 = vmatpush1.msra.mxu0 %v3623
    %3647 = vmatprep.subr.mxu0 0.0
    %3648 = vmatpush1.msra.mxu0 %v3624
    %3649 = vmatprep.subr.mxu0 0.0
    %3650 = vmatpush1.msra.mxu0 %v3625
    %3651 = vmatprep.subr.mxu0 0.0
    %3652 = vmatpush1.msra.mxu0 %v3626
    %3653 = vmatprep.subr.mxu0 0.0
    %3654 = vmatpush1.msra.mxu0 %v3627
    %3655 = vmatprep.subr.mxu0 0.0
    %3656 = vmatpush1.msra.mxu0 %v3628
    %3657 = vmatprep.subr.mxu0 0.0
    %3658 = vmatpush1.msra.mxu0 %v3629
    %3659 = vmatprep.subr.mxu0 0.0
    %3660 = vmatpush1.msra.mxu0 %v3630
    %3661 = vmatprep.subr.mxu0 0.0
    %3662 = vmatpush1.msra.mxu0 %v3631
    %3663 = vmatprep.subr.mxu0 0.0
    %3664 = vmatpush1.msra.mxu0 %v3632
    %3665 = vmatprep.subr.mxu0 0.0
    %3666 = vmatpush1.msra.mxu0 0.0
    %3667 = vmatprep.subr.mxu0 0.0
    %3668 = vmatpush1.msra.mxu0 0.0
    %3669 = vmatprep.subr.mxu0 0.0
    %3670 = vmatpush1.msra.mxu0 0.0
    %3671 = vmatprep.subr.mxu0 0.0
    %3672 = vmatpush1.msra.mxu0 0.0
    %3673 = vmatprep.subr.mxu0 0.0
    %3674 = vmatpush1.msra.mxu0 0.0
    %3675 = vmatprep.subr.mxu0 0.0
    %3676 = vmatpush1.msra.mxu0 0.0
    %3677 = vmatprep.subr.mxu0 0.0
    %3678 = vmatpush1.msra.mxu0 0.0
    %3679 = vmatprep.subr.mxu0 0.0
    %3680 = vmatpush1.msra.mxu0 0.0
    %3681 = vmatprep.subr.mxu0 0.0
    %3682 = vmatpush1.msra.mxu0 0.0
    %3683 = vmatprep.subr.mxu0 0.0
    %3684 = vmatpush1.msra.mxu0 0.0
    %3685 = vmatprep.subr.mxu0 0.0
    %3686 = vmatpush1.msra.mxu0 0.0
    %3687 = vmatprep.subr.mxu0 0.0
    %3688 = vmatpush1.msra.mxu0 0.0
    %3689 = vmatprep.subr.mxu0 0.0
    %3690 = vmatpush1.msra.mxu0 0.0
    %3691 = vmatprep.subr.mxu0 0.0
    %3692 = vmatpush1.msra.mxu0 0.0
    %3693 = vmatprep.subr.mxu0 0.0
    %3694 = vmatpush1.msra.mxu0 0.0
    %3695 = vmatprep.subr.mxu0 0.0
    %3696 = vmatpush1.msra.mxu0 0.0
    %3697 = vmatprep.mubr.f32.mxu0 0.0
    %3698 = vmatmul.mubr.f32.gmra.mrb[0].mxu0 %v3616
    %v3699 = vpop.f32.mrb[0].mxu0
    %v3700 = vadd.f32 0.0, %v3699
    %v3701 = vpop.f32.mrb[0].mxu0
    %3702 = vdwg.mxu0
    %v3703 = vmax.f32 %v3700, 0.0
    %v3704 = vld [vmem:[%s8] sm:$0xf]
    %vm3705 = vcmask 31744
    %v3707 = vsel %vm3705, %v3703, 0
    %vm3709 = vcmask 1043456
    %v3711 = vsel %vm3709, %v3704, 0
    %3713 = vmatprep.subr.mxu0 0.0
    %3714 = vmatpush1.msra.mxu0 %v3711
    %3715 = vmatprep.subr.mxu0 0.0
    %3716 = vmatpush1.msra.mxu0 0.0
    %3717 = vmatprep.subr.mxu0 0.0
    %3718 = vmatpush1.msra.mxu0 0.0
    %3719 = vmatprep.subr.mxu0 0.0
    %3720 = vmatpush1.msra.mxu0 0.0
    %3721 = vmatprep.subr.mxu0 0.0
    %3722 = vmatpush1.msra.mxu0 0.0
    %3723 = vmatprep.subr.mxu0 0.0
    %3724 = vmatpush1.msra.mxu0 0.0
    %3725 = vmatprep.subr.mxu0 0.0
    %3726 = vmatpush1.msra.mxu0 0.0
    %3727 = vmatprep.subr.mxu0 0.0
    %3728 = vmatpush1.msra.mxu0 0.0
    %3729 = vmatprep.subr.mxu0 0.0
    %3730 = vmatpush1.msra.mxu0 0.0
    %3731 = vmatprep.subr.mxu0 0.0
    %3732 = vmatpush1.msra.mxu0 0.0
    %3733 = vmatprep.subr.mxu0 0.0
    %3734 = vmatpush1.msra.mxu0 0.0
    %3735 = vmatprep.subr.mxu0 0.0
    %3736 = vmatpush1.msra.mxu0 0.0
    %3737 = vmatprep.subr.mxu0 0.0
    %3738 = vmatpush1.msra.mxu0 0.0
    %3739 = vmatprep.subr.mxu0 0.0
    %3740 = vmatpush1.msra.mxu0 0.0
    %3741 = vmatprep.subr.mxu0 0.0
    %3742 = vmatpush1.msra.mxu0 0.0
    %3743 = vmatprep.subr.mxu0 0.0
    %3744 = vmatpush1.msra.mxu0 0.0
    %3745 = vmatprep.subr.mxu0 0.0
    %3746 = vmatpush1.msra.mxu0 0.0
    %3747 = vmatprep.subr.mxu0 0.0
    %3748 = vmatpush1.msra.mxu0 0.0
    %3749 = vmatprep.subr.mxu0 0.0
    %3750 = vmatpush1.msra.mxu0 0.0
    %3751 = vmatprep.subr.mxu0 0.0
    %3752 = vmatpush1.msra.mxu0 0.0
    %3753 = vmatprep.subr.mxu0 0.0
    %3754 = vmatpush1.msra.mxu0 0.0
    %3755 = vmatprep.subr.mxu0 0.0
    %3756 = vmatpush1.msra.mxu0 0.0
    %3757 = vmatprep.subr.mxu0 0.0
    %3758 = vmatpush1.msra.mxu0 0.0
    %3759 = vmatprep.subr.mxu0 0.0
    %3760 = vmatpush1.msra.mxu0 0.0
    %3761 = vmatprep.subr.mxu0 0.0
    %3762 = vmatpush1.msra.mxu0 0.0
    %3763 = vmatprep.subr.mxu0 0.0
    %3764 = vmatpush1.msra.mxu0 0.0
    %3765 = vmatprep.subr.mxu0 0.0
    %3766 = vmatpush1.msra.mxu0 0.0
    %3767 = vmatprep.subr.mxu0 0.0
    %3768 = vmatpush1.msra.mxu0 0.0
    %3769 = vmatprep.subr.mxu0 0.0
    %3770 = vmatpush1.msra.mxu0 0.0
    %3771 = vmatprep.subr.mxu0 0.0
    %3772 = vmatpush1.msra.mxu0 0.0
    %3773 = vmatprep.subr.mxu0 0.0
    %3774 = vmatpush1.msra.mxu0 0.0
    %3775 = vmatprep.subr.mxu0 0.0
    %3776 = vmatpush1.msra.mxu0 0.0
    %3777 = vmatprep.mubr.f32.mxu0 0.0
    %3778 = vmatmul.mubr.f32.gmra.mrb[0].mxu0 %v3707
    %v3779 = vpop.f32.mrb[0].mxu0
    %v3780 = vadd.f32 0.0, %v3779
    %v3781 = vpop.f32.mrb[0].mxu0
    %3782 = vdwg.mxu0
    %v3783 = vxor.u32 %v3780, 2147483648
    %v3784 = vmul.f32 %v3783, 1.442695
    %v3785 = vpow.pop %v3784
    %v3786 = vadd.f32 %v3785, 1.0
    %v3787 = vrcp.pop %v3786
    %v3788 = vmul.f32 1.0, %v3787
    %vm3789 = vcmask 517120
    %3790 = vst.msk [vmem:[#allocation2] sm:$0x3] %vm3789, %v3788
    // Predicated region
    $region38: #{cf_forward.1} parent=1 // pred_check
      _
    $region39: #{cf_forward.1} parent=1 // pred_check_branch
      %3792 = sbr.rel (0) target = $region41
    $region40: #{cf_forward.1} parent=1 // pred_region
      %s3794 = ssub.s32 32, 32
      %3795 = vsyncadd [#allocation3], %s3794
      %s3797 = sshll.u32 [#allocation2], 4
      %s3798 = int_to_ptr.vmem [resolvable:$true] %s3797
      %3800 = dma.vmem_to_hbm [thread:$0]  %s3798, 32, %s9, [#allocation3]
    $region41: #{cf_forward.1} parent=1 // pred_fallthru
      _
    // Predicated region
    $region42: #{cf_forward.1} parent=1 // pred_check
      _
    $region43: #{cf_forward.1} parent=1 // pred_check_branch
      %3802 = sbr.rel (0) target = $region45
    $region44: #{cf_forward.1} parent=1 // pred_region
      %3803 = dma.done [#allocation3], 32
    $region45: #{cf_forward.1} parent=1 // pred_fallthru
      _
    %3804 = vsyncpa [#allocation3], 1

</llo_original>
